<compile_context>
chip_gen: v7x
topology: tpu7x:2x2x1
jax: 0.10.0
libtpu: 0.0.40
codegen_flags: <defaults>
</compile_context>

<pallas_src>
import functools
import math

import jax
import jax.numpy as jnp
from jax import lax
from jax.experimental import pallas as pl
from jax.experimental.pallas import tpu as pltpu

D_TEMPL = 64
D_RBF = 36
N_HEAD = 4
D_HIDDEN = 16
N_BLOCK = 2
R_FF = 4
LN_EPS = 1e-5  # PyTorch nn.LayerNorm default


def _cdiv(a, b):
    return -(-a // b)


def _layer_norm(x, w, b):
    mu = jnp.mean(x, axis=-1, keepdims=True)
    var = jnp.mean(jnp.square(x - mu), axis=-1, keepdims=True)
    return (x - mu) * lax.rsqrt(var + LN_EPS) * w + b


def _torsion_stack_kernel(
    tors_ref, pair_ref, rbf_ref,
    projW_ref, wfold_ref, bconst_ref, misc_ref, vecs_ref, b1_ref,
    w_in_ref, w_out_ref,
    out_ref,
    bias_scr,
    *, l_valid,
):
    r = pl.program_id(1)
    n_rt = pl.num_programs(1)

    TR = pair_ref.shape[1]
    Lp = pair_ref.shape[2]
    D = D_TEMPL
    H, DH = N_HEAD, D_HIDDEN
    HD = H * DH
    NBH = N_BLOCK * H
    R = TR * Lp

    # ------------------------------------------------------------------
    # Stage 1 (every step): project this row tile of cat(pair, rbf) and
    # produce the attention biases for BOTH blocks.  The per-block pair
    # LayerNorm affines are folded into wfold/bconst, so mean/var are
    # computed once and one (R,64)@(64,8) matmul yields all 8 head biases.
    # ------------------------------------------------------------------
    pr_pair = pair_ref[0].reshape(R, D).astype(jnp.bfloat16)
    pr_rbf = rbf_ref[0].reshape(R, D_RBF).astype(jnp.bfloat16)
    x = (jnp.dot(pr_pair, projW_ref[0:D], preferred_element_type=jnp.float32)
         + jnp.dot(pr_rbf, projW_ref[D:D + D_RBF],
                   preferred_element_type=jnp.float32)
         + misc_ref[0])                                      # (R, 64) f32

    mu = jnp.mean(x, axis=-1, keepdims=True)
    d = x - mu
    var = jnp.mean(d * d, axis=-1, keepdims=True)
    xn = d * lax.rsqrt(var + LN_EPS)                         # (R, 64) f32

    bias8 = lax.dot_general(
        wfold_ref[...], xn, (((1,), (1,)), ((), ())),
        preferred_element_type=jnp.float32)                  # (NBH, R) lane-dense
    bias8 = bias8 + bconst_ref[...]                          # (NBH, 1) broadcast
    b3 = bias8.reshape(NBH, TR, Lp).astype(bias_scr.dtype)   # bf16 resident
    for c in range(NBH):                                     # static unroll
        bias_scr[c, r, :, :] = b3[c]

    # ------------------------------------------------------------------
    # Stage 2 (last row-tile only): AttentionWithBias + FF over tors.
    # ------------------------------------------------------------------
    @pl.when(r == n_rt - 1)
    def _epilogue():
        scale = 1.0 / math.sqrt(DH)
        tors = tors_ref[0]                                   # (Lp, 64) f32

        if l_valid < Lp:
            kidx = lax.broadcasted_iota(jnp.int32, (1, Lp), 1)
            key_mask = jnp.where(kidx < l_valid, 0.0, -1e30).astype(jnp.float32)
        else:
            key_mask = None

        for i in range(N_BLOCK):
            # ---------------- AttentionWithBias ----------------
            x_ln = _layer_norm(tors, vecs_ref[i, 0], vecs_ref[i, 1])
            x_b = x_ln.astype(jnp.bfloat16)
            # Fused q|k|v|gate projection: one (Lp,64)@(64,256) bf16 matmul.
            qkvg = jnp.dot(x_b, w_in_ref[i, 0:D],
                           preferred_element_type=jnp.float32)
            q = qkvg[:, 0:HD]
            k = qkvg[:, HD:2 * HD] * scale
            v = qkvg[:, 2 * HD:3 * HD].astype(jnp.bfloat16)
            gate = jax.nn.sigmoid(qkvg[:, 3 * HD:4 * HD] + vecs_ref[i, 2])

            attn = jnp.zeros((Lp, D), jnp.float32)
            for h in range(H):
                sl = slice(h * DH, (h + 1) * DH)
                s = lax.dot_general(
                    q[:, sl], k[:, sl], (((1,), (1,)), ((), ())),
                    preferred_element_type=jnp.float32)      # (Lq, Lk) f32
                s = s + bias_scr[i * H + h].reshape(Lp, Lp).astype(jnp.float32)
                if key_mask is not None:
                    s = s + key_mask
                # softmax over keys (PyTorch dim=-2 of (q,k,h))
                s = s - jnp.max(s, axis=1, keepdims=True)
                p = jnp.exp(s)
                p = p * pl.reciprocal(jnp.sum(p, axis=1, keepdims=True),
                                      approx=True)
                o_h = jnp.dot(p.astype(jnp.bfloat16), v[:, sl],
                              preferred_element_type=jnp.float32)
                o_h = (gate[:, sl] * o_h).astype(jnp.bfloat16)
                # distributed output projection: head slice of wo.
                attn = attn + jnp.dot(o_h, w_out_ref[i, h * DH:(h + 1) * DH],
                                      preferred_element_type=jnp.float32)
            tors = tors + attn + vecs_ref[i, 3]              # + bo

            # ---------------- FeedForwardLayer (eval: dropout = identity) ----
            y = _layer_norm(tors, vecs_ref[i, 4],
                            vecs_ref[i, 5]).astype(jnp.bfloat16)
            y = jnp.dot(y, w_in_ref[i, D:2 * D],
                        preferred_element_type=jnp.float32) + b1_ref[i]
            y = jnp.maximum(y, 0.0).astype(jnp.bfloat16)
            y = jnp.dot(y, w_out_ref[i, D:],
                        preferred_element_type=jnp.float32) + vecs_ref[i, 6]
            tors = tors + y

        out_ref[0] = _layer_norm(tors, misc_ref[1], misc_ref[2])


def init_params(key):
    ks = jax.random.split(key, 23)

    def w(k, shape, scale=0.05):
        return (scale * jax.random.normal(k, shape)).astype(jnp.float32)

    nb, D, H, DH = N_BLOCK, D_TEMPL, N_HEAD, D_HIDDEN
    return {
        "projW_pair": w(ks[0], (D, D)),
        "projW_rbf": w(ks[1], (D_RBF, D)),
        "projb": w(ks[2], (1, D), 0.1),
        "lnin_w": 1.0 + w(ks[3], (nb, D), 0.1),
        "lnin_b": w(ks[4], (nb, D), 0.1),
        "lnb_w": 1.0 + w(ks[5], (nb, D), 0.1),
        "lnb_b": w(ks[6], (nb, D), 0.1),
        "wq": w(ks[7], (nb, D, H * DH)),
        "wk": w(ks[8], (nb, D, H * DH)),
        "wv": w(ks[9], (nb, D, H * DH)),
        "wb": w(ks[10], (nb, D, H)),
        "wg": w(ks[11], (nb, D, H * DH)),
        "bg": w(ks[12], (nb, H * DH), 0.1),
        "wo": w(ks[13], (nb, H * DH, D)),
        "bo": w(ks[14], (nb, D), 0.1),
        "ffln_w": 1.0 + w(ks[15], (nb, D), 0.1),
        "ffln_b": w(ks[16], (nb, D), 0.1),
        "w1": w(ks[17], (nb, D, R_FF * D)),
        "b1": w(ks[18], (nb, R_FF * D), 0.1),
        "w2": w(ks[19], (nb, R_FF * D, D)),
        "b2": w(ks[20], (nb, D), 0.1),
        "fn_w": 1.0 + w(ks[21], (1, D), 0.1),
        "fn_b": w(ks[22], (1, D), 0.1),
    }


def _prepare_kernel_weights(params):
    nb, D, H = N_BLOCK, D_TEMPL, N_HEAD
    # bf16 projection weight (pair rows 0..63, rbf rows 64..99); f32 accumulate.
    projW = jnp.concatenate(
        [params["projW_pair"], params["projW_rbf"]], axis=0).astype(jnp.bfloat16)
    # Fold the per-block pair-LayerNorm affine into the bias projection:
    #   bias_i = ((x - mu) * rsqrt(var+eps)) @ (lnb_w_i * wb_i) + lnb_b_i @ wb_i
    wfold = jnp.transpose(params["lnb_w"][:, :, None] * params["wb"],
                          (0, 2, 1)).reshape(nb * H, D).astype(jnp.float32)
    bconst = jnp.einsum("id,idh->ih", params["lnb_b"],
                        params["wb"]).reshape(nb * H, 1).astype(jnp.float32)
    misc = jnp.stack([params["projb"][0], params["fn_w"][0], params["fn_b"][0]],
                     axis=0).astype(jnp.float32)                        # (3, 64)
    vecs = jnp.stack([params["lnin_w"], params["lnin_b"], params["bg"],
                      params["bo"], params["ffln_w"], params["ffln_b"],
                      params["b2"]], axis=1).astype(jnp.float32)        # (nb,7,64)
    b1 = params["b1"].astype(jnp.float32)                               # (nb,256)
    wqkvg = jnp.concatenate([params["wq"], params["wk"], params["wv"],
                             params["wg"]], axis=-1)                    # (nb,64,256)
    w_in = jnp.concatenate([wqkvg, params["w1"]], axis=1).astype(jnp.bfloat16)
    w_out = jnp.concatenate([params["wo"], params["w2"]],
                            axis=1).astype(jnp.bfloat16)                # (nb,320,64)
    return [projW, wfold, bconst, misc, vecs, b1, w_in, w_out]


def _tpu_vmem_capacity():
    try:
        info = pltpu.get_tpu_info()
        cap = getattr(info, "vmem_capacity_bytes", None)
        if cap:
            return int(cap)
    except Exception:
        pass
    return 128 << 20


def _choose_tiling(L, vmem_cap, row_tile=None):
    """Returns (Lp, TR, RT) with Lp = TR*RT >= L, TR % 8 == 0."""
    L8 = _cdiv(L, 8) * 8
    if row_tile is not None:
        TR = min(max(8, _cdiv(row_tile, 8) * 8), L8)
        RT = _cdiv(L8, TR)
        return TR * RT, TR, RT

    def footprint(tr, lp):
        # double-buffered f32 pair+rbf tiles (both lane-pad to 128) + bias-stage
        # temporaries + resident bf16 bias scratch + epilogue (Lp,Lp) temps.
        return 4608 * tr * lp + 36 * lp * lp + (4 << 20)

    tr_target = 64 if vmem_cap <= (72 << 20) else 128
    budget = int(vmem_cap * 0.80)
    if L8 <= tr_target and footprint(L8, L8) <= budget:
        return L8, L8, 1
    rt = max(1, _cdiv(L8, tr_target))
    while True:
        tr = _cdiv(_cdiv(L8, rt), 8) * 8
        lp = tr * rt
        if footprint(tr, lp) <= budget or tr <= 8:
            return lp, tr, rt
        rt += 1


def template_torsion_stack(tors, pair, rbf_feat, params, *, row_tile=None):
    B, T, L, D = tors.shape
    assert D == D_TEMPL
    BT = B * T

    vmem_cap = _tpu_vmem_capacity()
    Lp, TR, RT = _choose_tiling(L, vmem_cap, row_tile=row_tile)

    tors_f = tors.reshape(BT, L, D).astype(jnp.float32)
    pair_f = pair.reshape(BT, L, L, D).astype(jnp.float32)
    rbf_f = rbf_feat.reshape(BT, L, L, D_RBF).astype(jnp.float32)
    if Lp != L:
        dp = Lp - L
        tors_f = jnp.pad(tors_f, ((0, 0), (0, dp), (0, 0)))
        pair_f = jnp.pad(pair_f, ((0, 0), (0, dp), (0, dp), (0, 0)))
        rbf_f = jnp.pad(rbf_f, ((0, 0), (0, dp), (0, dp), (0, 0)))

    weights = _prepare_kernel_weights(params)

    def full_spec(a):
        nd = a.ndim
        return pl.BlockSpec(a.shape, lambda b, r, _nd=nd: (0,) * _nd)

    in_specs = [
        pl.BlockSpec((1, Lp, D), lambda b, r: (b, 0, 0)),
        pl.BlockSpec((1, TR, Lp, D), lambda b, r: (b, r, 0, 0)),
        pl.BlockSpec((1, TR, Lp, D_RBF), lambda b, r: (b, r, 0, 0)),
    ] + [full_spec(a) for a in weights]

    out = pl.pallas_call(
        functools.partial(_torsion_stack_kernel, l_valid=L),
        grid=(BT, RT),
        in_specs=in_specs,
        out_specs=pl.BlockSpec((1, Lp, D), lambda b, r: (b, 0, 0)),
        out_shape=jax.ShapeDtypeStruct((BT, Lp, D), jnp.float32),
        scratch_shapes=[
            # Persistent per-template head-leading attention biases (bf16).
            pltpu.VMEM((N_BLOCK * N_HEAD, RT, TR, Lp), jnp.bfloat16),
        ],
        compiler_params=pltpu.CompilerParams(
            dimension_semantics=("parallel", "arbitrary"),
            vmem_limit_bytes=int(vmem_cap * 0.90),
        ),
    )(tors_f, pair_f, rbf_f, *weights)
    return out[:, :L, :].reshape(B, T, L, D)


def reference_forward(tors, pair, rbf_feat, params):
    """Pure-JAX (f32) mirror of the PyTorch forward (eval mode)."""
    B, T, L, D = tors.shape
    BT = B * T
    x = tors.reshape(BT, L, D)
    pr = jnp.concatenate(
        [pair.reshape(BT, L, L, D), rbf_feat.reshape(BT, L, L, D_RBF)], axis=-1)
    Wp = jnp.concatenate([params["projW_pair"], params["projW_rbf"]], axis=0)
    pr = pr @ Wp + params["projb"][0]

    def ln(v, w, b):
        mu = v.mean(-1, keepdims=True)
        var = ((v - mu) ** 2).mean(-1, keepdims=True)
        return (v - mu) / jnp.sqrt(var + LN_EPS) * w + b

    for i in range(N_BLOCK):
        xn = ln(x, params["lnin_w"][i], params["lnin_b"][i])
        bn = ln(pr, params["lnb_w"][i], params["lnb_b"][i])
        q = (xn @ params["wq"][i]).reshape(BT, L, N_HEAD, D_HIDDEN)
        k = (xn @ params["wk"][i]).reshape(BT, L, N_HEAD, D_HIDDEN)
        v = (xn @ params["wv"][i]).reshape(BT, L, N_HEAD, D_HIDDEN)
        bias = bn @ params["wb"][i]
        gate = jax.nn.sigmoid(xn @ params["wg"][i] + params["bg"][i])
        k = k * (1.0 / math.sqrt(D_HIDDEN))
        attn = jnp.einsum("bqhd,bkhd->bqkh", q, k) + bias
        attn = jax.nn.softmax(attn, axis=-2)
        o = jnp.einsum("bqkh,bkhd->bqhd", attn, v).reshape(BT, L, -1)
        o = gate * o
        o = o @ params["wo"][i] + params["bo"][i]
        x = x + o
        y = ln(x, params["ffln_w"][i], params["ffln_b"][i])
        y = jnp.maximum(y @ params["w1"][i] + params["b1"][i], 0.0)
        y = y @ params["w2"][i] + params["b2"][i]
        x = x + y
    return ln(x, params["fn_w"][0], params["fn_b"][0]).reshape(B, T, L, D)


if __name__ == "__main__":
    key = jax.random.PRNGKey(0)
    kt, kp, kr, kw, k2t, k2p, k2r, k3t, k3p, k3r = jax.random.split(key, 10)
    params = init_params(kw)

    def run_case(B, T, L, kt_, kp_, kr_, row_tile=None):
        tors = jax.random.normal(kt_, (B, T, L, D_TEMPL), jnp.float32)
        pair = jax.random.normal(kp_, (B, T, L, L, D_TEMPL), jnp.float32)
        rbf = jax.random.normal(kr_, (B * T, L, L, D_RBF), jnp.float32)
        out = jax.block_until_ready(
            template_torsion_stack(tors, pair, rbf, params, row_tile=row_tile))
        ref = reference_forward(tors, pair, rbf, params)
        assert out.shape == (B, T, L, D_TEMPL)
        err = float(jnp.max(jnp.abs(out - ref)))
        assert bool(jnp.allclose(out, ref, atol=5e-2, rtol=5e-2)), err

    # Case 1: L a multiple of 8, single row tile.
    run_case(1, 2, 8, kt, kp, kr)
    # Case 2: L not a multiple of 8 -> pad-to-8 + key-mask path.
    run_case(1, 2, 10, k2t, k2p, k2r)
    # Case 3: multiple row tiles -> exercises the persistent bias scratch
    # accumulation + pl.when epilogue across grid steps.
    run_case(1, 2, 20, k3t, k3p, k3r, row_tile=8)

    print("KERNEL_OK")
</pallas_src>

<mosaic_0001>
module attributes {stable_mosaic.version = 11 : i64} {
  func.func @_torsion_stack_kernel(%arg0: i32, %arg1: i32, %arg2: memref<1x8x64xf32, #tpu.memory_space<vmem>>, %arg3: memref<1x8x8x64xf32, #tpu.memory_space<vmem>>, %arg4: memref<1x8x8x36xf32, #tpu.memory_space<vmem>>, %arg5: memref<100x64xbf16, #tpu.memory_space<vmem>>, %arg6: memref<8x64xf32, #tpu.memory_space<vmem>>, %arg7: memref<8x1xf32, #tpu.memory_space<vmem>>, %arg8: memref<3x64xf32, #tpu.memory_space<vmem>>, %arg9: memref<2x7x64xf32, #tpu.memory_space<vmem>>, %arg10: memref<2x256xf32, #tpu.memory_space<vmem>>, %arg11: memref<2x128x256xbf16, #tpu.memory_space<vmem>>, %arg12: memref<2x320x64xbf16, #tpu.memory_space<vmem>>, %arg13: memref<1x8x64xf32, #tpu.memory_space<vmem>>, %arg14: memref<8x1x8x8xbf16, #tpu.memory_space<vmem>>) attributes {dimension_semantics = [#tpu.dimension_semantics<parallel>, #tpu.dimension_semantics<arbitrary>], iteration_bounds = array<i64: 2, 1>, scalar_prefetch = 0 : i64, scratch_operands = 1 : i64, tpu.core_type = #tpu.core_type<tc>, window_params = [{transform_indices = @transform_0, window_bounds = array<i64: 1, 8, 64>}, {transform_indices = @transform_1, window_bounds = array<i64: 1, 8, 8, 64>}, {transform_indices = @transform_2, window_bounds = array<i64: 1, 8, 8, 36>}, {pipeline_mode = #tpu.pipeline_mode<synchronous>, transform_indices = @transform_3, window_bounds = array<i64: 100, 64>}, {pipeline_mode = #tpu.pipeline_mode<synchronous>, transform_indices = @transform_4, window_bounds = array<i64: 8, 64>}, {pipeline_mode = #tpu.pipeline_mode<synchronous>, transform_indices = @transform_5, window_bounds = array<i64: 8, 1>}, {pipeline_mode = #tpu.pipeline_mode<synchronous>, transform_indices = @transform_6, window_bounds = array<i64: 3, 64>}, {pipeline_mode = #tpu.pipeline_mode<synchronous>, transform_indices = @transform_7, window_bounds = array<i64: 2, 7, 64>}, {pipeline_mode = #tpu.pipeline_mode<synchronous>, transform_indices = @transform_8, window_bounds = array<i64: 2, 256>}, {pipeline_mode = #tpu.pipeline_mode<synchronous>, transform_indices = @transform_9, window_bounds = array<i64: 2, 128, 256>}, {pipeline_mode = #tpu.pipeline_mode<synchronous>, transform_indices = @transform_10, window_bounds = array<i64: 2, 320, 64>}, {transform_indices = @transform_11, window_bounds = array<i64: 1, 8, 64>}]} {
    %c0 = arith.constant 0 : index
    %c0_0 = arith.constant 0 : index
    %c0_1 = arith.constant 0 : index
    %c0_2 = arith.constant 0 : index
    %0 = vector.load %arg3[%c0, %c0_0, %c0_1, %c0_2] : memref<1x8x8x64xf32, #tpu.memory_space<vmem>>, vector<1x8x8x64xf32>
    %1 = vector.shape_cast %0 : vector<1x8x8x64xf32> to vector<8x8x64xf32>
    %2 = vector.shape_cast %1 : vector<8x8x64xf32> to vector<64x64xf32>
    %3 = arith.truncf %2 : vector<64x64xf32> to vector<64x64xbf16>
    %c0_3 = arith.constant 0 : index
    %c0_4 = arith.constant 0 : index
    %c0_5 = arith.constant 0 : index
    %c0_6 = arith.constant 0 : index
    %4 = vector.load %arg4[%c0_3, %c0_4, %c0_5, %c0_6] : memref<1x8x8x36xf32, #tpu.memory_space<vmem>>, vector<1x8x8x36xf32>
    %5 = vector.shape_cast %4 : vector<1x8x8x36xf32> to vector<8x8x36xf32>
    %6 = vector.shape_cast %5 : vector<8x8x36xf32> to vector<64x36xf32>
    %7 = arith.truncf %6 : vector<64x36xf32> to vector<64x36xbf16>
    %c0_7 = arith.constant 0 : index
    %c0_8 = arith.constant 0 : index
    %8 = vector.load %arg5[%c0_7, %c0_8] : memref<100x64xbf16, #tpu.memory_space<vmem>>, vector<64x64xbf16>
    %cst = arith.constant dense<0.000000e+00> : vector<64x64xf32>
    %9 = tpu.matmul %3, %8, %cst {dimension_numbers = #tpu.dot_dimension_numbers<[1], [0], [0], [1], [0, 0, 1, 1], [], []>} : vector<64x64xbf16>, vector<64x64xbf16>, vector<64x64xf32> -> vector<64x64xf32>
    %c64 = arith.constant 64 : index
    %c0_9 = arith.constant 0 : index
    %10 = vector.load %arg5[%c64, %c0_9] : memref<100x64xbf16, #tpu.memory_space<vmem>>, vector<36x64xbf16>
    %cst_10 = arith.constant dense<0.000000e+00> : vector<64x64xf32>
    %11 = tpu.matmul %7, %10, %cst_10 {dimension_numbers = #tpu.dot_dimension_numbers<[1], [0], [0], [1], [0, 0, 1, 1], [], []>} : vector<64x36xbf16>, vector<36x64xbf16>, vector<64x64xf32> -> vector<64x64xf32>
    %12 = arith.addf %9, %11 : vector<64x64xf32>
    %c0_11 = arith.constant 0 : index
    %c0_12 = arith.constant 0 : index
    %13 = vector.load %arg8[%c0_11, %c0_12] : memref<3x64xf32, #tpu.memory_space<vmem>>, vector<1x64xf32>
    %14 = vector.shape_cast %13 : vector<1x64xf32> to vector<64xf32>
    %15 = vector.shape_cast %14 : vector<64xf32> to vector<1x64xf32>
    %16 = vector.broadcast %15 : vector<1x64xf32> to vector<64x64xf32>
    %17 = arith.addf %12, %16 : vector<64x64xf32>
    %cst_13 = arith.constant dense<0.000000e+00> : vector<64xf32>
    %18 = vector.multi_reduction <add>, %17, %cst_13 [1] : vector<64x64xf32> to vector<64xf32>
    %19 = vector.shape_cast %18 : vector<64xf32> to vector<64x1xf32>
    %cst_14 = arith.constant 6.400000e+01 : f32
    %20 = vector.broadcast %cst_14 : f32 to vector<64x1xf32>
    %21 = arith.divf %19, %20 : vector<64x1xf32>
    %22 = vector.broadcast %21 : vector<64x1xf32> to vector<64x64xf32>
    %23 = arith.subf %17, %22 : vector<64x64xf32>
    %24 = arith.mulf %23, %23 : vector<64x64xf32>
    %cst_15 = arith.constant dense<0.000000e+00> : vector<64xf32>
    %25 = vector.multi_reduction <add>, %24, %cst_15 [1] : vector<64x64xf32> to vector<64xf32>
    %26 = vector.shape_cast %25 : vector<64xf32> to vector<64x1xf32>
    %cst_16 = arith.constant 6.400000e+01 : f32
    %27 = vector.broadcast %cst_16 : f32 to vector<64x1xf32>
    %28 = arith.divf %26, %27 : vector<64x1xf32>
    %cst_17 = arith.constant 9.99999974E-6 : f32
    %29 = vector.broadcast %cst_17 : f32 to vector<64x1xf32>
    %30 = arith.addf %28, %29 : vector<64x1xf32>
    %31 = math.rsqrt %30 : vector<64x1xf32>
    %32 = vector.broadcast %31 : vector<64x1xf32> to vector<64x64xf32>
    %33 = arith.mulf %23, %32 : vector<64x64xf32>
    %c0_18 = arith.constant 0 : index
    %c0_19 = arith.constant 0 : index
    %34 = vector.load %arg6[%c0_18, %c0_19] : memref<8x64xf32, #tpu.memory_space<vmem>>, vector<8x64xf32>
    %cst_20 = arith.constant dense<0.000000e+00> : vector<8x64xf32>
    %35 = tpu.matmul %34, %33, %cst_20 {dimension_numbers = #tpu.dot_dimension_numbers<[1], [1], [0], [0], [0, 0, 1, 0], [], []>} : vector<8x64xf32>, vector<64x64xf32>, vector<8x64xf32> -> vector<8x64xf32>
    %c0_21 = arith.constant 0 : index
    %c0_22 = arith.constant 0 : index
    %36 = vector.load %arg7[%c0_21, %c0_22] : memref<8x1xf32, #tpu.memory_space<vmem>>, vector<8x1xf32>
    %37 = vector.broadcast %36 : vector<8x1xf32> to vector<8x64xf32>
    %38 = arith.addf %35, %37 : vector<8x64xf32>
    %39 = vector.shape_cast %38 : vector<8x64xf32> to vector<8x8x8xf32>
    %40 = arith.truncf %39 : vector<8x8x8xf32> to vector<8x8x8xbf16>
    %41 = vector.extract_strided_slice %40 {offsets = [0, 0, 0], sizes = [1, 8, 8], strides = [1, 1, 1]} : vector<8x8x8xbf16> to vector<1x8x8xbf16>
    %42 = vector.shape_cast %41 : vector<1x8x8xbf16> to vector<8x8xbf16>
    %c0_23 = arith.constant 0 : index
    %43 = arith.index_cast %arg1 : i32 to index
    %c0_24 = arith.constant 0 : index
    %c0_25 = arith.constant 0 : index
    %44 = vector.load %arg14[%c0_23, %43, %c0_24, %c0_25] : memref<8x1x8x8xbf16, #tpu.memory_space<vmem>>, vector<1x1x8x8xbf16>
    %45 = vector.shape_cast %44 : vector<1x1x8x8xbf16> to vector<8x8xbf16>
    %46 = vector.shape_cast %42 : vector<8x8xbf16> to vector<1x1x8x8xbf16>
    tpu.vector_store %arg14[%c0_23, %43, %c0_24, %c0_25], %46 {strides = array<i32>} : memref<8x1x8x8xbf16, #tpu.memory_space<vmem>>, vector<1x1x8x8xbf16>,
    %47 = vector.extract_strided_slice %40 {offsets = [1, 0, 0], sizes = [1, 8, 8], strides = [1, 1, 1]} : vector<8x8x8xbf16> to vector<1x8x8xbf16>
    %48 = vector.shape_cast %47 : vector<1x8x8xbf16> to vector<8x8xbf16>
    %c1 = arith.constant 1 : index
    %49 = arith.index_cast %arg1 : i32 to index
    %c0_26 = arith.constant 0 : index
    %c0_27 = arith.constant 0 : index
    %50 = vector.load %arg14[%c1, %49, %c0_26, %c0_27] : memref<8x1x8x8xbf16, #tpu.memory_space<vmem>>, vector<1x1x8x8xbf16>
    %51 = vector.shape_cast %50 : vector<1x1x8x8xbf16> to vector<8x8xbf16>
    %52 = vector.shape_cast %48 : vector<8x8xbf16> to vector<1x1x8x8xbf16>
    tpu.vector_store %arg14[%c1, %49, %c0_26, %c0_27], %52 {strides = array<i32>} : memref<8x1x8x8xbf16, #tpu.memory_space<vmem>>, vector<1x1x8x8xbf16>,
    %53 = vector.extract_strided_slice %40 {offsets = [2, 0, 0], sizes = [1, 8, 8], strides = [1, 1, 1]} : vector<8x8x8xbf16> to vector<1x8x8xbf16>
    %54 = vector.shape_cast %53 : vector<1x8x8xbf16> to vector<8x8xbf16>
    %c2 = arith.constant 2 : index
    %55 = arith.index_cast %arg1 : i32 to index
    %c0_28 = arith.constant 0 : index
    %c0_29 = arith.constant 0 : index
    %56 = vector.load %arg14[%c2, %55, %c0_28, %c0_29] : memref<8x1x8x8xbf16, #tpu.memory_space<vmem>>, vector<1x1x8x8xbf16>
    %57 = vector.shape_cast %56 : vector<1x1x8x8xbf16> to vector<8x8xbf16>
    %58 = vector.shape_cast %54 : vector<8x8xbf16> to vector<1x1x8x8xbf16>
    tpu.vector_store %arg14[%c2, %55, %c0_28, %c0_29], %58 {strides = array<i32>} : memref<8x1x8x8xbf16, #tpu.memory_space<vmem>>, vector<1x1x8x8xbf16>,
    %59 = vector.extract_strided_slice %40 {offsets = [3, 0, 0], sizes = [1, 8, 8], strides = [1, 1, 1]} : vector<8x8x8xbf16> to vector<1x8x8xbf16>
    %60 = vector.shape_cast %59 : vector<1x8x8xbf16> to vector<8x8xbf16>
    %c3 = arith.constant 3 : index
    %61 = arith.index_cast %arg1 : i32 to index
    %c0_30 = arith.constant 0 : index
    %c0_31 = arith.constant 0 : index
    %62 = vector.load %arg14[%c3, %61, %c0_30, %c0_31] : memref<8x1x8x8xbf16, #tpu.memory_space<vmem>>, vector<1x1x8x8xbf16>
    %63 = vector.shape_cast %62 : vector<1x1x8x8xbf16> to vector<8x8xbf16>
    %64 = vector.shape_cast %60 : vector<8x8xbf16> to vector<1x1x8x8xbf16>
    tpu.vector_store %arg14[%c3, %61, %c0_30, %c0_31], %64 {strides = array<i32>} : memref<8x1x8x8xbf16, #tpu.memory_space<vmem>>, vector<1x1x8x8xbf16>,
    %65 = vector.extract_strided_slice %40 {offsets = [4, 0, 0], sizes = [1, 8, 8], strides = [1, 1, 1]} : vector<8x8x8xbf16> to vector<1x8x8xbf16>
    %66 = vector.shape_cast %65 : vector<1x8x8xbf16> to vector<8x8xbf16>
    %c4 = arith.constant 4 : index
    %67 = arith.index_cast %arg1 : i32 to index
    %c0_32 = arith.constant 0 : index
    %c0_33 = arith.constant 0 : index
    %68 = vector.load %arg14[%c4, %67, %c0_32, %c0_33] : memref<8x1x8x8xbf16, #tpu.memory_space<vmem>>, vector<1x1x8x8xbf16>
    %69 = vector.shape_cast %68 : vector<1x1x8x8xbf16> to vector<8x8xbf16>
    %70 = vector.shape_cast %66 : vector<8x8xbf16> to vector<1x1x8x8xbf16>
    tpu.vector_store %arg14[%c4, %67, %c0_32, %c0_33], %70 {strides = array<i32>} : memref<8x1x8x8xbf16, #tpu.memory_space<vmem>>, vector<1x1x8x8xbf16>,
    %71 = vector.extract_strided_slice %40 {offsets = [5, 0, 0], sizes = [1, 8, 8], strides = [1, 1, 1]} : vector<8x8x8xbf16> to vector<1x8x8xbf16>
    %72 = vector.shape_cast %71 : vector<1x8x8xbf16> to vector<8x8xbf16>
    %c5 = arith.constant 5 : index
    %73 = arith.index_cast %arg1 : i32 to index
    %c0_34 = arith.constant 0 : index
    %c0_35 = arith.constant 0 : index
    %74 = vector.load %arg14[%c5, %73, %c0_34, %c0_35] : memref<8x1x8x8xbf16, #tpu.memory_space<vmem>>, vector<1x1x8x8xbf16>
    %75 = vector.shape_cast %74 : vector<1x1x8x8xbf16> to vector<8x8xbf16>
    %76 = vector.shape_cast %72 : vector<8x8xbf16> to vector<1x1x8x8xbf16>
    tpu.vector_store %arg14[%c5, %73, %c0_34, %c0_35], %76 {strides = array<i32>} : memref<8x1x8x8xbf16, #tpu.memory_space<vmem>>, vector<1x1x8x8xbf16>,
    %77 = vector.extract_strided_slice %40 {offsets = [6, 0, 0], sizes = [1, 8, 8], strides = [1, 1, 1]} : vector<8x8x8xbf16> to vector<1x8x8xbf16>
    %78 = vector.shape_cast %77 : vector<1x8x8xbf16> to vector<8x8xbf16>
    %c6 = arith.constant 6 : index
    %79 = arith.index_cast %arg1 : i32 to index
    %c0_36 = arith.constant 0 : index
    %c0_37 = arith.constant 0 : index
    %80 = vector.load %arg14[%c6, %79, %c0_36, %c0_37] : memref<8x1x8x8xbf16, #tpu.memory_space<vmem>>, vector<1x1x8x8xbf16>
    %81 = vector.shape_cast %80 : vector<1x1x8x8xbf16> to vector<8x8xbf16>
    %82 = vector.shape_cast %78 : vector<8x8xbf16> to vector<1x1x8x8xbf16>
    tpu.vector_store %arg14[%c6, %79, %c0_36, %c0_37], %82 {strides = array<i32>} : memref<8x1x8x8xbf16, #tpu.memory_space<vmem>>, vector<1x1x8x8xbf16>,
    %83 = vector.extract_strided_slice %40 {offsets = [7, 0, 0], sizes = [1, 8, 8], strides = [1, 1, 1]} : vector<8x8x8xbf16> to vector<1x8x8xbf16>
    %84 = vector.shape_cast %83 : vector<1x8x8xbf16> to vector<8x8xbf16>
    %c7 = arith.constant 7 : index
    %85 = arith.index_cast %arg1 : i32 to index
    %c0_38 = arith.constant 0 : index
    %c0_39 = arith.constant 0 : index
    %86 = vector.load %arg14[%c7, %85, %c0_38, %c0_39] : memref<8x1x8x8xbf16, #tpu.memory_space<vmem>>, vector<1x1x8x8xbf16>
    %87 = vector.shape_cast %86 : vector<1x1x8x8xbf16> to vector<8x8xbf16>
    %88 = vector.shape_cast %84 : vector<8x8xbf16> to vector<1x1x8x8xbf16>
    tpu.vector_store %arg14[%c7, %85, %c0_38, %c0_39], %88 {strides = array<i32>} : memref<8x1x8x8xbf16, #tpu.memory_space<vmem>>, vector<1x1x8x8xbf16>,
    %c0_i32 = arith.constant 0 : i32
    %89 = arith.cmpi eq, %arg1, %c0_i32 : i32
    %90 = arith.extui %89 : i1 to i32
    %c0_i32_40 = arith.constant 0 : i32
    %91 = arith.cmpi ne, %90, %c0_i32_40 : i32
    scf.if %91 {
      %c0_41 = arith.constant 0 : index
      %c0_42 = arith.constant 0 : index
      %c0_43 = arith.constant 0 : index
      %92 = vector.load %arg2[%c0_41, %c0_42, %c0_43] : memref<1x8x64xf32, #tpu.memory_space<vmem>>, vector<1x8x64xf32>
      %93 = vector.shape_cast %92 : vector<1x8x64xf32> to vector<8x64xf32>
      %c0_44 = arith.constant 0 : index
      %c0_45 = arith.constant 0 : index
      %c0_46 = arith.constant 0 : index
      %94 = vector.load %arg9[%c0_44, %c0_45, %c0_46] : memref<2x7x64xf32, #tpu.memory_space<vmem>>, vector<1x1x64xf32>
      %95 = vector.shape_cast %94 : vector<1x1x64xf32> to vector<64xf32>
      %c0_47 = arith.constant 0 : index
      %c1_48 = arith.constant 1 : index
      %c0_49 = arith.constant 0 : index
      %96 = vector.load %arg9[%c0_47, %c1_48, %c0_49] : memref<2x7x64xf32, #tpu.memory_space<vmem>>, vector<1x1x64xf32>
      %97 = vector.shape_cast %96 : vector<1x1x64xf32> to vector<64xf32>
      %cst_50 = arith.constant dense<0.000000e+00> : vector<8xf32>
      %98 = vector.multi_reduction <add>, %93, %cst_50 [1] : vector<8x64xf32> to vector<8xf32>
      %99 = vector.shape_cast %98 : vector<8xf32> to vector<8x1xf32>
      %cst_51 = arith.constant 6.400000e+01 : f32
      %100 = vector.broadcast %cst_51 : f32 to vector<8x1xf32>
      %101 = arith.divf %99, %100 : vector<8x1xf32>
      %102 = vector.broadcast %101 : vector<8x1xf32> to vector<8x64xf32>
      %103 = arith.subf %93, %102 : vector<8x64xf32>
      %104 = arith.mulf %103, %103 : vector<8x64xf32>
      %cst_52 = arith.constant dense<0.000000e+00> : vector<8xf32>
      %105 = vector.multi_reduction <add>, %104, %cst_52 [1] : vector<8x64xf32> to vector<8xf32>
      %106 = vector.shape_cast %105 : vector<8xf32> to vector<8x1xf32>
      %cst_53 = arith.constant 6.400000e+01 : f32
      %107 = vector.broadcast %cst_53 : f32 to vector<8x1xf32>
      %108 = arith.divf %106, %107 : vector<8x1xf32>
      %109 = vector.broadcast %101 : vector<8x1xf32> to vector<8x64xf32>
      %110 = arith.subf %93, %109 : vector<8x64xf32>
      %cst_54 = arith.constant 9.99999974E-6 : f32
      %111 = vector.broadcast %cst_54 : f32 to vector<8x1xf32>
      %112 = arith.addf %108, %111 : vector<8x1xf32>
      %113 = math.rsqrt %112 : vector<8x1xf32>
      %114 = vector.broadcast %113 : vector<8x1xf32> to vector<8x64xf32>
      %115 = arith.mulf %110, %114 : vector<8x64xf32>
      %116 = vector.shape_cast %95 : vector<64xf32> to vector<1x64xf32>
      %117 = vector.broadcast %116 : vector<1x64xf32> to vector<8x64xf32>
      %118 = arith.mulf %115, %117 : vector<8x64xf32>
      %119 = vector.shape_cast %97 : vector<64xf32> to vector<1x64xf32>
      %120 = vector.broadcast %119 : vector<1x64xf32> to vector<8x64xf32>
      %121 = arith.addf %118, %120 : vector<8x64xf32>
      %122 = arith.truncf %121 : vector<8x64xf32> to vector<8x64xbf16>
      %c0_55 = arith.constant 0 : index
      %c0_56 = arith.constant 0 : index
      %c0_57 = arith.constant 0 : index
      %123 = vector.load %arg11[%c0_55, %c0_56, %c0_57] : memref<2x128x256xbf16, #tpu.memory_space<vmem>>, vector<1x64x256xbf16>
      %124 = vector.shape_cast %123 : vector<1x64x256xbf16> to vector<64x256xbf16>
      %cst_58 = arith.constant dense<0.000000e+00> : vector<8x256xf32>
      %125 = tpu.matmul %122, %124, %cst_58 {dimension_numbers = #tpu.dot_dimension_numbers<[1], [0], [0], [1], [0, 0, 1, 1], [], []>} : vector<8x64xbf16>, vector<64x256xbf16>, vector<8x256xf32> -> vector<8x256xf32>
      %126 = vector.extract_strided_slice %125 {offsets = [0, 0], sizes = [8, 64], strides = [1, 1]} : vector<8x256xf32> to vector<8x64xf32>
      %127 = vector.extract_strided_slice %125 {offsets = [0, 64], sizes = [8, 64], strides = [1, 1]} : vector<8x256xf32> to vector<8x64xf32>
      %cst_59 = arith.constant 2.500000e-01 : f32
      %128 = vector.broadcast %cst_59 : f32 to vector<8x64xf32>
      %129 = arith.mulf %127, %128 : vector<8x64xf32>
      %130 = vector.extract_strided_slice %125 {offsets = [0, 128], sizes = [8, 64], strides = [1, 1]} : vector<8x256xf32> to vector<8x64xf32>
      %131 = arith.truncf %130 : vector<8x64xf32> to vector<8x64xbf16>
      %132 = vector.extract_strided_slice %125 {offsets = [0, 192], sizes = [8, 64], strides = [1, 1]} : vector<8x256xf32> to vector<8x64xf32>
      %c0_60 = arith.constant 0 : index
      %c2_61 = arith.constant 2 : index
      %c0_62 = arith.constant 0 : index
      %133 = vector.load %arg9[%c0_60, %c2_61, %c0_62] : memref<2x7x64xf32, #tpu.memory_space<vmem>>, vector<1x1x64xf32>
      %134 = vector.shape_cast %133 : vector<1x1x64xf32> to vector<64xf32>
      %135 = vector.shape_cast %134 : vector<64xf32> to vector<1x64xf32>
      %136 = vector.broadcast %135 : vector<1x64xf32> to vector<8x64xf32>
      %137 = arith.addf %132, %136 : vector<8x64xf32>
      %138 = arith.negf %137 : vector<8x64xf32>
      %139 = math.exp %138 : vector<8x64xf32>
      %cst_63 = arith.constant 1.000000e+00 : f32
      %140 = vector.broadcast %cst_63 : f32 to vector<8x64xf32>
      %141 = arith.addf %140, %139 : vector<8x64xf32>
      %142 = arith.divf %140, %141 : vector<8x64xf32>
      %cst_64 = arith.constant 0.000000e+00 : f32
      %143 = vector.broadcast %cst_64 : f32 to vector<8x64xf32>
      %144 = vector.extract_strided_slice %126 {offsets = [0, 0], sizes = [8, 16], strides = [1, 1]} : vector<8x64xf32> to vector<8x16xf32>
      %145 = vector.extract_strided_slice %129 {offsets = [0, 0], sizes = [8, 16], strides = [1, 1]} : vector<8x64xf32> to vector<8x16xf32>
      %cst_65 = arith.constant dense<0.000000e+00> : vector<8x8xf32>
      %146 = tpu.matmul %144, %145, %cst_65 {dimension_numbers = #tpu.dot_dimension_numbers<[1], [1], [0], [0], [0, 0, 1, 0], [], []>} : vector<8x16xf32>, vector<8x16xf32>, vector<8x8xf32> -> vector<8x8xf32>
      %c0_66 = arith.constant 0 : index
      %c0_67 = arith.constant 0 : index
      %c0_68 = arith.constant 0 : index
      %c0_69 = arith.constant 0 : index
      %147 = vector.load %arg14[%c0_66, %c0_67, %c0_68, %c0_69] : memref<8x1x8x8xbf16, #tpu.memory_space<vmem>>, vector<1x1x8x8xbf16>
      %148 = vector.shape_cast %147 : vector<1x1x8x8xbf16> to vector<1x8x8xbf16>
      %149 = vector.shape_cast %148 : vector<1x8x8xbf16> to vector<8x8xbf16>
      %150 = arith.extf %149 : vector<8x8xbf16> to vector<8x8xf32>
      %151 = arith.addf %146, %150 : vector<8x8xf32>
      %cst_70 = arith.constant dense<0xFF800000> : vector<8xf32>
      %152 = vector.multi_reduction <maximumf>, %151, %cst_70 [1] : vector<8x8xf32> to vector<8xf32>
      %153 = vector.shape_cast %152 : vector<8xf32> to vector<8x1xf32>
      %154 = vector.broadcast %153 : vector<8x1xf32> to vector<8x8xf32>
      %155 = arith.subf %151, %154 : vector<8x8xf32>
      %156 = math.exp %155 : vector<8x8xf32>
      %cst_71 = arith.constant dense<0.000000e+00> : vector<8xf32>
      %157 = vector.multi_reduction <add>, %156, %cst_71 [1] : vector<8x8xf32> to vector<8xf32>
      %158 = vector.shape_cast %157 : vector<8xf32> to vector<8x1xf32>
      %159 = tpu.reciprocal %158 {approx = true} : vector<8x1xf32> -> vector<8x1xf32>
      %160 = vector.broadcast %159 : vector<8x1xf32> to vector<8x8xf32>
      %161 = arith.mulf %156, %160 : vector<8x8xf32>
      %162 = arith.truncf %161 : vector<8x8xf32> to vector<8x8xbf16>
      %163 = vector.extract_strided_slice %131 {offsets = [0, 0], sizes = [8, 16], strides = [1, 1]} : vector<8x64xbf16> to vector<8x16xbf16>
      %cst_72 = arith.constant dense<0.000000e+00> : vector<8x16xf32>
      %164 = tpu.matmul %162, %163, %cst_72 {dimension_numbers = #tpu.dot_dimension_numbers<[1], [0], [0], [1], [0, 0, 1, 1], [], []>} : vector<8x8xbf16>, vector<8x16xbf16>, vector<8x16xf32> -> vector<8x16xf32>
      %165 = vector.extract_strided_slice %142 {offsets = [0, 0], sizes = [8, 16], strides = [1, 1]} : vector<8x64xf32> to vector<8x16xf32>
      %166 = arith.mulf %165, %164 : vector<8x16xf32>
      %167 = arith.truncf %166 : vector<8x16xf32> to vector<8x16xbf16>
      %c0_73 = arith.constant 0 : index
      %c0_74 = arith.constant 0 : index
      %c0_75 = arith.constant 0 : index
      %168 = vector.load %arg12[%c0_73, %c0_74, %c0_75] : memref<2x320x64xbf16, #tpu.memory_space<vmem>>, vector<1x16x64xbf16>
      %169 = vector.shape_cast %168 : vector<1x16x64xbf16> to vector<16x64xbf16>
      %cst_76 = arith.constant dense<0.000000e+00> : vector<8x64xf32>
      %170 = tpu.matmul %167, %169, %cst_76 {dimension_numbers = #tpu.dot_dimension_numbers<[1], [0], [0], [1], [0, 0, 1, 1], [], []>} : vector<8x16xbf16>, vector<16x64xbf16>, vector<8x64xf32> -> vector<8x64xf32>
      %171 = arith.addf %143, %170 : vector<8x64xf32>
      %172 = vector.extract_strided_slice %126 {offsets = [0, 16], sizes = [8, 16], strides = [1, 1]} : vector<8x64xf32> to vector<8x16xf32>
      %173 = vector.extract_strided_slice %129 {offsets = [0, 16], sizes = [8, 16], strides = [1, 1]} : vector<8x64xf32> to vector<8x16xf32>
      %cst_77 = arith.constant dense<0.000000e+00> : vector<8x8xf32>
      %174 = tpu.matmul %172, %173, %cst_77 {dimension_numbers = #tpu.dot_dimension_numbers<[1], [1], [0], [0], [0, 0, 1, 0], [], []>} : vector<8x16xf32>, vector<8x16xf32>, vector<8x8xf32> -> vector<8x8xf32>
      %c1_78 = arith.constant 1 : index
      %c0_79 = arith.constant 0 : index
      %c0_80 = arith.constant 0 : index
      %c0_81 = arith.constant 0 : index
      %175 = vector.load %arg14[%c1_78, %c0_79, %c0_80, %c0_81] : memref<8x1x8x8xbf16, #tpu.memory_space<vmem>>, vector<1x1x8x8xbf16>
      %176 = vector.shape_cast %175 : vector<1x1x8x8xbf16> to vector<1x8x8xbf16>
      %177 = vector.shape_cast %176 : vector<1x8x8xbf16> to vector<8x8xbf16>
      %178 = arith.extf %177 : vector<8x8xbf16> to vector<8x8xf32>
      %179 = arith.addf %174, %178 : vector<8x8xf32>
      %cst_82 = arith.constant dense<0xFF800000> : vector<8xf32>
      %180 = vector.multi_reduction <maximumf>, %179, %cst_82 [1] : vector<8x8xf32> to vector<8xf32>
      %181 = vector.shape_cast %180 : vector<8xf32> to vector<8x1xf32>
      %182 = vector.broadcast %181 : vector<8x1xf32> to vector<8x8xf32>
      %183 = arith.subf %179, %182 : vector<8x8xf32>
      %184 = math.exp %183 : vector<8x8xf32>
      %cst_83 = arith.constant dense<0.000000e+00> : vector<8xf32>
      %185 = vector.multi_reduction <add>, %184, %cst_83 [1] : vector<8x8xf32> to vector<8xf32>
      %186 = vector.shape_cast %185 : vector<8xf32> to vector<8x1xf32>
      %187 = tpu.reciprocal %186 {approx = true} : vector<8x1xf32> -> vector<8x1xf32>
      %188 = vector.broadcast %187 : vector<8x1xf32> to vector<8x8xf32>
      %189 = arith.mulf %184, %188 : vector<8x8xf32>
      %190 = arith.truncf %189 : vector<8x8xf32> to vector<8x8xbf16>
      %191 = vector.extract_strided_slice %131 {offsets = [0, 16], sizes = [8, 16], strides = [1, 1]} : vector<8x64xbf16> to vector<8x16xbf16>
      %cst_84 = arith.constant dense<0.000000e+00> : vector<8x16xf32>
      %192 = tpu.matmul %190, %191, %cst_84 {dimension_numbers = #tpu.dot_dimension_numbers<[1], [0], [0], [1], [0, 0, 1, 1], [], []>} : vector<8x8xbf16>, vector<8x16xbf16>, vector<8x16xf32> -> vector<8x16xf32>
      %193 = vector.extract_strided_slice %142 {offsets = [0, 16], sizes = [8, 16], strides = [1, 1]} : vector<8x64xf32> to vector<8x16xf32>
      %194 = arith.mulf %193, %192 : vector<8x16xf32>
      %195 = arith.truncf %194 : vector<8x16xf32> to vector<8x16xbf16>
      %c0_85 = arith.constant 0 : index
      %c16 = arith.constant 16 : index
      %c0_86 = arith.constant 0 : index
      %196 = vector.load %arg12[%c0_85, %c16, %c0_86] : memref<2x320x64xbf16, #tpu.memory_space<vmem>>, vector<1x16x64xbf16>
      %197 = vector.shape_cast %196 : vector<1x16x64xbf16> to vector<16x64xbf16>
      %cst_87 = arith.constant dense<0.000000e+00> : vector<8x64xf32>
      %198 = tpu.matmul %195, %197, %cst_87 {dimension_numbers = #tpu.dot_dimension_numbers<[1], [0], [0], [1], [0, 0, 1, 1], [], []>} : vector<8x16xbf16>, vector<16x64xbf16>, vector<8x64xf32> -> vector<8x64xf32>
      %199 = arith.addf %171, %198 : vector<8x64xf32>
      %200 = vector.extract_strided_slice %126 {offsets = [0, 32], sizes = [8, 16], strides = [1, 1]} : vector<8x64xf32> to vector<8x16xf32>
      %201 = vector.extract_strided_slice %129 {offsets = [0, 32], sizes = [8, 16], strides = [1, 1]} : vector<8x64xf32> to vector<8x16xf32>
      %cst_88 = arith.constant dense<0.000000e+00> : vector<8x8xf32>
      %202 = tpu.matmul %200, %201, %cst_88 {dimension_numbers = #tpu.dot_dimension_numbers<[1], [1], [0], [0], [0, 0, 1, 0], [], []>} : vector<8x16xf32>, vector<8x16xf32>, vector<8x8xf32> -> vector<8x8xf32>
      %c2_89 = arith.constant 2 : index
      %c0_90 = arith.constant 0 : index
      %c0_91 = arith.constant 0 : index
      %c0_92 = arith.constant 0 : index
      %203 = vector.load %arg14[%c2_89, %c0_90, %c0_91, %c0_92] : memref<8x1x8x8xbf16, #tpu.memory_space<vmem>>, vector<1x1x8x8xbf16>
      %204 = vector.shape_cast %203 : vector<1x1x8x8xbf16> to vector<1x8x8xbf16>
      %205 = vector.shape_cast %204 : vector<1x8x8xbf16> to vector<8x8xbf16>
      %206 = arith.extf %205 : vector<8x8xbf16> to vector<8x8xf32>
      %207 = arith.addf %202, %206 : vector<8x8xf32>
      %cst_93 = arith.constant dense<0xFF800000> : vector<8xf32>
      %208 = vector.multi_reduction <maximumf>, %207, %cst_93 [1] : vector<8x8xf32> to vector<8xf32>
      %209 = vector.shape_cast %208 : vector<8xf32> to vector<8x1xf32>
      %210 = vector.broadcast %209 : vector<8x1xf32> to vector<8x8xf32>
      %211 = arith.subf %207, %210 : vector<8x8xf32>
      %212 = math.exp %211 : vector<8x8xf32>
      %cst_94 = arith.constant dense<0.000000e+00> : vector<8xf32>
      %213 = vector.multi_reduction <add>, %212, %cst_94 [1] : vector<8x8xf32> to vector<8xf32>
      %214 = vector.shape_cast %213 : vector<8xf32> to vector<8x1xf32>
      %215 = tpu.reciprocal %214 {approx = true} : vector<8x1xf32> -> vector<8x1xf32>
      %216 = vector.broadcast %215 : vector<8x1xf32> to vector<8x8xf32>
      %217 = arith.mulf %212, %216 : vector<8x8xf32>
      %218 = arith.truncf %217 : vector<8x8xf32> to vector<8x8xbf16>
      %219 = vector.extract_strided_slice %131 {offsets = [0, 32], sizes = [8, 16], strides = [1, 1]} : vector<8x64xbf16> to vector<8x16xbf16>
      %cst_95 = arith.constant dense<0.000000e+00> : vector<8x16xf32>
      %220 = tpu.matmul %218, %219, %cst_95 {dimension_numbers = #tpu.dot_dimension_numbers<[1], [0], [0], [1], [0, 0, 1, 1], [], []>} : vector<8x8xbf16>, vector<8x16xbf16>, vector<8x16xf32> -> vector<8x16xf32>
      %221 = vector.extract_strided_slice %142 {offsets = [0, 32], sizes = [8, 16], strides = [1, 1]} : vector<8x64xf32> to vector<8x16xf32>
      %222 = arith.mulf %221, %220 : vector<8x16xf32>
      %223 = arith.truncf %222 : vector<8x16xf32> to vector<8x16xbf16>
      %c0_96 = arith.constant 0 : index
      %c32 = arith.constant 32 : index
      %c0_97 = arith.constant 0 : index
      %224 = vector.load %arg12[%c0_96, %c32, %c0_97] : memref<2x320x64xbf16, #tpu.memory_space<vmem>>, vector<1x16x64xbf16>
      %225 = vector.shape_cast %224 : vector<1x16x64xbf16> to vector<16x64xbf16>
      %cst_98 = arith.constant dense<0.000000e+00> : vector<8x64xf32>
      %226 = tpu.matmul %223, %225, %cst_98 {dimension_numbers = #tpu.dot_dimension_numbers<[1], [0], [0], [1], [0, 0, 1, 1], [], []>} : vector<8x16xbf16>, vector<16x64xbf16>, vector<8x64xf32> -> vector<8x64xf32>
      %227 = arith.addf %199, %226 : vector<8x64xf32>
      %228 = vector.extract_strided_slice %126 {offsets = [0, 48], sizes = [8, 16], strides = [1, 1]} : vector<8x64xf32> to vector<8x16xf32>
      %229 = vector.extract_strided_slice %129 {offsets = [0, 48], sizes = [8, 16], strides = [1, 1]} : vector<8x64xf32> to vector<8x16xf32>
      %cst_99 = arith.constant dense<0.000000e+00> : vector<8x8xf32>
      %230 = tpu.matmul %228, %229, %cst_99 {dimension_numbers = #tpu.dot_dimension_numbers<[1], [1], [0], [0], [0, 0, 1, 0], [], []>} : vector<8x16xf32>, vector<8x16xf32>, vector<8x8xf32> -> vector<8x8xf32>
      %c3_100 = arith.constant 3 : index
      %c0_101 = arith.constant 0 : index
      %c0_102 = arith.constant 0 : index
      %c0_103 = arith.constant 0 : index
      %231 = vector.load %arg14[%c3_100, %c0_101, %c0_102, %c0_103] : memref<8x1x8x8xbf16, #tpu.memory_space<vmem>>, vector<1x1x8x8xbf16>
      %232 = vector.shape_cast %231 : vector<1x1x8x8xbf16> to vector<1x8x8xbf16>
      %233 = vector.shape_cast %232 : vector<1x8x8xbf16> to vector<8x8xbf16>
      %234 = arith.extf %233 : vector<8x8xbf16> to vector<8x8xf32>
      %235 = arith.addf %230, %234 : vector<8x8xf32>
      %cst_104 = arith.constant dense<0xFF800000> : vector<8xf32>
      %236 = vector.multi_reduction <maximumf>, %235, %cst_104 [1] : vector<8x8xf32> to vector<8xf32>
      %237 = vector.shape_cast %236 : vector<8xf32> to vector<8x1xf32>
      %238 = vector.broadcast %237 : vector<8x1xf32> to vector<8x8xf32>
      %239 = arith.subf %235, %238 : vector<8x8xf32>
      %240 = math.exp %239 : vector<8x8xf32>
      %cst_105 = arith.constant dense<0.000000e+00> : vector<8xf32>
      %241 = vector.multi_reduction <add>, %240, %cst_105 [1] : vector<8x8xf32> to vector<8xf32>
      %242 = vector.shape_cast %241 : vector<8xf32> to vector<8x1xf32>
      %243 = tpu.reciprocal %242 {approx = true} : vector<8x1xf32> -> vector<8x1xf32>
      %244 = vector.broadcast %243 : vector<8x1xf32> to vector<8x8xf32>
      %245 = arith.mulf %240, %244 : vector<8x8xf32>
      %246 = arith.truncf %245 : vector<8x8xf32> to vector<8x8xbf16>
      %247 = vector.extract_strided_slice %131 {offsets = [0, 48], sizes = [8, 16], strides = [1, 1]} : vector<8x64xbf16> to vector<8x16xbf16>
      %cst_106 = arith.constant dense<0.000000e+00> : vector<8x16xf32>
      %248 = tpu.matmul %246, %247, %cst_106 {dimension_numbers = #tpu.dot_dimension_numbers<[1], [0], [0], [1], [0, 0, 1, 1], [], []>} : vector<8x8xbf16>, vector<8x16xbf16>, vector<8x16xf32> -> vector<8x16xf32>
      %249 = vector.extract_strided_slice %142 {offsets = [0, 48], sizes = [8, 16], strides = [1, 1]} : vector<8x64xf32> to vector<8x16xf32>
      %250 = arith.mulf %249, %248 : vector<8x16xf32>
      %251 = arith.truncf %250 : vector<8x16xf32> to vector<8x16xbf16>
      %c0_107 = arith.constant 0 : index
      %c48 = arith.constant 48 : index
      %c0_108 = arith.constant 0 : index
      %252 = vector.load %arg12[%c0_107, %c48, %c0_108] : memref<2x320x64xbf16, #tpu.memory_space<vmem>>, vector<1x16x64xbf16>
      %253 = vector.shape_cast %252 : vector<1x16x64xbf16> to vector<16x64xbf16>
      %cst_109 = arith.constant dense<0.000000e+00> : vector<8x64xf32>
      %254 = tpu.matmul %251, %253, %cst_109 {dimension_numbers = #tpu.dot_dimension_numbers<[1], [0], [0], [1], [0, 0, 1, 1], [], []>} : vector<8x16xbf16>, vector<16x64xbf16>, vector<8x64xf32> -> vector<8x64xf32>
      %255 = arith.addf %227, %254 : vector<8x64xf32>
      %256 = arith.addf %93, %255 : vector<8x64xf32>
      %c0_110 = arith.constant 0 : index
      %c3_111 = arith.constant 3 : index
      %c0_112 = arith.constant 0 : index
      %257 = vector.load %arg9[%c0_110, %c3_111, %c0_112] : memref<2x7x64xf32, #tpu.memory_space<vmem>>, vector<1x1x64xf32>
      %258 = vector.shape_cast %257 : vector<1x1x64xf32> to vector<64xf32>
      %259 = vector.shape_cast %258 : vector<64xf32> to vector<1x64xf32>
      %260 = vector.broadcast %259 : vector<1x64xf32> to vector<8x64xf32>
      %261 = arith.addf %256, %260 : vector<8x64xf32>
      %c0_113 = arith.constant 0 : index
      %c4_114 = arith.constant 4 : index
      %c0_115 = arith.constant 0 : index
      %262 = vector.load %arg9[%c0_113, %c4_114, %c0_115] : memref<2x7x64xf32, #tpu.memory_space<vmem>>, vector<1x1x64xf32>
      %263 = vector.shape_cast %262 : vector<1x1x64xf32> to vector<64xf32>
      %c0_116 = arith.constant 0 : index
      %c5_117 = arith.constant 5 : index
      %c0_118 = arith.constant 0 : index
      %264 = vector.load %arg9[%c0_116, %c5_117, %c0_118] : memref<2x7x64xf32, #tpu.memory_space<vmem>>, vector<1x1x64xf32>
      %265 = vector.shape_cast %264 : vector<1x1x64xf32> to vector<64xf32>
      %cst_119 = arith.constant dense<0.000000e+00> : vector<8xf32>
      %266 = vector.multi_reduction <add>, %261, %cst_119 [1] : vector<8x64xf32> to vector<8xf32>
      %267 = vector.shape_cast %266 : vector<8xf32> to vector<8x1xf32>
      %cst_120 = arith.constant 6.400000e+01 : f32
      %268 = vector.broadcast %cst_120 : f32 to vector<8x1xf32>
      %269 = arith.divf %267, %268 : vector<8x1xf32>
      %270 = vector.broadcast %269 : vector<8x1xf32> to vector<8x64xf32>
      %271 = arith.subf %261, %270 : vector<8x64xf32>
      %272 = arith.mulf %271, %271 : vector<8x64xf32>
      %cst_121 = arith.constant dense<0.000000e+00> : vector<8xf32>
      %273 = vector.multi_reduction <add>, %272, %cst_121 [1] : vector<8x64xf32> to vector<8xf32>
      %274 = vector.shape_cast %273 : vector<8xf32> to vector<8x1xf32>
      %cst_122 = arith.constant 6.400000e+01 : f32
      %275 = vector.broadcast %cst_122 : f32 to vector<8x1xf32>
      %276 = arith.divf %274, %275 : vector<8x1xf32>
      %277 = vector.broadcast %269 : vector<8x1xf32> to vector<8x64xf32>
      %278 = arith.subf %261, %277 : vector<8x64xf32>
      %cst_123 = arith.constant 9.99999974E-6 : f32
      %279 = vector.broadcast %cst_123 : f32 to vector<8x1xf32>
      %280 = arith.addf %276, %279 : vector<8x1xf32>
      %281 = math.rsqrt %280 : vector<8x1xf32>
      %282 = vector.broadcast %281 : vector<8x1xf32> to vector<8x64xf32>
      %283 = arith.mulf %278, %282 : vector<8x64xf32>
      %284 = vector.shape_cast %263 : vector<64xf32> to vector<1x64xf32>
      %285 = vector.broadcast %284 : vector<1x64xf32> to vector<8x64xf32>
      %286 = arith.mulf %283, %285 : vector<8x64xf32>
      %287 = vector.shape_cast %265 : vector<64xf32> to vector<1x64xf32>
      %288 = vector.broadcast %287 : vector<1x64xf32> to vector<8x64xf32>
      %289 = arith.addf %286, %288 : vector<8x64xf32>
      %290 = arith.truncf %289 : vector<8x64xf32> to vector<8x64xbf16>
      %c0_124 = arith.constant 0 : index
      %c64_125 = arith.constant 64 : index
      %c0_126 = arith.constant 0 : index
      %291 = vector.load %arg11[%c0_124, %c64_125, %c0_126] : memref<2x128x256xbf16, #tpu.memory_space<vmem>>, vector<1x64x256xbf16>
      %292 = vector.shape_cast %291 : vector<1x64x256xbf16> to vector<64x256xbf16>
      %cst_127 = arith.constant dense<0.000000e+00> : vector<8x256xf32>
      %293 = tpu.matmul %290, %292, %cst_127 {dimension_numbers = #tpu.dot_dimension_numbers<[1], [0], [0], [1], [0, 0, 1, 1], [], []>} : vector<8x64xbf16>, vector<64x256xbf16>, vector<8x256xf32> -> vector<8x256xf32>
      %c0_128 = arith.constant 0 : index
      %c0_129 = arith.constant 0 : index
      %294 = vector.load %arg10[%c0_128, %c0_129] : memref<2x256xf32, #tpu.memory_space<vmem>>, vector<1x256xf32>
      %295 = vector.shape_cast %294 : vector<1x256xf32> to vector<256xf32>
      %296 = vector.shape_cast %295 : vector<256xf32> to vector<1x256xf32>
      %297 = vector.broadcast %296 : vector<1x256xf32> to vector<8x256xf32>
      %298 = arith.addf %293, %297 : vector<8x256xf32>
      %cst_130 = arith.constant 0.000000e+00 : f32
      %299 = vector.broadcast %cst_130 : f32 to vector<8x256xf32>
      %300 = arith.maximumf %298, %299 : vector<8x256xf32>
      %301 = arith.truncf %300 : vector<8x256xf32> to vector<8x256xbf16>
      %c0_131 = arith.constant 0 : index
      %c64_132 = arith.constant 64 : index
      %c0_133 = arith.constant 0 : index
      %302 = vector.load %arg12[%c0_131, %c64_132, %c0_133] : memref<2x320x64xbf16, #tpu.memory_space<vmem>>, vector<1x256x64xbf16>
      %303 = vector.shape_cast %302 : vector<1x256x64xbf16> to vector<256x64xbf16>
      %cst_134 = arith.constant dense<0.000000e+00> : vector<8x64xf32>
      %304 = tpu.matmul %301, %303, %cst_134 {dimension_numbers = #tpu.dot_dimension_numbers<[1], [0], [0], [1], [0, 0, 1, 1], [], []>} : vector<8x256xbf16>, vector<256x64xbf16>, vector<8x64xf32> -> vector<8x64xf32>
      %c0_135 = arith.constant 0 : index
      %c6_136 = arith.constant 6 : index
      %c0_137 = arith.constant 0 : index
      %305 = vector.load %arg9[%c0_135, %c6_136, %c0_137] : memref<2x7x64xf32, #tpu.memory_space<vmem>>, vector<1x1x64xf32>
      %306 = vector.shape_cast %305 : vector<1x1x64xf32> to vector<64xf32>
      %307 = vector.shape_cast %306 : vector<64xf32> to vector<1x64xf32>
      %308 = vector.broadcast %307 : vector<1x64xf32> to vector<8x64xf32>
      %309 = arith.addf %304, %308 : vector<8x64xf32>
      %310 = arith.addf %261, %309 : vector<8x64xf32>
      %c1_138 = arith.constant 1 : index
      %c0_139 = arith.constant 0 : index
      %c0_140 = arith.constant 0 : index
      %311 = vector.load %arg9[%c1_138, %c0_139, %c0_140] : memref<2x7x64xf32, #tpu.memory_space<vmem>>, vector<1x1x64xf32>
      %312 = vector.shape_cast %311 : vector<1x1x64xf32> to vector<64xf32>
      %c1_141 = arith.constant 1 : index
      %c1_142 = arith.constant 1 : index
      %c0_143 = arith.constant 0 : index
      %313 = vector.load %arg9[%c1_141, %c1_142, %c0_143] : memref<2x7x64xf32, #tpu.memory_space<vmem>>, vector<1x1x64xf32>
      %314 = vector.shape_cast %313 : vector<1x1x64xf32> to vector<64xf32>
      %cst_144 = arith.constant dense<0.000000e+00> : vector<8xf32>
      %315 = vector.multi_reduction <add>, %310, %cst_144 [1] : vector<8x64xf32> to vector<8xf32>
      %316 = vector.shape_cast %315 : vector<8xf32> to vector<8x1xf32>
      %cst_145 = arith.constant 6.400000e+01 : f32
      %317 = vector.broadcast %cst_145 : f32 to vector<8x1xf32>
      %318 = arith.divf %316, %317 : vector<8x1xf32>
      %319 = vector.broadcast %318 : vector<8x1xf32> to vector<8x64xf32>
      %320 = arith.subf %310, %319 : vector<8x64xf32>
      %321 = arith.mulf %320, %320 : vector<8x64xf32>
      %cst_146 = arith.constant dense<0.000000e+00> : vector<8xf32>
      %322 = vector.multi_reduction <add>, %321, %cst_146 [1] : vector<8x64xf32> to vector<8xf32>
      %323 = vector.shape_cast %322 : vector<8xf32> to vector<8x1xf32>
      %cst_147 = arith.constant 6.400000e+01 : f32
      %324 = vector.broadcast %cst_147 : f32 to vector<8x1xf32>
      %325 = arith.divf %323, %324 : vector<8x1xf32>
      %326 = vector.broadcast %318 : vector<8x1xf32> to vector<8x64xf32>
      %327 = arith.subf %310, %326 : vector<8x64xf32>
      %cst_148 = arith.constant 9.99999974E-6 : f32
      %328 = vector.broadcast %cst_148 : f32 to vector<8x1xf32>
      %329 = arith.addf %325, %328 : vector<8x1xf32>
      %330 = math.rsqrt %329 : vector<8x1xf32>
      %331 = vector.broadcast %330 : vector<8x1xf32> to vector<8x64xf32>
      %332 = arith.mulf %327, %331 : vector<8x64xf32>
      %333 = vector.shape_cast %312 : vector<64xf32> to vector<1x64xf32>
      %334 = vector.broadcast %333 : vector<1x64xf32> to vector<8x64xf32>
      %335 = arith.mulf %332, %334 : vector<8x64xf32>
      %336 = vector.shape_cast %314 : vector<64xf32> to vector<1x64xf32>
      %337 = vector.broadcast %336 : vector<1x64xf32> to vector<8x64xf32>
      %338 = arith.addf %335, %337 : vector<8x64xf32>
      %339 = arith.truncf %338 : vector<8x64xf32> to vector<8x64xbf16>
      %c1_149 = arith.constant 1 : index
      %c0_150 = arith.constant 0 : index
      %c0_151 = arith.constant 0 : index
      %340 = vector.load %arg11[%c1_149, %c0_150, %c0_151] : memref<2x128x256xbf16, #tpu.memory_space<vmem>>, vector<1x64x256xbf16>
      %341 = vector.shape_cast %340 : vector<1x64x256xbf16> to vector<64x256xbf16>
      %cst_152 = arith.constant dense<0.000000e+00> : vector<8x256xf32>
      %342 = tpu.matmul %339, %341, %cst_152 {dimension_numbers = #tpu.dot_dimension_numbers<[1], [0], [0], [1], [0, 0, 1, 1], [], []>} : vector<8x64xbf16>, vector<64x256xbf16>, vector<8x256xf32> -> vector<8x256xf32>
      %343 = vector.extract_strided_slice %342 {offsets = [0, 0], sizes = [8, 64], strides = [1, 1]} : vector<8x256xf32> to vector<8x64xf32>
      %344 = vector.extract_strided_slice %342 {offsets = [0, 64], sizes = [8, 64], strides = [1, 1]} : vector<8x256xf32> to vector<8x64xf32>
      %cst_153 = arith.constant 2.500000e-01 : f32
      %345 = vector.broadcast %cst_153 : f32 to vector<8x64xf32>
      %346 = arith.mulf %344, %345 : vector<8x64xf32>
      %347 = vector.extract_strided_slice %342 {offsets = [0, 128], sizes = [8, 64], strides = [1, 1]} : vector<8x256xf32> to vector<8x64xf32>
      %348 = arith.truncf %347 : vector<8x64xf32> to vector<8x64xbf16>
      %349 = vector.extract_strided_slice %342 {offsets = [0, 192], sizes = [8, 64], strides = [1, 1]} : vector<8x256xf32> to vector<8x64xf32>
      %c1_154 = arith.constant 1 : index
      %c2_155 = arith.constant 2 : index
      %c0_156 = arith.constant 0 : index
      %350 = vector.load %arg9[%c1_154, %c2_155, %c0_156] : memref<2x7x64xf32, #tpu.memory_space<vmem>>, vector<1x1x64xf32>
      %351 = vector.shape_cast %350 : vector<1x1x64xf32> to vector<64xf32>
      %352 = vector.shape_cast %351 : vector<64xf32> to vector<1x64xf32>
      %353 = vector.broadcast %352 : vector<1x64xf32> to vector<8x64xf32>
      %354 = arith.addf %349, %353 : vector<8x64xf32>
      %355 = arith.negf %354 : vector<8x64xf32>
      %356 = math.exp %355 : vector<8x64xf32>
      %cst_157 = arith.constant 1.000000e+00 : f32
      %357 = vector.broadcast %cst_157 : f32 to vector<8x64xf32>
      %358 = arith.addf %357, %356 : vector<8x64xf32>
      %359 = arith.divf %357, %358 : vector<8x64xf32>
      %cst_158 = arith.constant 0.000000e+00 : f32
      %360 = vector.broadcast %cst_158 : f32 to vector<8x64xf32>
      %361 = vector.extract_strided_slice %343 {offsets = [0, 0], sizes = [8, 16], strides = [1, 1]} : vector<8x64xf32> to vector<8x16xf32>
      %362 = vector.extract_strided_slice %346 {offsets = [0, 0], sizes = [8, 16], strides = [1, 1]} : vector<8x64xf32> to vector<8x16xf32>
      %cst_159 = arith.constant dense<0.000000e+00> : vector<8x8xf32>
      %363 = tpu.matmul %361, %362, %cst_159 {dimension_numbers = #tpu.dot_dimension_numbers<[1], [1], [0], [0], [0, 0, 1, 0], [], []>} : vector<8x16xf32>, vector<8x16xf32>, vector<8x8xf32> -> vector<8x8xf32>
      %c4_160 = arith.constant 4 : index
      %c0_161 = arith.constant 0 : index
      %c0_162 = arith.constant 0 : index
      %c0_163 = arith.constant 0 : index
      %364 = vector.load %arg14[%c4_160, %c0_161, %c0_162, %c0_163] : memref<8x1x8x8xbf16, #tpu.memory_space<vmem>>, vector<1x1x8x8xbf16>
      %365 = vector.shape_cast %364 : vector<1x1x8x8xbf16> to vector<1x8x8xbf16>
      %366 = vector.shape_cast %365 : vector<1x8x8xbf16> to vector<8x8xbf16>
      %367 = arith.extf %366 : vector<8x8xbf16> to vector<8x8xf32>
      %368 = arith.addf %363, %367 : vector<8x8xf32>
      %cst_164 = arith.constant dense<0xFF800000> : vector<8xf32>
      %369 = vector.multi_reduction <maximumf>, %368, %cst_164 [1] : vector<8x8xf32> to vector<8xf32>
      %370 = vector.shape_cast %369 : vector<8xf32> to vector<8x1xf32>
      %371 = vector.broadcast %370 : vector<8x1xf32> to vector<8x8xf32>
      %372 = arith.subf %368, %371 : vector<8x8xf32>
      %373 = math.exp %372 : vector<8x8xf32>
      %cst_165 = arith.constant dense<0.000000e+00> : vector<8xf32>
      %374 = vector.multi_reduction <add>, %373, %cst_165 [1] : vector<8x8xf32> to vector<8xf32>
      %375 = vector.shape_cast %374 : vector<8xf32> to vector<8x1xf32>
      %376 = tpu.reciprocal %375 {approx = true} : vector<8x1xf32> -> vector<8x1xf32>
      %377 = vector.broadcast %376 : vector<8x1xf32> to vector<8x8xf32>
      %378 = arith.mulf %373, %377 : vector<8x8xf32>
      %379 = arith.truncf %378 : vector<8x8xf32> to vector<8x8xbf16>
      %380 = vector.extract_strided_slice %348 {offsets = [0, 0], sizes = [8, 16], strides = [1, 1]} : vector<8x64xbf16> to vector<8x16xbf16>
      %cst_166 = arith.constant dense<0.000000e+00> : vector<8x16xf32>
      %381 = tpu.matmul %379, %380, %cst_166 {dimension_numbers = #tpu.dot_dimension_numbers<[1], [0], [0], [1], [0, 0, 1, 1], [], []>} : vector<8x8xbf16>, vector<8x16xbf16>, vector<8x16xf32> -> vector<8x16xf32>
      %382 = vector.extract_strided_slice %359 {offsets = [0, 0], sizes = [8, 16], strides = [1, 1]} : vector<8x64xf32> to vector<8x16xf32>
      %383 = arith.mulf %382, %381 : vector<8x16xf32>
      %384 = arith.truncf %383 : vector<8x16xf32> to vector<8x16xbf16>
      %c1_167 = arith.constant 1 : index
      %c0_168 = arith.constant 0 : index
      %c0_169 = arith.constant 0 : index
      %385 = vector.load %arg12[%c1_167, %c0_168, %c0_169] : memref<2x320x64xbf16, #tpu.memory_space<vmem>>, vector<1x16x64xbf16>
      %386 = vector.shape_cast %385 : vector<1x16x64xbf16> to vector<16x64xbf16>
      %cst_170 = arith.constant dense<0.000000e+00> : vector<8x64xf32>
      %387 = tpu.matmul %384, %386, %cst_170 {dimension_numbers = #tpu.dot_dimension_numbers<[1], [0], [0], [1], [0, 0, 1, 1], [], []>} : vector<8x16xbf16>, vector<16x64xbf16>, vector<8x64xf32> -> vector<8x64xf32>
      %388 = arith.addf %360, %387 : vector<8x64xf32>
      %389 = vector.extract_strided_slice %343 {offsets = [0, 16], sizes = [8, 16], strides = [1, 1]} : vector<8x64xf32> to vector<8x16xf32>
      %390 = vector.extract_strided_slice %346 {offsets = [0, 16], sizes = [8, 16], strides = [1, 1]} : vector<8x64xf32> to vector<8x16xf32>
      %cst_171 = arith.constant dense<0.000000e+00> : vector<8x8xf32>
      %391 = tpu.matmul %389, %390, %cst_171 {dimension_numbers = #tpu.dot_dimension_numbers<[1], [1], [0], [0], [0, 0, 1, 0], [], []>} : vector<8x16xf32>, vector<8x16xf32>, vector<8x8xf32> -> vector<8x8xf32>
      %c5_172 = arith.constant 5 : index
      %c0_173 = arith.constant 0 : index
      %c0_174 = arith.constant 0 : index
      %c0_175 = arith.constant 0 : index
      %392 = vector.load %arg14[%c5_172, %c0_173, %c0_174, %c0_175] : memref<8x1x8x8xbf16, #tpu.memory_space<vmem>>, vector<1x1x8x8xbf16>
      %393 = vector.shape_cast %392 : vector<1x1x8x8xbf16> to vector<1x8x8xbf16>
      %394 = vector.shape_cast %393 : vector<1x8x8xbf16> to vector<8x8xbf16>
      %395 = arith.extf %394 : vector<8x8xbf16> to vector<8x8xf32>
      %396 = arith.addf %391, %395 : vector<8x8xf32>
      %cst_176 = arith.constant dense<0xFF800000> : vector<8xf32>
      %397 = vector.multi_reduction <maximumf>, %396, %cst_176 [1] : vector<8x8xf32> to vector<8xf32>
      %398 = vector.shape_cast %397 : vector<8xf32> to vector<8x1xf32>
      %399 = vector.broadcast %398 : vector<8x1xf32> to vector<8x8xf32>
      %400 = arith.subf %396, %399 : vector<8x8xf32>
      %401 = math.exp %400 : vector<8x8xf32>
      %cst_177 = arith.constant dense<0.000000e+00> : vector<8xf32>
      %402 = vector.multi_reduction <add>, %401, %cst_177 [1] : vector<8x8xf32> to vector<8xf32>
      %403 = vector.shape_cast %402 : vector<8xf32> to vector<8x1xf32>
      %404 = tpu.reciprocal %403 {approx = true} : vector<8x1xf32> -> vector<8x1xf32>
      %405 = vector.broadcast %404 : vector<8x1xf32> to vector<8x8xf32>
      %406 = arith.mulf %401, %405 : vector<8x8xf32>
      %407 = arith.truncf %406 : vector<8x8xf32> to vector<8x8xbf16>
      %408 = vector.extract_strided_slice %348 {offsets = [0, 16], sizes = [8, 16], strides = [1, 1]} : vector<8x64xbf16> to vector<8x16xbf16>
      %cst_178 = arith.constant dense<0.000000e+00> : vector<8x16xf32>
      %409 = tpu.matmul %407, %408, %cst_178 {dimension_numbers = #tpu.dot_dimension_numbers<[1], [0], [0], [1], [0, 0, 1, 1], [], []>} : vector<8x8xbf16>, vector<8x16xbf16>, vector<8x16xf32> -> vector<8x16xf32>
      %410 = vector.extract_strided_slice %359 {offsets = [0, 16], sizes = [8, 16], strides = [1, 1]} : vector<8x64xf32> to vector<8x16xf32>
      %411 = arith.mulf %410, %409 : vector<8x16xf32>
      %412 = arith.truncf %411 : vector<8x16xf32> to vector<8x16xbf16>
      %c1_179 = arith.constant 1 : index
      %c16_180 = arith.constant 16 : index
      %c0_181 = arith.constant 0 : index
      %413 = vector.load %arg12[%c1_179, %c16_180, %c0_181] : memref<2x320x64xbf16, #tpu.memory_space<vmem>>, vector<1x16x64xbf16>
      %414 = vector.shape_cast %413 : vector<1x16x64xbf16> to vector<16x64xbf16>
      %cst_182 = arith.constant dense<0.000000e+00> : vector<8x64xf32>
      %415 = tpu.matmul %412, %414, %cst_182 {dimension_numbers = #tpu.dot_dimension_numbers<[1], [0], [0], [1], [0, 0, 1, 1], [], []>} : vector<8x16xbf16>, vector<16x64xbf16>, vector<8x64xf32> -> vector<8x64xf32>
      %416 = arith.addf %388, %415 : vector<8x64xf32>
      %417 = vector.extract_strided_slice %343 {offsets = [0, 32], sizes = [8, 16], strides = [1, 1]} : vector<8x64xf32> to vector<8x16xf32>
      %418 = vector.extract_strided_slice %346 {offsets = [0, 32], sizes = [8, 16], strides = [1, 1]} : vector<8x64xf32> to vector<8x16xf32>
      %cst_183 = arith.constant dense<0.000000e+00> : vector<8x8xf32>
      %419 = tpu.matmul %417, %418, %cst_183 {dimension_numbers = #tpu.dot_dimension_numbers<[1], [1], [0], [0], [0, 0, 1, 0], [], []>} : vector<8x16xf32>, vector<8x16xf32>, vector<8x8xf32> -> vector<8x8xf32>
      %c6_184 = arith.constant 6 : index
      %c0_185 = arith.constant 0 : index
      %c0_186 = arith.constant 0 : index
      %c0_187 = arith.constant 0 : index
      %420 = vector.load %arg14[%c6_184, %c0_185, %c0_186, %c0_187] : memref<8x1x8x8xbf16, #tpu.memory_space<vmem>>, vector<1x1x8x8xbf16>
      %421 = vector.shape_cast %420 : vector<1x1x8x8xbf16> to vector<1x8x8xbf16>
      %422 = vector.shape_cast %421 : vector<1x8x8xbf16> to vector<8x8xbf16>
      %423 = arith.extf %422 : vector<8x8xbf16> to vector<8x8xf32>
      %424 = arith.addf %419, %423 : vector<8x8xf32>
      %cst_188 = arith.constant dense<0xFF800000> : vector<8xf32>
      %425 = vector.multi_reduction <maximumf>, %424, %cst_188 [1] : vector<8x8xf32> to vector<8xf32>
      %426 = vector.shape_cast %425 : vector<8xf32> to vector<8x1xf32>
      %427 = vector.broadcast %426 : vector<8x1xf32> to vector<8x8xf32>
      %428 = arith.subf %424, %427 : vector<8x8xf32>
      %429 = math.exp %428 : vector<8x8xf32>
      %cst_189 = arith.constant dense<0.000000e+00> : vector<8xf32>
      %430 = vector.multi_reduction <add>, %429, %cst_189 [1] : vector<8x8xf32> to vector<8xf32>
      %431 = vector.shape_cast %430 : vector<8xf32> to vector<8x1xf32>
      %432 = tpu.reciprocal %431 {approx = true} : vector<8x1xf32> -> vector<8x1xf32>
      %433 = vector.broadcast %432 : vector<8x1xf32> to vector<8x8xf32>
      %434 = arith.mulf %429, %433 : vector<8x8xf32>
      %435 = arith.truncf %434 : vector<8x8xf32> to vector<8x8xbf16>
      %436 = vector.extract_strided_slice %348 {offsets = [0, 32], sizes = [8, 16], strides = [1, 1]} : vector<8x64xbf16> to vector<8x16xbf16>
      %cst_190 = arith.constant dense<0.000000e+00> : vector<8x16xf32>
      %437 = tpu.matmul %435, %436, %cst_190 {dimension_numbers = #tpu.dot_dimension_numbers<[1], [0], [0], [1], [0, 0, 1, 1], [], []>} : vector<8x8xbf16>, vector<8x16xbf16>, vector<8x16xf32> -> vector<8x16xf32>
      %438 = vector.extract_strided_slice %359 {offsets = [0, 32], sizes = [8, 16], strides = [1, 1]} : vector<8x64xf32> to vector<8x16xf32>
      %439 = arith.mulf %438, %437 : vector<8x16xf32>
      %440 = arith.truncf %439 : vector<8x16xf32> to vector<8x16xbf16>
      %c1_191 = arith.constant 1 : index
      %c32_192 = arith.constant 32 : index
      %c0_193 = arith.constant 0 : index
      %441 = vector.load %arg12[%c1_191, %c32_192, %c0_193] : memref<2x320x64xbf16, #tpu.memory_space<vmem>>, vector<1x16x64xbf16>
      %442 = vector.shape_cast %441 : vector<1x16x64xbf16> to vector<16x64xbf16>
      %cst_194 = arith.constant dense<0.000000e+00> : vector<8x64xf32>
      %443 = tpu.matmul %440, %442, %cst_194 {dimension_numbers = #tpu.dot_dimension_numbers<[1], [0], [0], [1], [0, 0, 1, 1], [], []>} : vector<8x16xbf16>, vector<16x64xbf16>, vector<8x64xf32> -> vector<8x64xf32>
      %444 = arith.addf %416, %443 : vector<8x64xf32>
      %445 = vector.extract_strided_slice %343 {offsets = [0, 48], sizes = [8, 16], strides = [1, 1]} : vector<8x64xf32> to vector<8x16xf32>
      %446 = vector.extract_strided_slice %346 {offsets = [0, 48], sizes = [8, 16], strides = [1, 1]} : vector<8x64xf32> to vector<8x16xf32>
      %cst_195 = arith.constant dense<0.000000e+00> : vector<8x8xf32>
      %447 = tpu.matmul %445, %446, %cst_195 {dimension_numbers = #tpu.dot_dimension_numbers<[1], [1], [0], [0], [0, 0, 1, 0], [], []>} : vector<8x16xf32>, vector<8x16xf32>, vector<8x8xf32> -> vector<8x8xf32>
      %c7_196 = arith.constant 7 : index
      %c0_197 = arith.constant 0 : index
      %c0_198 = arith.constant 0 : index
      %c0_199 = arith.constant 0 : index
      %448 = vector.load %arg14[%c7_196, %c0_197, %c0_198, %c0_199] : memref<8x1x8x8xbf16, #tpu.memory_space<vmem>>, vector<1x1x8x8xbf16>
      %449 = vector.shape_cast %448 : vector<1x1x8x8xbf16> to vector<1x8x8xbf16>
      %450 = vector.shape_cast %449 : vector<1x8x8xbf16> to vector<8x8xbf16>
      %451 = arith.extf %450 : vector<8x8xbf16> to vector<8x8xf32>
      %452 = arith.addf %447, %451 : vector<8x8xf32>
      %cst_200 = arith.constant dense<0xFF800000> : vector<8xf32>
      %453 = vector.multi_reduction <maximumf>, %452, %cst_200 [1] : vector<8x8xf32> to vector<8xf32>
      %454 = vector.shape_cast %453 : vector<8xf32> to vector<8x1xf32>
      %455 = vector.broadcast %454 : vector<8x1xf32> to vector<8x8xf32>
      %456 = arith.subf %452, %455 : vector<8x8xf32>
      %457 = math.exp %456 : vector<8x8xf32>
      %cst_201 = arith.constant dense<0.000000e+00> : vector<8xf32>
      %458 = vector.multi_reduction <add>, %457, %cst_201 [1] : vector<8x8xf32> to vector<8xf32>
      %459 = vector.shape_cast %458 : vector<8xf32> to vector<8x1xf32>
      %460 = tpu.reciprocal %459 {approx = true} : vector<8x1xf32> -> vector<8x1xf32>
      %461 = vector.broadcast %460 : vector<8x1xf32> to vector<8x8xf32>
      %462 = arith.mulf %457, %461 : vector<8x8xf32>
      %463 = arith.truncf %462 : vector<8x8xf32> to vector<8x8xbf16>
      %464 = vector.extract_strided_slice %348 {offsets = [0, 48], sizes = [8, 16], strides = [1, 1]} : vector<8x64xbf16> to vector<8x16xbf16>
      %cst_202 = arith.constant dense<0.000000e+00> : vector<8x16xf32>
      %465 = tpu.matmul %463, %464, %cst_202 {dimension_numbers = #tpu.dot_dimension_numbers<[1], [0], [0], [1], [0, 0, 1, 1], [], []>} : vector<8x8xbf16>, vector<8x16xbf16>, vector<8x16xf32> -> vector<8x16xf32>
      %466 = vector.extract_strided_slice %359 {offsets = [0, 48], sizes = [8, 16], strides = [1, 1]} : vector<8x64xf32> to vector<8x16xf32>
      %467 = arith.mulf %466, %465 : vector<8x16xf32>
      %468 = arith.truncf %467 : vector<8x16xf32> to vector<8x16xbf16>
      %c1_203 = arith.constant 1 : index
      %c48_204 = arith.constant 48 : index
      %c0_205 = arith.constant 0 : index
      %469 = vector.load %arg12[%c1_203, %c48_204, %c0_205] : memref<2x320x64xbf16, #tpu.memory_space<vmem>>, vector<1x16x64xbf16>
      %470 = vector.shape_cast %469 : vector<1x16x64xbf16> to vector<16x64xbf16>
      %cst_206 = arith.constant dense<0.000000e+00> : vector<8x64xf32>
      %471 = tpu.matmul %468, %470, %cst_206 {dimension_numbers = #tpu.dot_dimension_numbers<[1], [0], [0], [1], [0, 0, 1, 1], [], []>} : vector<8x16xbf16>, vector<16x64xbf16>, vector<8x64xf32> -> vector<8x64xf32>
      %472 = arith.addf %444, %471 : vector<8x64xf32>
      %473 = arith.addf %310, %472 : vector<8x64xf32>
      %c1_207 = arith.constant 1 : index
      %c3_208 = arith.constant 3 : index
      %c0_209 = arith.constant 0 : index
      %474 = vector.load %arg9[%c1_207, %c3_208, %c0_209] : memref<2x7x64xf32, #tpu.memory_space<vmem>>, vector<1x1x64xf32>
      %475 = vector.shape_cast %474 : vector<1x1x64xf32> to vector<64xf32>
      %476 = vector.shape_cast %475 : vector<64xf32> to vector<1x64xf32>
      %477 = vector.broadcast %476 : vector<1x64xf32> to vector<8x64xf32>
      %478 = arith.addf %473, %477 : vector<8x64xf32>
      %c1_210 = arith.constant 1 : index
      %c4_211 = arith.constant 4 : index
      %c0_212 = arith.constant 0 : index
      %479 = vector.load %arg9[%c1_210, %c4_211, %c0_212] : memref<2x7x64xf32, #tpu.memory_space<vmem>>, vector<1x1x64xf32>
      %480 = vector.shape_cast %479 : vector<1x1x64xf32> to vector<64xf32>
      %c1_213 = arith.constant 1 : index
      %c5_214 = arith.constant 5 : index
      %c0_215 = arith.constant 0 : index
      %481 = vector.load %arg9[%c1_213, %c5_214, %c0_215] : memref<2x7x64xf32, #tpu.memory_space<vmem>>, vector<1x1x64xf32>
      %482 = vector.shape_cast %481 : vector<1x1x64xf32> to vector<64xf32>
      %cst_216 = arith.constant dense<0.000000e+00> : vector<8xf32>
      %483 = vector.multi_reduction <add>, %478, %cst_216 [1] : vector<8x64xf32> to vector<8xf32>
      %484 = vector.shape_cast %483 : vector<8xf32> to vector<8x1xf32>
      %cst_217 = arith.constant 6.400000e+01 : f32
      %485 = vector.broadcast %cst_217 : f32 to vector<8x1xf32>
      %486 = arith.divf %484, %485 : vector<8x1xf32>
      %487 = vector.broadcast %486 : vector<8x1xf32> to vector<8x64xf32>
      %488 = arith.subf %478, %487 : vector<8x64xf32>
      %489 = arith.mulf %488, %488 : vector<8x64xf32>
      %cst_218 = arith.constant dense<0.000000e+00> : vector<8xf32>
      %490 = vector.multi_reduction <add>, %489, %cst_218 [1] : vector<8x64xf32> to vector<8xf32>
      %491 = vector.shape_cast %490 : vector<8xf32> to vector<8x1xf32>
      %cst_219 = arith.constant 6.400000e+01 : f32
      %492 = vector.broadcast %cst_219 : f32 to vector<8x1xf32>
      %493 = arith.divf %491, %492 : vector<8x1xf32>
      %494 = vector.broadcast %486 : vector<8x1xf32> to vector<8x64xf32>
      %495 = arith.subf %478, %494 : vector<8x64xf32>
      %cst_220 = arith.constant 9.99999974E-6 : f32
      %496 = vector.broadcast %cst_220 : f32 to vector<8x1xf32>
      %497 = arith.addf %493, %496 : vector<8x1xf32>
      %498 = math.rsqrt %497 : vector<8x1xf32>
      %499 = vector.broadcast %498 : vector<8x1xf32> to vector<8x64xf32>
      %500 = arith.mulf %495, %499 : vector<8x64xf32>
      %501 = vector.shape_cast %480 : vector<64xf32> to vector<1x64xf32>
      %502 = vector.broadcast %501 : vector<1x64xf32> to vector<8x64xf32>
      %503 = arith.mulf %500, %502 : vector<8x64xf32>
      %504 = vector.shape_cast %482 : vector<64xf32> to vector<1x64xf32>
      %505 = vector.broadcast %504 : vector<1x64xf32> to vector<8x64xf32>
      %506 = arith.addf %503, %505 : vector<8x64xf32>
      %507 = arith.truncf %506 : vector<8x64xf32> to vector<8x64xbf16>
      %c1_221 = arith.constant 1 : index
      %c64_222 = arith.constant 64 : index
      %c0_223 = arith.constant 0 : index
      %508 = vector.load %arg11[%c1_221, %c64_222, %c0_223] : memref<2x128x256xbf16, #tpu.memory_space<vmem>>, vector<1x64x256xbf16>
      %509 = vector.shape_cast %508 : vector<1x64x256xbf16> to vector<64x256xbf16>
      %cst_224 = arith.constant dense<0.000000e+00> : vector<8x256xf32>
      %510 = tpu.matmul %507, %509, %cst_224 {dimension_numbers = #tpu.dot_dimension_numbers<[1], [0], [0], [1], [0, 0, 1, 1], [], []>} : vector<8x64xbf16>, vector<64x256xbf16>, vector<8x256xf32> -> vector<8x256xf32>
      %c1_225 = arith.constant 1 : index
      %c0_226 = arith.constant 0 : index
      %511 = vector.load %arg10[%c1_225, %c0_226] : memref<2x256xf32, #tpu.memory_space<vmem>>, vector<1x256xf32>
      %512 = vector.shape_cast %511 : vector<1x256xf32> to vector<256xf32>
      %513 = vector.shape_cast %512 : vector<256xf32> to vector<1x256xf32>
      %514 = vector.broadcast %513 : vector<1x256xf32> to vector<8x256xf32>
      %515 = arith.addf %510, %514 : vector<8x256xf32>
      %cst_227 = arith.constant 0.000000e+00 : f32
      %516 = vector.broadcast %cst_227 : f32 to vector<8x256xf32>
      %517 = arith.maximumf %515, %516 : vector<8x256xf32>
      %518 = arith.truncf %517 : vector<8x256xf32> to vector<8x256xbf16>
      %c1_228 = arith.constant 1 : index
      %c64_229 = arith.constant 64 : index
      %c0_230 = arith.constant 0 : index
      %519 = vector.load %arg12[%c1_228, %c64_229, %c0_230] : memref<2x320x64xbf16, #tpu.memory_space<vmem>>, vector<1x256x64xbf16>
      %520 = vector.shape_cast %519 : vector<1x256x64xbf16> to vector<256x64xbf16>
      %cst_231 = arith.constant dense<0.000000e+00> : vector<8x64xf32>
      %521 = tpu.matmul %518, %520, %cst_231 {dimension_numbers = #tpu.dot_dimension_numbers<[1], [0], [0], [1], [0, 0, 1, 1], [], []>} : vector<8x256xbf16>, vector<256x64xbf16>, vector<8x64xf32> -> vector<8x64xf32>
      %c1_232 = arith.constant 1 : index
      %c6_233 = arith.constant 6 : index
      %c0_234 = arith.constant 0 : index
      %522 = vector.load %arg9[%c1_232, %c6_233, %c0_234] : memref<2x7x64xf32, #tpu.memory_space<vmem>>, vector<1x1x64xf32>
      %523 = vector.shape_cast %522 : vector<1x1x64xf32> to vector<64xf32>
      %524 = vector.shape_cast %523 : vector<64xf32> to vector<1x64xf32>
      %525 = vector.broadcast %524 : vector<1x64xf32> to vector<8x64xf32>
      %526 = arith.addf %521, %525 : vector<8x64xf32>
      %527 = arith.addf %478, %526 : vector<8x64xf32>
      %c1_235 = arith.constant 1 : index
      %c0_236 = arith.constant 0 : index
      %528 = vector.load %arg8[%c1_235, %c0_236] : memref<3x64xf32, #tpu.memory_space<vmem>>, vector<1x64xf32>
      %529 = vector.shape_cast %528 : vector<1x64xf32> to vector<64xf32>
      %c2_237 = arith.constant 2 : index
      %c0_238 = arith.constant 0 : index
      %530 = vector.load %arg8[%c2_237, %c0_238] : memref<3x64xf32, #tpu.memory_space<vmem>>, vector<1x64xf32>
      %531 = vector.shape_cast %530 : vector<1x64xf32> to vector<64xf32>
      %cst_239 = arith.constant dense<0.000000e+00> : vector<8xf32>
      %532 = vector.multi_reduction <add>, %527, %cst_239 [1] : vector<8x64xf32> to vector<8xf32>
      %533 = vector.shape_cast %532 : vector<8xf32> to vector<8x1xf32>
      %cst_240 = arith.constant 6.400000e+01 : f32
      %534 = vector.broadcast %cst_240 : f32 to vector<8x1xf32>
      %535 = arith.divf %533, %534 : vector<8x1xf32>
      %536 = vector.broadcast %535 : vector<8x1xf32> to vector<8x64xf32>
      %537 = arith.subf %527, %536 : vector<8x64xf32>
      %538 = arith.mulf %537, %537 : vector<8x64xf32>
      %cst_241 = arith.constant dense<0.000000e+00> : vector<8xf32>
      %539 = vector.multi_reduction <add>, %538, %cst_241 [1] : vector<8x64xf32> to vector<8xf32>
      %540 = vector.shape_cast %539 : vector<8xf32> to vector<8x1xf32>
      %cst_242 = arith.constant 6.400000e+01 : f32
      %541 = vector.broadcast %cst_242 : f32 to vector<8x1xf32>
      %542 = arith.divf %540, %541 : vector<8x1xf32>
      %543 = vector.broadcast %535 : vector<8x1xf32> to vector<8x64xf32>
      %544 = arith.subf %527, %543 : vector<8x64xf32>
      %cst_243 = arith.constant 9.99999974E-6 : f32
      %545 = vector.broadcast %cst_243 : f32 to vector<8x1xf32>
      %546 = arith.addf %542, %545 : vector<8x1xf32>
      %547 = math.rsqrt %546 : vector<8x1xf32>
      %548 = vector.broadcast %547 : vector<8x1xf32> to vector<8x64xf32>
      %549 = arith.mulf %544, %548 : vector<8x64xf32>
      %550 = vector.shape_cast %529 : vector<64xf32> to vector<1x64xf32>
      %551 = vector.broadcast %550 : vector<1x64xf32> to vector<8x64xf32>
      %552 = arith.mulf %549, %551 : vector<8x64xf32>
      %553 = vector.shape_cast %531 : vector<64xf32> to vector<1x64xf32>
      %554 = vector.broadcast %553 : vector<1x64xf32> to vector<8x64xf32>
      %555 = arith.addf %552, %554 : vector<8x64xf32>
      %c0_244 = arith.constant 0 : index
      %c0_245 = arith.constant 0 : index
      %c0_246 = arith.constant 0 : index
      %556 = vector.load %arg13[%c0_244, %c0_245, %c0_246] : memref<1x8x64xf32, #tpu.memory_space<vmem>>, vector<1x8x64xf32>
      %557 = vector.shape_cast %556 : vector<1x8x64xf32> to vector<8x64xf32>
      %558 = vector.shape_cast %555 : vector<8x64xf32> to vector<1x8x64xf32>
      tpu.vector_store %arg13[%c0_244, %c0_245, %c0_246], %558 {strides = array<i32>} : memref<1x8x64xf32, #tpu.memory_space<vmem>>, vector<1x8x64xf32>,
    } else {
    }
    return
  }
  func.func @transform_0(%arg0: i32, %arg1: i32) -> (i32, i32, i32) {
    %c0_i32 = arith.constant 0 : i32
    %c0_i32_0 = arith.constant 0 : i32
    %c0_i32_1 = arith.constant 0 : i32
    return %arg0, %c0_i32, %c0_i32_0 : i32, i32, i32
  }
  func.func @transform_1(%arg0: i32, %arg1: i32) -> (i32, i32, i32, i32) {
    %c0_i32 = arith.constant 0 : i32
    %c0_i32_0 = arith.constant 0 : i32
    %c0_i32_1 = arith.constant 0 : i32
    return %arg0, %arg1, %c0_i32, %c0_i32_0 : i32, i32, i32, i32
  }
  func.func @transform_2(%arg0: i32, %arg1: i32) -> (i32, i32, i32, i32) {
    %c0_i32 = arith.constant 0 : i32
    %c0_i32_0 = arith.constant 0 : i32
    %c0_i32_1 = arith.constant 0 : i32
    return %arg0, %arg1, %c0_i32, %c0_i32_0 : i32, i32, i32, i32
  }
  func.func @transform_3(%arg0: i32, %arg1: i32) -> (i32, i32) {
    %c0_i32 = arith.constant 0 : i32
    %c0_i32_0 = arith.constant 0 : i32
    %c0_i32_1 = arith.constant 0 : i32
    return %c0_i32, %c0_i32_0 : i32, i32
  }
  func.func @transform_4(%arg0: i32, %arg1: i32) -> (i32, i32) {
    %c0_i32 = arith.constant 0 : i32
    %c0_i32_0 = arith.constant 0 : i32
    %c0_i32_1 = arith.constant 0 : i32
    return %c0_i32, %c0_i32_0 : i32, i32
  }
  func.func @transform_5(%arg0: i32, %arg1: i32) -> (i32, i32) {
    %c0_i32 = arith.constant 0 : i32
    %c0_i32_0 = arith.constant 0 : i32
    %c0_i32_1 = arith.constant 0 : i32
    return %c0_i32, %c0_i32_0 : i32, i32
  }
  func.func @transform_6(%arg0: i32, %arg1: i32) -> (i32, i32) {
    %c0_i32 = arith.constant 0 : i32
    %c0_i32_0 = arith.constant 0 : i32
    %c0_i32_1 = arith.constant 0 : i32
    return %c0_i32, %c0_i32_0 : i32, i32
  }
  func.func @transform_7(%arg0: i32, %arg1: i32) -> (i32, i32, i32) {
    %c0_i32 = arith.constant 0 : i32
    %c0_i32_0 = arith.constant 0 : i32
    %c0_i32_1 = arith.constant 0 : i32
    %c0_i32_2 = arith.constant 0 : i32
    return %c0_i32, %c0_i32_0, %c0_i32_1 : i32, i32, i32
  }
  func.func @transform_8(%arg0: i32, %arg1: i32) -> (i32, i32) {
    %c0_i32 = arith.constant 0 : i32
    %c0_i32_0 = arith.constant 0 : i32
    %c0_i32_1 = arith.constant 0 : i32
    return %c0_i32, %c0_i32_0 : i32, i32
  }
  func.func @transform_9(%arg0: i32, %arg1: i32) -> (i32, i32, i32) {
    %c0_i32 = arith.constant 0 : i32
    %c0_i32_0 = arith.constant 0 : i32
    %c0_i32_1 = arith.constant 0 : i32
    %c0_i32_2 = arith.constant 0 : i32
    return %c0_i32, %c0_i32_0, %c0_i32_1 : i32, i32, i32
  }
  func.func @transform_10(%arg0: i32, %arg1: i32) -> (i32, i32, i32) {
    %c0_i32 = arith.constant 0 : i32
    %c0_i32_0 = arith.constant 0 : i32
    %c0_i32_1 = arith.constant 0 : i32
    %c0_i32_2 = arith.constant 0 : i32
    return %c0_i32, %c0_i32_0, %c0_i32_1 : i32, i32, i32
  }
  func.func @transform_11(%arg0: i32, %arg1: i32) -> (i32, i32, i32) {
    %c0_i32 = arith.constant 0 : i32
    %c0_i32_0 = arith.constant 0 : i32
    %c0_i32_1 = arith.constant 0 : i32
    return %arg0, %c0_i32, %c0_i32_0 : i32, i32, i32
  }
}

</mosaic_0001>

<llo_original>
// kernel: tpu_custom_call.1
$region0: #{tpu_custom_call.1}
  #allocation0 [shape = 'u32[]', space=smem, size = 0x4, offset = 0x4, fixed_abs, tag = 'smem constant byte address 0x4 - core index']
  #allocation1 [shape = 'u32[144,128]{1,0:T(1,128)}', space=vmem, size = 0x12000, scoped, tag = 'internal scratch']
  #allocation2 [shape = 'bf16[8,1,8,8]{3,2,1,0:T(8,128)(2,1)}', space=vmem, size = 0x4000, scoped, tag = 'scratch operand']
  %s0 = inlined_call_operand.hbm [shape: f32[2,8,64], index: 0, kind: input, shape index: {}]
  %s1 = inlined_call_operand.hbm [shape: f32[2,8,8,64], index: 1, kind: input, shape index: {}]
  %s2 = inlined_call_operand.hbm [shape: f32[2,8,8,36], index: 2, kind: input, shape index: {}]
  %s3 = inlined_call_operand.hbm [shape: bf16[100,64], index: 3, kind: input, shape index: {}]
  %s4 = inlined_call_operand.hbm [shape: f32[8,64], index: 4, kind: input, shape index: {}]
  %s5 = inlined_call_operand.hbm [shape: f32[8,1], index: 5, kind: input, shape index: {}]
  %s6 = inlined_call_operand.hbm [shape: f32[3,64], index: 6, kind: input, shape index: {}]
  %s7 = inlined_call_operand.hbm [shape: f32[2,7,64], index: 7, kind: input, shape index: {}]
  %s8 = inlined_call_operand.hbm [shape: f32[2,256], index: 8, kind: input, shape index: {}]
  %s9 = inlined_call_operand.hbm [shape: bf16[2,128,256], index: 9, kind: input, shape index: {}]
  %s10 = inlined_call_operand.hbm [shape: bf16[2,320,64], index: 10, kind: input, shape index: {}]
  %s11 = inlined_call_operand.hbm [shape: f32[2,8,64], index: 11, kind: output, shape index: {}]
  %s12 = sld [smem:[#allocation0]]
  $region125: #{tpu_custom_call.1} parent=0
    _
  %s14 = ssub.s32 1, %s12
  %s15 = scalar_select 0, %s14, %s12
  $region1: #{tpu_custom_call.1} parent=0
    #allocation3 [shape = 'u8[8192]{0}', space=vmem, size = 0x2000, scoped, tag = 'input window, operand 0']
    #allocation4 [shape = 's32[2]{0}', space=sflag, size = 0x8, scoped, tag = 'scoped memory for tpu_custom_call.1']
    #allocation5 [shape = 's32[2]{0}', space=sflag, size = 0x8, scoped, tag = 'scoped memory for tpu_custom_call.1']
    #allocation6 [shape = 'u8[65536]{0}', space=vmem, size = 0x10000, scoped, tag = 'input window, operand 1']
    #allocation7 [shape = 's32[2]{0}', space=sflag, size = 0x8, scoped, tag = 'scoped memory for tpu_custom_call.1']
    #allocation8 [shape = 'u8[65536]{0}', space=vmem, size = 0x10000, scoped, tag = 'input window, operand 2']
    #allocation9 [shape = 'u8[26624]{0}', space=vmem, size = 0x6800, scoped, tag = 'input window, operand 3, single buffered']
    #allocation10 [shape = 's32[1]{0}', space=sflag, size = 0x4, scoped, tag = 'scoped memory for tpu_custom_call.1']
    #allocation11 [shape = 'u8[4096]{0}', space=vmem, size = 0x1000, scoped, tag = 'input window, operand 4, single buffered']
    #allocation12 [shape = 'u8[4096]{0}', space=vmem, size = 0x1000, scoped, tag = 'input window, operand 5, single buffered']
    #allocation13 [shape = 's32[1]{0}', space=sflag, size = 0x4, scoped, tag = 'scoped memory for tpu_custom_call.1']
    #allocation14 [shape = 'u8[2048]{0}', space=vmem, size = 0x800, scoped, tag = 'input window, operand 6, single buffered']
    #allocation15 [shape = 'u8[8192]{0}', space=vmem, size = 0x2000, scoped, tag = 'input window, operand 7, single buffered']
    #allocation16 [shape = 's32[1]{0}', space=sflag, size = 0x4, scoped, tag = 'scoped memory for tpu_custom_call.1']
    #allocation17 [shape = 'u8[2048]{0}', space=vmem, size = 0x800, scoped, tag = 'input window, operand 8, single buffered']
    #allocation18 [shape = 'u8[131072]{0}', space=vmem, size = 0x20000, scoped, tag = 'input window, operand 9, single buffered']
    #allocation19 [shape = 's32[1]{0}', space=sflag, size = 0x4, scoped, tag = 'scoped memory for tpu_custom_call.1']
    #allocation20 [shape = 'u8[163840]{0}', space=vmem, size = 0x28000, scoped, tag = 'input window, operand 10, single buffered']
    #allocation21 [shape = 'u8[8192]{0}', space=vmem, size = 0x2000, scoped, tag = 'output window, operand 0']
    %16 = vsyncpa [#allocation4], 0
    %s17 = scalar_lea.sflag [#allocation4], 1
    %18 = vsyncpa %s17, 0
    %19 = vsyncpa [#allocation7], 0
    %s20 = scalar_lea.sflag [#allocation7], 1
    %21 = vsyncpa %s20, 0
    %22 = vsyncpa [#allocation10], 0
    %23 = vsyncpa [#allocation13], 0
    %24 = vsyncpa [#allocation16], 0
    %25 = vsyncpa [#allocation19], 0
    %26 = vsyncpa [#allocation5], 0
    %s27 = scalar_lea.sflag [#allocation5], 1
    %28 = vsyncpa %s27, 0
    loop: start=0, step=1, limit=4
    $region2: #{tpu_custom_call.1} parent=1 // loop_pre_header
      _
    $region3: #{tpu_custom_call.1} parent=1 // loop_header
      %s30 = sphi 0, %s34
      %p31 = scmp.ge.s32.totalorder %s30, 4
      %s37 = sphi 0, %s49
      %s38 = sphi 0, %s45
      %s39 = sphi 0, %s37
      %s40 = sphi 0, %s38
      %s41 = sphi 0, %s39
      %s42 = sphi 0, %s40
      %s52 = sphi 0, %s54
      %s55 = sphi 0, %s52
      %s56 = sphi 0, %s55
      %s72 = sphi 0, %s56
      %s80 = sphi 0, %s82
      %s83 = sphi 0, %s80
      %s84 = sphi 0, %s83
      %s100 = sphi 0, %s84
      %s108 = sphi 0, %s110
      %s111 = sphi 0, %s108
      %s112 = sphi 0, %s111
      %s128 = sphi 0, %s112
      %s132 = sphi 0, %s132
      %s134 = sphi 0, %s132
      %s135 = sphi 0, %s134
      %s149 = sphi 0, %s135
      %s153 = sphi 0, %s153
      %s155 = sphi 0, %s153
      %s156 = sphi 0, %s155
      %s170 = sphi 0, %s156
      %s174 = sphi 0, %s174
      %s176 = sphi 0, %s174
      %s177 = sphi 0, %s176
      %s191 = sphi 0, %s177
      %s195 = sphi 0, %s195
      %s197 = sphi 0, %s195
      %s198 = sphi 0, %s197
      %s212 = sphi 0, %s198
      %s216 = sphi 0, %s216
      %s218 = sphi 0, %s216
      %s219 = sphi 0, %s218
      %s233 = sphi 0, %s219
      %s237 = sphi 0, %s237
      %s239 = sphi 0, %s237
      %s240 = sphi 0, %s239
      %s254 = sphi 0, %s240
      %s258 = sphi 0, %s258
      %s260 = sphi 0, %s258
      %s261 = sphi 0, %s260
      %s275 = sphi 0, %s261
      %s279 = sphi 0, %s279
      %s281 = sphi 0, %s279
      %s282 = sphi 0, %s281
      %s296 = sphi 0, %s282
      %s302 = sphi 0, %s304
      %s305 = sphi 0, %s302
      %s306 = sphi 0, %s305
      %s322 = sphi 0, %s306
    $region4: #{tpu_custom_call.1} parent=1 // loop_header_branch
      %33 = sbr.rel (%p31) target = $region8
    $region5: #{tpu_custom_call.1} parent=1 // loop_body
      %s35 = ssub.s32 %s30, 1
      %s36 = ssub.s32 %s30, 2
      %s43 = sadd.s32 1, %s38
      %p44 = scmp.ge.s32.totalorder %s43, 1
      %s45 = scalar_select %p44, 0, %s43
      %s46 = sadd.s32 1, %s37
      %s47 = scalar_select %p44, %s46, %s37
      %p48 = scmp.ge.s32.totalorder %s47, 2
      %s49 = scalar_select %p48, 0, %s47
      %s50 = ssub.s32 %s37, %s49
      %p51 = scmp.eq.s32.totalorder %s50, 0
      %s53 = sadd.s32 %s52, 1
      %s54 = scalar_select %p51, %s52, %s53
      %p57 = pneg %p51
      %p58 = scmp.eq.s32.totalorder %s30, 1
      %p59 = por %p57, %p58
      %p60 = scmp.ne.s32.totalorder %s52, %s55
      %p61 = scmp.eq.s32.totalorder %s30, 0
      %p62 = por %p60, %p61
      %p63 = scmp.ne.s32.totalorder %s52, %s55
      %p64 = scmp.eq.s32.totalorder %s35, 1
      %p65 = por %p63, %p64
      %p66 = scmp.ne.s32.totalorder %s55, %s56
      %p67 = scmp.eq.s32.totalorder %s35, 0
      %p68 = por %p66, %p67
      %p69 = scmp.ne.s32.totalorder %s55, %s56
      %p70 = scmp.eq.s32.totalorder %s36, 1
      %p71 = por %p69, %p70
      %p73 = scmp.ne.s32.totalorder %s56, %s72
      %p74 = scmp.eq.s32.totalorder %s36, 0
      %p75 = por %p73, %p74
      %s76 = ssub.s32 %s37, %s49
      %s77 = ssub.s32 %s38, %s45
      %s78 = sor.u32 %s76, %s77
      %p79 = scmp.eq.s32.totalorder %s78, 0
      %s81 = sadd.s32 %s80, 1
      %s82 = scalar_select %p79, %s80, %s81
      %p85 = pneg %p79
      %p86 = scmp.eq.s32.totalorder %s30, 1
      %p87 = por %p85, %p86
      %p88 = scmp.ne.s32.totalorder %s80, %s83
      %p89 = scmp.eq.s32.totalorder %s30, 0
      %p90 = por %p88, %p89
      %p91 = scmp.ne.s32.totalorder %s80, %s83
      %p92 = scmp.eq.s32.totalorder %s35, 1
      %p93 = por %p91, %p92
      %p94 = scmp.ne.s32.totalorder %s83, %s84
      %p95 = scmp.eq.s32.totalorder %s35, 0
      %p96 = por %p94, %p95
      %p97 = scmp.ne.s32.totalorder %s83, %s84
      %p98 = scmp.eq.s32.totalorder %s36, 1
      %p99 = por %p97, %p98
      %p101 = scmp.ne.s32.totalorder %s84, %s100
      %p102 = scmp.eq.s32.totalorder %s36, 0
      %p103 = por %p101, %p102
      %s104 = ssub.s32 %s37, %s49
      %s105 = ssub.s32 %s38, %s45
      %s106 = sor.u32 %s104, %s105
      %p107 = scmp.eq.s32.totalorder %s106, 0
      %s109 = sadd.s32 %s108, 1
      %s110 = scalar_select %p107, %s108, %s109
      %p113 = pneg %p107
      %p114 = scmp.eq.s32.totalorder %s30, 1
      %p115 = por %p113, %p114
      %p116 = scmp.ne.s32.totalorder %s108, %s111
      %p117 = scmp.eq.s32.totalorder %s30, 0
      %p118 = por %p116, %p117
      %p119 = scmp.ne.s32.totalorder %s108, %s111
      %p120 = scmp.eq.s32.totalorder %s35, 1
      %p121 = por %p119, %p120
      %p122 = scmp.ne.s32.totalorder %s111, %s112
      %p123 = scmp.eq.s32.totalorder %s35, 0
      %p124 = por %p122, %p123
      %p125 = scmp.ne.s32.totalorder %s111, %s112
      %p126 = scmp.eq.s32.totalorder %s36, 1
      %p127 = por %p125, %p126
      %p129 = scmp.ne.s32.totalorder %s112, %s128
      %p130 = scmp.eq.s32.totalorder %s36, 0
      %p131 = por %p129, %p130
      %s133 = sadd.s32 %s132, 1
      %p136 = scmp.eq.s32.totalorder %s30, 1
      %p137 = scmp.ne.s32.totalorder %s132, %s134
      %p138 = scmp.eq.s32.totalorder %s30, 0
      %p139 = por %p137, %p138
      %p140 = scmp.ne.s32.totalorder %s132, %s134
      %p141 = scmp.eq.s32.totalorder %s35, 1
      %p142 = por %p140, %p141
      %p143 = scmp.ne.s32.totalorder %s134, %s135
      %p144 = scmp.eq.s32.totalorder %s35, 0
      %p145 = por %p143, %p144
      %p146 = scmp.ne.s32.totalorder %s134, %s135
      %p147 = scmp.eq.s32.totalorder %s36, 1
      %p148 = por %p146, %p147
      %p150 = scmp.ne.s32.totalorder %s135, %s149
      %p151 = scmp.eq.s32.totalorder %s36, 0
      %p152 = por %p150, %p151
      %s154 = sadd.s32 %s153, 1
      %p157 = scmp.eq.s32.totalorder %s30, 1
      %p158 = scmp.ne.s32.totalorder %s153, %s155
      %p159 = scmp.eq.s32.totalorder %s30, 0
      %p160 = por %p158, %p159
      %p161 = scmp.ne.s32.totalorder %s153, %s155
      %p162 = scmp.eq.s32.totalorder %s35, 1
      %p163 = por %p161, %p162
      %p164 = scmp.ne.s32.totalorder %s155, %s156
      %p165 = scmp.eq.s32.totalorder %s35, 0
      %p166 = por %p164, %p165
      %p167 = scmp.ne.s32.totalorder %s155, %s156
      %p168 = scmp.eq.s32.totalorder %s36, 1
      %p169 = por %p167, %p168
      %p171 = scmp.ne.s32.totalorder %s156, %s170
      %p172 = scmp.eq.s32.totalorder %s36, 0
      %p173 = por %p171, %p172
      %s175 = sadd.s32 %s174, 1
      %p178 = scmp.eq.s32.totalorder %s30, 1
      %p179 = scmp.ne.s32.totalorder %s174, %s176
      %p180 = scmp.eq.s32.totalorder %s30, 0
      %p181 = por %p179, %p180
      %p182 = scmp.ne.s32.totalorder %s174, %s176
      %p183 = scmp.eq.s32.totalorder %s35, 1
      %p184 = por %p182, %p183
      %p185 = scmp.ne.s32.totalorder %s176, %s177
      %p186 = scmp.eq.s32.totalorder %s35, 0
      %p187 = por %p185, %p186
      %p188 = scmp.ne.s32.totalorder %s176, %s177
      %p189 = scmp.eq.s32.totalorder %s36, 1
      %p190 = por %p188, %p189
      %p192 = scmp.ne.s32.totalorder %s177, %s191
      %p193 = scmp.eq.s32.totalorder %s36, 0
      %p194 = por %p192, %p193
      %s196 = sadd.s32 %s195, 1
      %p199 = scmp.eq.s32.totalorder %s30, 1
      %p200 = scmp.ne.s32.totalorder %s195, %s197
      %p201 = scmp.eq.s32.totalorder %s30, 0
      %p202 = por %p200, %p201
      %p203 = scmp.ne.s32.totalorder %s195, %s197
      %p204 = scmp.eq.s32.totalorder %s35, 1
      %p205 = por %p203, %p204
      %p206 = scmp.ne.s32.totalorder %s197, %s198
      %p207 = scmp.eq.s32.totalorder %s35, 0
      %p208 = por %p206, %p207
      %p209 = scmp.ne.s32.totalorder %s197, %s198
      %p210 = scmp.eq.s32.totalorder %s36, 1
      %p211 = por %p209, %p210
      %p213 = scmp.ne.s32.totalorder %s198, %s212
      %p214 = scmp.eq.s32.totalorder %s36, 0
      %p215 = por %p213, %p214
      %s217 = sadd.s32 %s216, 1
      %p220 = scmp.eq.s32.totalorder %s30, 1
      %p221 = scmp.ne.s32.totalorder %s216, %s218
      %p222 = scmp.eq.s32.totalorder %s30, 0
      %p223 = por %p221, %p222
      %p224 = scmp.ne.s32.totalorder %s216, %s218
      %p225 = scmp.eq.s32.totalorder %s35, 1
      %p226 = por %p224, %p225
      %p227 = scmp.ne.s32.totalorder %s218, %s219
      %p228 = scmp.eq.s32.totalorder %s35, 0
      %p229 = por %p227, %p228
      %p230 = scmp.ne.s32.totalorder %s218, %s219
      %p231 = scmp.eq.s32.totalorder %s36, 1
      %p232 = por %p230, %p231
      %p234 = scmp.ne.s32.totalorder %s219, %s233
      %p235 = scmp.eq.s32.totalorder %s36, 0
      %p236 = por %p234, %p235
      %s238 = sadd.s32 %s237, 1
      %p241 = scmp.eq.s32.totalorder %s30, 1
      %p242 = scmp.ne.s32.totalorder %s237, %s239
      %p243 = scmp.eq.s32.totalorder %s30, 0
      %p244 = por %p242, %p243
      %p245 = scmp.ne.s32.totalorder %s237, %s239
      %p246 = scmp.eq.s32.totalorder %s35, 1
      %p247 = por %p245, %p246
      %p248 = scmp.ne.s32.totalorder %s239, %s240
      %p249 = scmp.eq.s32.totalorder %s35, 0
      %p250 = por %p248, %p249
      %p251 = scmp.ne.s32.totalorder %s239, %s240
      %p252 = scmp.eq.s32.totalorder %s36, 1
      %p253 = por %p251, %p252
      %p255 = scmp.ne.s32.totalorder %s240, %s254
      %p256 = scmp.eq.s32.totalorder %s36, 0
      %p257 = por %p255, %p256
      %s259 = sadd.s32 %s258, 1
      %p262 = scmp.eq.s32.totalorder %s30, 1
      %p263 = scmp.ne.s32.totalorder %s258, %s260
      %p264 = scmp.eq.s32.totalorder %s30, 0
      %p265 = por %p263, %p264
      %p266 = scmp.ne.s32.totalorder %s258, %s260
      %p267 = scmp.eq.s32.totalorder %s35, 1
      %p268 = por %p266, %p267
      %p269 = scmp.ne.s32.totalorder %s260, %s261
      %p270 = scmp.eq.s32.totalorder %s35, 0
      %p271 = por %p269, %p270
      %p272 = scmp.ne.s32.totalorder %s260, %s261
      %p273 = scmp.eq.s32.totalorder %s36, 1
      %p274 = por %p272, %p273
      %p276 = scmp.ne.s32.totalorder %s261, %s275
      %p277 = scmp.eq.s32.totalorder %s36, 0
      %p278 = por %p276, %p277
      %s280 = sadd.s32 %s279, 1
      %p283 = scmp.eq.s32.totalorder %s30, 1
      %p284 = scmp.ne.s32.totalorder %s279, %s281
      %p285 = scmp.eq.s32.totalorder %s30, 0
      %p286 = por %p284, %p285
      %p287 = scmp.ne.s32.totalorder %s279, %s281
      %p288 = scmp.eq.s32.totalorder %s35, 1
      %p289 = por %p287, %p288
      %p290 = scmp.ne.s32.totalorder %s281, %s282
      %p291 = scmp.eq.s32.totalorder %s35, 0
      %p292 = por %p290, %p291
      %p293 = scmp.ne.s32.totalorder %s281, %s282
      %p294 = scmp.eq.s32.totalorder %s36, 1
      %p295 = por %p293, %p294
      %p297 = scmp.ne.s32.totalorder %s282, %s296
      %p298 = scmp.eq.s32.totalorder %s36, 0
      %p299 = por %p297, %p298
      %s300 = ssub.s32 %s37, %s49
      %p301 = scmp.eq.s32.totalorder %s300, 0
      %s303 = sadd.s32 %s302, 1
      %s304 = scalar_select %p301, %s302, %s303
      %p307 = pneg %p301
      %p308 = scmp.eq.s32.totalorder %s30, 1
      %p309 = por %p307, %p308
      %p310 = scmp.ne.s32.totalorder %s302, %s305
      %p311 = scmp.eq.s32.totalorder %s30, 0
      %p312 = por %p310, %p311
      %p313 = scmp.ne.s32.totalorder %s302, %s305
      %p314 = scmp.eq.s32.totalorder %s35, 1
      %p315 = por %p313, %p314
      %p316 = scmp.ne.s32.totalorder %s305, %s306
      %p317 = scmp.eq.s32.totalorder %s35, 0
      %p318 = por %p316, %p317
      %p319 = scmp.ne.s32.totalorder %s305, %s306
      %p320 = scmp.eq.s32.totalorder %s36, 1
      %p321 = por %p319, %p320
      %p323 = scmp.ne.s32.totalorder %s306, %s322
      %p324 = scmp.eq.s32.totalorder %s36, 0
      %p325 = por %p323, %p324
      %p326 = scmp.le.s32.totalorder 1, %s30
      %p327 = scmp.lt.s32.totalorder %s30, 3
      %p328 = pnand %p326, %p327
      %p329 = pneg %p328
      // Predicated region
      $region9: #{tpu_custom_call.1} parent=5 // pred_check
        _
      $region10: #{tpu_custom_call.1} parent=5 // pred_check_branch
        %331 = sbr.rel (%p328) target = $region12
      $region11: #{tpu_custom_call.1} parent=5 // pred_region
        %s332 = ssub.s32 %s30, 1
        // Predicated region
        $region13: #{tpu_custom_call.1} parent=11 // pred_check
          %p333 = pneg %p145
        $region14: #{tpu_custom_call.1} parent=11 // pred_check_branch
          %335 = sbr.rel (%p333) target = $region16
        $region15: #{tpu_custom_call.1} parent=11 // pred_region
          %s337 = ssub.s32 832, 832
          %338 = vsyncadd [#allocation10], %s337
          %s339 = sshll.u32 [#allocation9], 4
          %s340 = int_to_ptr.vmem [resolvable:$true] %s339
          %345 = dma.hbm_to_vmem [thread:$0]  %s3, 832, %s340, [#allocation10], 64, 64, 4
        $region16: #{tpu_custom_call.1} parent=11 // pred_fallthru
          _
        // Predicated region
        $region17: #{tpu_custom_call.1} parent=11 // pred_check
          %p346 = pneg %p166
        $region18: #{tpu_custom_call.1} parent=11 // pred_check_branch
          %348 = sbr.rel (%p346) target = $region20
        $region19: #{tpu_custom_call.1} parent=11 // pred_region
          %s350 = ssub.s32 128, 128
          %351 = vsyncadd [#allocation10], %s350
          %s353 = sshll.u32 [#allocation11], 4
          %s354 = int_to_ptr.vmem [resolvable:$true] %s353
          %356 = dma.hbm_to_vmem [thread:$0]  %s4, 128, %s354, [#allocation10]
        $region20: #{tpu_custom_call.1} parent=11 // pred_fallthru
          _
        // Predicated region
        $region21: #{tpu_custom_call.1} parent=11 // pred_check
          %p357 = pneg %p187
        $region22: #{tpu_custom_call.1} parent=11 // pred_check_branch
          %359 = sbr.rel (%p357) target = $region24
        $region23: #{tpu_custom_call.1} parent=11 // pred_region
          %s361 = ssub.s32 128, 128
          %362 = vsyncadd [#allocation13], %s361
          %s364 = sshll.u32 [#allocation12], 4
          %s365 = int_to_ptr.vmem [resolvable:$true] %s364
          %367 = dma.hbm_to_vmem [thread:$0]  %s5, 128, %s365, [#allocation13]
        $region24: #{tpu_custom_call.1} parent=11 // pred_fallthru
          _
        // Predicated region
        $region25: #{tpu_custom_call.1} parent=11 // pred_check
          %p368 = pneg %p208
        $region26: #{tpu_custom_call.1} parent=11 // pred_check_branch
          %370 = sbr.rel (%p368) target = $region28
        $region27: #{tpu_custom_call.1} parent=11 // pred_region
          %s372 = ssub.s32 64, 64
          %373 = vsyncadd [#allocation13], %s372
          %s375 = sshll.u32 [#allocation14], 4
          %s376 = int_to_ptr.vmem [resolvable:$true] %s375
          %378 = dma.hbm_to_vmem [thread:$0]  %s6, 64, %s376, [#allocation13]
        $region28: #{tpu_custom_call.1} parent=11 // pred_fallthru
          _
        // Predicated region
        $region29: #{tpu_custom_call.1} parent=11 // pred_check
          %p379 = pneg %p229
        $region30: #{tpu_custom_call.1} parent=11 // pred_check_branch
          %381 = sbr.rel (%p379) target = $region32
        $region31: #{tpu_custom_call.1} parent=11 // pred_region
          %s383 = ssub.s32 256, 256
          %384 = vsyncadd [#allocation16], %s383
          %s385 = sshll.u32 [#allocation15], 4
          %s386 = int_to_ptr.vmem [resolvable:$true] %s385
          %391 = dma.hbm_to_vmem [thread:$0]  %s7, 256, %s386, [#allocation16], 128, 128, 8
        $region32: #{tpu_custom_call.1} parent=11 // pred_fallthru
          _
        // Predicated region
        $region33: #{tpu_custom_call.1} parent=11 // pred_check
          %p392 = pneg %p250
        $region34: #{tpu_custom_call.1} parent=11 // pred_check_branch
          %394 = sbr.rel (%p392) target = $region36
        $region35: #{tpu_custom_call.1} parent=11 // pred_region
          %s396 = ssub.s32 64, 64
          %397 = vsyncadd [#allocation16], %s396
          %s399 = sshll.u32 [#allocation17], 4
          %s400 = int_to_ptr.vmem [resolvable:$true] %s399
          %402 = dma.hbm_to_vmem [thread:$0]  %s8, 64, %s400, [#allocation16]
        $region36: #{tpu_custom_call.1} parent=11 // pred_fallthru
          _
        // Predicated region
        $region37: #{tpu_custom_call.1} parent=11 // pred_check
          %p403 = pneg %p271
        $region38: #{tpu_custom_call.1} parent=11 // pred_check_branch
          %405 = sbr.rel (%p403) target = $region40
        $region39: #{tpu_custom_call.1} parent=11 // pred_region
          %s407 = ssub.s32 4096, 4096
          %408 = vsyncadd [#allocation19], %s407
          %s409 = sshll.u32 [#allocation18], 4
          %s410 = int_to_ptr.vmem [resolvable:$true] %s409
          %415 = dma.hbm_to_vmem [thread:$0]  %s9, 4096, %s410, [#allocation19], 128, 128, 8
        $region40: #{tpu_custom_call.1} parent=11 // pred_fallthru
          _
        // Predicated region
        $region41: #{tpu_custom_call.1} parent=11 // pred_check
          %p416 = pneg %p292
        $region42: #{tpu_custom_call.1} parent=11 // pred_check_branch
          %418 = sbr.rel (%p416) target = $region44
        $region43: #{tpu_custom_call.1} parent=11 // pred_region
          %s420 = ssub.s32 5120, 5120
          %421 = vsyncadd [#allocation19], %s420
          %s422 = sshll.u32 [#allocation20], 4
          %s423 = int_to_ptr.vmem [resolvable:$true] %s422
          %428 = dma.hbm_to_vmem [thread:$0]  %s10, 5120, %s423, [#allocation19], 64, 64, 4
        $region44: #{tpu_custom_call.1} parent=11 // pred_fallthru
          _
      $region12: #{tpu_custom_call.1} parent=5 // pred_fallthru
        _
      %p429 = scmp.lt.s32.totalorder %s30, 2
      // Predicated region
      $region45: #{tpu_custom_call.1} parent=5 // pred_check
        %p430 = pneg %p429
      $region46: #{tpu_custom_call.1} parent=5 // pred_check_branch
        %432 = sbr.rel (%p430) target = $region48
      $region47: #{tpu_custom_call.1} parent=5 // pred_region
        // Predicated region
        $region49: #{tpu_custom_call.1} parent=47 // pred_check
          %p433 = pneg %p62
        $region50: #{tpu_custom_call.1} parent=47 // pred_check_branch
          %435 = sbr.rel (%p433) target = $region52
        $region51: #{tpu_custom_call.1} parent=47 // pred_region
          %s436 = sand.u32 %s52, 1
          %s437 = scalar_lea.sflag [#allocation4], %s436
          %s438 = sand.u32 %s52, 1
          %s439 = smul.addr %s438, 8
          %s440 = scalar_lea.vmem [#allocation3], %s439
          %s442 = ssub.s32 128, 128
          %443 = vsyncadd %s437, %s442
          %s444 = smul.addr %s37, 128
          %s445 = scalar_lea.hbm %s0, %s444
          %s447 = sshll.u32 %s440, 4
          %s448 = int_to_ptr.vmem [resolvable:$true] %s447
          %450 = dma.hbm_to_vmem [thread:$0]  %s445, 128, %s448, %s437
        $region52: #{tpu_custom_call.1} parent=47 // pred_fallthru
          _
        // Predicated region
        $region53: #{tpu_custom_call.1} parent=47 // pred_check
          %p451 = pneg %p90
        $region54: #{tpu_custom_call.1} parent=47 // pred_check_branch
          %453 = sbr.rel (%p451) target = $region56
        $region55: #{tpu_custom_call.1} parent=47 // pred_region
          %s454 = sand.u32 %s30, 1
          %s455 = scalar_lea.sflag [#allocation7], %s454
          %s456 = sand.u32 %s80, 1
          %s457 = smul.addr %s456, 64
          %s458 = scalar_lea.vmem [#allocation6], %s457
          %s459 = smul.u32 8, %s38
          %s461 = ssub.s32 1024, 1024
          %462 = vsyncadd %s455, %s461
          %s463 = smul.addr %s37, 8
          %s464 = sadd.s32 %s459, %s463
          %s465 = smul.addr %s464, 128
          %s466 = scalar_lea.hbm %s1, %s465
          %s467 = sshll.u32 %s458, 4
          %s468 = int_to_ptr.vmem [resolvable:$true] %s467
          %473 = dma.hbm_to_vmem [thread:$0]  %s466, 1024, %s468, %s455, 128, 128, 8
        $region56: #{tpu_custom_call.1} parent=47 // pred_fallthru
          _
        // Predicated region
        $region57: #{tpu_custom_call.1} parent=47 // pred_check
          %p474 = pneg %p118
        $region58: #{tpu_custom_call.1} parent=47 // pred_check_branch
          %476 = sbr.rel (%p474) target = $region60
        $region59: #{tpu_custom_call.1} parent=47 // pred_region
          %s477 = sand.u32 %s30, 1
          %s478 = scalar_lea.sflag [#allocation7], %s477
          %s479 = sand.u32 %s108, 1
          %s480 = smul.addr %s479, 64
          %s481 = scalar_lea.vmem [#allocation8], %s480
          %s482 = smul.u32 8, %s38
          %s484 = ssub.s32 1024, 1024
          %485 = vsyncadd %s478, %s484
          %s486 = smul.addr %s37, 8
          %s487 = sadd.s32 %s482, %s486
          %s488 = smul.addr %s487, 128
          %s489 = scalar_lea.hbm %s2, %s488
          %s490 = sshll.u32 %s481, 4
          %s491 = int_to_ptr.vmem [resolvable:$true] %s490
          %496 = dma.hbm_to_vmem [thread:$0]  %s489, 1024, %s491, %s478, 128, 128, 8
        $region60: #{tpu_custom_call.1} parent=47 // pred_fallthru
          _
      $region48: #{tpu_custom_call.1} parent=5 // pred_fallthru
        _
      %p497 = scmp.le.s32.totalorder 1, %s30
      %p498 = scmp.lt.s32.totalorder %s30, 3
      %p499 = pnand %p497, %p498
      %p500 = pneg %p499
      // Predicated region
      $region61: #{tpu_custom_call.1} parent=5 // pred_check
        _
      $region62: #{tpu_custom_call.1} parent=5 // pred_check_branch
        %502 = sbr.rel (%p499) target = $region64
      $region63: #{tpu_custom_call.1} parent=5 // pred_region
        %s503 = ssub.s32 %s30, 1
        %s504 = sand.u32 %s55, 1
        %s505 = scalar_lea.sflag [#allocation4], %s504
        %s506 = sand.u32 %s55, 1
        %s507 = smul.addr %s506, 8
        %s508 = scalar_lea.vmem [#allocation3], %s507
        // Predicated region
        $region65: #{tpu_custom_call.1} parent=63 // pred_check
          %p509 = pneg %p68
        $region66: #{tpu_custom_call.1} parent=63 // pred_check_branch
          %511 = sbr.rel (%p509) target = $region68
        $region67: #{tpu_custom_call.1} parent=63 // pred_region
          %512 = dma.done %s505, 128
        $region68: #{tpu_custom_call.1} parent=63 // pred_fallthru
          _
        %s513 = sand.u32 %s35, 1
        %s514 = scalar_lea.sflag [#allocation7], %s513
        %s515 = sand.u32 %s83, 1
        %s516 = smul.addr %s515, 64
        %s517 = scalar_lea.vmem [#allocation6], %s516
        // Predicated region
        $region69: #{tpu_custom_call.1} parent=63 // pred_check
          %p518 = pneg %p96
        $region70: #{tpu_custom_call.1} parent=63 // pred_check_branch
          %520 = sbr.rel (%p518) target = $region72
        $region71: #{tpu_custom_call.1} parent=63 // pred_region
          %521 = dma.done %s514, 1024
        $region72: #{tpu_custom_call.1} parent=63 // pred_fallthru
          _
        %s522 = sand.u32 %s35, 1
        %s523 = scalar_lea.sflag [#allocation7], %s522
        %s524 = sand.u32 %s111, 1
        %s525 = smul.addr %s524, 64
        %s526 = scalar_lea.vmem [#allocation8], %s525
        // Predicated region
        $region73: #{tpu_custom_call.1} parent=63 // pred_check
          %p527 = pneg %p124
        $region74: #{tpu_custom_call.1} parent=63 // pred_check_branch
          %529 = sbr.rel (%p527) target = $region76
        $region75: #{tpu_custom_call.1} parent=63 // pred_region
          %530 = dma.done %s523, 1024
        $region76: #{tpu_custom_call.1} parent=63 // pred_fallthru
          _
        // Predicated region
        $region77: #{tpu_custom_call.1} parent=63 // pred_check
          %p531 = pneg %p145
        $region78: #{tpu_custom_call.1} parent=63 // pred_check_branch
          %533 = sbr.rel (%p531) target = $region80
        $region79: #{tpu_custom_call.1} parent=63 // pred_region
          %534 = dma.done [#allocation10], 832
        $region80: #{tpu_custom_call.1} parent=63 // pred_fallthru
          _
        // Predicated region
        $region81: #{tpu_custom_call.1} parent=63 // pred_check
          %p535 = pneg %p166
        $region82: #{tpu_custom_call.1} parent=63 // pred_check_branch
          %537 = sbr.rel (%p535) target = $region84
        $region83: #{tpu_custom_call.1} parent=63 // pred_region
          %538 = dma.done [#allocation10], 128
        $region84: #{tpu_custom_call.1} parent=63 // pred_fallthru
          _
        // Predicated region
        $region85: #{tpu_custom_call.1} parent=63 // pred_check
          %p539 = pneg %p187
        $region86: #{tpu_custom_call.1} parent=63 // pred_check_branch
          %541 = sbr.rel (%p539) target = $region88
        $region87: #{tpu_custom_call.1} parent=63 // pred_region
          %542 = dma.done [#allocation13], 128
        $region88: #{tpu_custom_call.1} parent=63 // pred_fallthru
          _
        // Predicated region
        $region89: #{tpu_custom_call.1} parent=63 // pred_check
          %p543 = pneg %p208
        $region90: #{tpu_custom_call.1} parent=63 // pred_check_branch
          %545 = sbr.rel (%p543) target = $region92
        $region91: #{tpu_custom_call.1} parent=63 // pred_region
          %546 = dma.done [#allocation13], 64
        $region92: #{tpu_custom_call.1} parent=63 // pred_fallthru
          _
        // Predicated region
        $region93: #{tpu_custom_call.1} parent=63 // pred_check
          %p547 = pneg %p229
        $region94: #{tpu_custom_call.1} parent=63 // pred_check_branch
          %549 = sbr.rel (%p547) target = $region96
        $region95: #{tpu_custom_call.1} parent=63 // pred_region
          %550 = dma.done [#allocation16], 256
        $region96: #{tpu_custom_call.1} parent=63 // pred_fallthru
          _
        // Predicated region
        $region97: #{tpu_custom_call.1} parent=63 // pred_check
          %p551 = pneg %p250
        $region98: #{tpu_custom_call.1} parent=63 // pred_check_branch
          %553 = sbr.rel (%p551) target = $region100
        $region99: #{tpu_custom_call.1} parent=63 // pred_region
          %554 = dma.done [#allocation16], 64
        $region100: #{tpu_custom_call.1} parent=63 // pred_fallthru
          _
        // Predicated region
        $region101: #{tpu_custom_call.1} parent=63 // pred_check
          %p555 = pneg %p271
        $region102: #{tpu_custom_call.1} parent=63 // pred_check_branch
          %557 = sbr.rel (%p555) target = $region104
        $region103: #{tpu_custom_call.1} parent=63 // pred_region
          %558 = dma.done [#allocation19], 4096
        $region104: #{tpu_custom_call.1} parent=63 // pred_fallthru
          _
        // Predicated region
        $region105: #{tpu_custom_call.1} parent=63 // pred_check
          %p559 = pneg %p292
        $region106: #{tpu_custom_call.1} parent=63 // pred_check_branch
          %561 = sbr.rel (%p559) target = $region108
        $region107: #{tpu_custom_call.1} parent=63 // pred_region
          %562 = dma.done [#allocation19], 5120
        $region108: #{tpu_custom_call.1} parent=63 // pred_fallthru
          _
        %s563 = sand.u32 %s55, 1
        %s564 = scalar_lea.sflag [#allocation4], %s563
        %s565 = sand.u32 %s55, 1
        %s566 = smul.addr %s565, 8
        %s567 = scalar_lea.vmem [#allocation3], %s566
        %p568 = pneg %p68
        %p569 = pneg %p65
        %s570 = sand.u32 %s35, 1
        %s571 = scalar_lea.sflag [#allocation7], %s570
        %s572 = sand.u32 %s83, 1
        %s573 = smul.addr %s572, 64
        %s574 = scalar_lea.vmem [#allocation6], %s573
        %p575 = pneg %p96
        %p576 = pneg %p93
        %s577 = sand.u32 %s35, 1
        %s578 = scalar_lea.sflag [#allocation7], %s577
        %s579 = sand.u32 %s111, 1
        %s580 = smul.addr %s579, 64
        %s581 = scalar_lea.vmem [#allocation8], %s580
        %p582 = pneg %p124
        %p583 = pneg %p121
        %p584 = pneg %p145
        %p585 = pneg %p142
        %p586 = pneg %p166
        %p587 = pneg %p163
        %p588 = pneg %p187
        %p589 = pneg %p184
        %p590 = pneg %p208
        %p591 = pneg %p205
        %p592 = pneg %p229
        %p593 = pneg %p226
        %p594 = pneg %p250
        %p595 = pneg %p247
        %p596 = pneg %p271
        %p597 = pneg %p268
        %p598 = pneg %p292
        %p599 = pneg %p289
        %p600 = pneg %p318
        %p601 = pneg %p315
        %s602 = sand.u32 %s305, 1
        %s603 = scalar_lea.sflag [#allocation5], %s602
        %s604 = sand.u32 %s305, 1
        %s605 = smul.addr %s604, 8
        %s606 = scalar_lea.vmem [#allocation21], %s605
        %s607 = smul.u32 8, %s40
        %s608 = smul.u32 8, %s40
        %v610 = vld [vmem:[%s517] sm:$0xff]
        %v611 = vld [vmem:[%s517 + $0x8] sm:$0xff]
        %v612 = vld [vmem:[%s517 + $0x10] sm:$0xff]
        %v613 = vld [vmem:[%s517 + $0x18] sm:$0xff]
        %v614 = vld [vmem:[%s517 + $0x20] sm:$0xff]
        %v615 = vld [vmem:[%s517 + $0x28] sm:$0xff]
        %v616 = vld [vmem:[%s517 + $0x30] sm:$0xff]
        %v617 = vld [vmem:[%s517 + $0x38] sm:$0xff]
        %v618 = vpack.c.bf16 %v611, %v610
        %v619 = vpack.c.bf16 %v613, %v612
        %v620 = vpack.c.bf16 %v615, %v614
        %v621 = vpack.c.bf16 %v617, %v616
        %v622 = vld [vmem:[%s526] sm:$0xff]
        %v623 = vld [vmem:[%s526 + $0x8] sm:$0xff]
        %v624 = vld [vmem:[%s526 + $0x10] sm:$0xff]
        %v625 = vld [vmem:[%s526 + $0x18] sm:$0xff]
        %v626 = vld [vmem:[%s526 + $0x20] sm:$0xff]
        %v627 = vld [vmem:[%s526 + $0x28] sm:$0xff]
        %v628 = vld [vmem:[%s526 + $0x30] sm:$0xff]
        %v629 = vld [vmem:[%s526 + $0x38] sm:$0xff]
        %v630 = vpack.c.bf16 %v623, %v622
        %v631 = vpack.c.bf16 %v625, %v624
        %v632 = vpack.c.bf16 %v627, %v626
        %v633 = vpack.c.bf16 %v629, %v628
        %v634 = vld [vmem:[#allocation9] sm:$0xf]
        %v635 = vld [vmem:[#allocation9 + $0x4] sm:$0xf]
        %v636 = vld [vmem:[#allocation9 + $0x8] sm:$0xf]
        %v637 = vld [vmem:[#allocation9 + $0xc] sm:$0xf]
        %v638 = vld [vmem:[#allocation9 + $0x10] sm:$0xf]
        %v639 = vld [vmem:[#allocation9 + $0x14] sm:$0xf]
        %v640 = vld [vmem:[#allocation9 + $0x18] sm:$0xf]
        %v641 = vld [vmem:[#allocation9 + $0x1c] sm:$0xf]
        %v642 = vld [vmem:[#allocation9 + $0x20] sm:$0xf]
        %v643 = vld [vmem:[#allocation9 + $0x24] sm:$0xf]
        %v644 = vld [vmem:[#allocation9 + $0x28] sm:$0xf]
        %v645 = vld [vmem:[#allocation9 + $0x2c] sm:$0xf]
        %v646 = vld [vmem:[#allocation9 + $0x30] sm:$0x3]
        %v652 = vunpack.c.l.b16 %v642
        %v653 = vunpack.c.l.b16 %v643
        %v654 = vunpack.c.l.b16 %v644
        %v655 = vunpack.c.l.b16 %v645
        %v656 = vunpack.c.l.b16 %v646
        %v657 = vpack.c.b16 %v653, %v652
        %v658 = vpack.c.b16 %v655, %v654
        %v659 = vpack.c.b16 %v656, %v656
        %vm662 = vcmask 293888
        %v664 = vsel %vm662, %v630, 0
        %v667 = vsel %vm662, %v631, 0
        %v670 = vsel %vm662, %v632, 0
        %v673 = vsel %vm662, %v633, 0
        %vm675 = vcmask 1041408
        %v677 = vsel %vm675, %v659, 0
        %679 = vmatprep.subr.bf16.mxu0 0
        %680 = vmatpush1.bf16.msra.mxu0 %v657
        %681 = vmatprep.subr.bf16.mxu0 0
        %682 = vmatpush1.bf16.msra.mxu0 %v658
        %683 = vmatprep.subr.bf16.mxu0 0
        %684 = vmatpush1.bf16.msra.mxu0 %v677
        %685 = vmatprep.subr.bf16.mxu0 0
        %686 = vmatpush1.bf16.msra.mxu0 0
        %687 = vmatprep.subr.bf16.mxu0 0
        %688 = vmatpush1.bf16.msra.mxu0 0
        %689 = vmatprep.subr.bf16.mxu0 0
        %690 = vmatpush1.bf16.msra.mxu0 0
        %691 = vmatprep.subr.bf16.mxu0 0
        %692 = vmatpush1.bf16.msra.mxu0 0
        %693 = vmatprep.subr.bf16.mxu0 0
        %694 = vmatpush1.bf16.msra.mxu0 0
        %695 = vmatprep.subr.bf16.mxu0 0
        %696 = vmatpush1.bf16.msra.mxu0 0
        %697 = vmatprep.subr.bf16.mxu0 0
        %698 = vmatpush1.bf16.msra.mxu0 0
        %699 = vmatprep.subr.bf16.mxu0 0
        %700 = vmatpush1.bf16.msra.mxu0 0
        %701 = vmatprep.subr.bf16.mxu0 0
        %702 = vmatpush1.bf16.msra.mxu0 0
        %703 = vmatprep.subr.bf16.mxu0 0
        %704 = vmatpush1.bf16.msra.mxu0 0
        %705 = vmatprep.subr.bf16.mxu0 0
        %706 = vmatpush1.bf16.msra.mxu0 0
        %707 = vmatprep.subr.bf16.mxu0 0
        %708 = vmatpush1.bf16.msra.mxu0 0
        %709 = vmatprep.subr.bf16.mxu0 0
        %710 = vmatpush1.bf16.msra.mxu0 0
        %711 = vmatprep.mubr.bf16.mxu0 0
        %712 = vmatmul.mubr.bf16.gmra.mrb[0].mxu0 %v664
        %v713 = vpop.f32.mrb[0].mxu0
        %v714 = vadd.f32 0.0, %v713
        %v715 = vpop.f32.mrb[0].mxu0
        %v716 = vpop.f32.mrb[0].mxu0
        %v717 = vadd.f32 0.0, %v716
        %v718 = vpop.f32.mrb[0].mxu0
        %719 = vmatprep.mubr.bf16.mxu0 0
        %720 = vmatmul.mubr.bf16.gmra.mrb[0].mxu0 %v667
        %v721 = vpop.f32.mrb[0].mxu0
        %v722 = vadd.f32 0.0, %v721
        %v723 = vpop.f32.mrb[0].mxu0
        %v724 = vpop.f32.mrb[0].mxu0
        %v725 = vadd.f32 0.0, %v724
        %v726 = vpop.f32.mrb[0].mxu0
        %727 = vmatprep.mubr.bf16.mxu0 0
        %728 = vmatmul.mubr.bf16.gmra.mrb[0].mxu0 %v670
        %v729 = vpop.f32.mrb[0].mxu0
        %v730 = vadd.f32 0.0, %v729
        %v731 = vpop.f32.mrb[0].mxu0
        %v732 = vpop.f32.mrb[0].mxu0
        %v733 = vadd.f32 0.0, %v732
        %v734 = vpop.f32.mrb[0].mxu0
        %735 = vmatprep.mubr.bf16.mxu0 0
        %736 = vmatmul.mubr.bf16.gmra.mrb[0].mxu0 %v673
        %v737 = vpop.f32.mrb[0].mxu0
        %v738 = vadd.f32 0.0, %v737
        %v739 = vpop.f32.mrb[0].mxu0
        %v740 = vpop.f32.mrb[0].mxu0
        %v741 = vadd.f32 0.0, %v740
        %v742 = vpop.f32.mrb[0].mxu0
        %743 = vdwg.mxu0
        %v752 = vunpack.c.l.b16 %v634
        %v753 = vunpack.c.l.b16 %v635
        %v754 = vunpack.c.l.b16 %v636
        %v755 = vunpack.c.l.b16 %v637
        %v756 = vunpack.c.l.b16 %v638
        %v757 = vunpack.c.l.b16 %v639
        %v758 = vunpack.c.l.b16 %v640
        %v759 = vunpack.c.l.b16 %v641
        %v760 = vpack.c.b16 %v753, %v752
        %v761 = vpack.c.b16 %v755, %v754
        %v762 = vpack.c.b16 %v757, %v756
        %v763 = vpack.c.b16 %v759, %v758
        %vm768 = vcmask 523264
        %v770 = vsel %vm768, %v618, 0
        %v773 = vsel %vm768, %v619, 0
        %v776 = vsel %vm768, %v620, 0
        %v779 = vsel %vm768, %v621, 0
        %781 = vmatprep.subr.bf16.mxu0 0
        %782 = vmatpush1.bf16.msra.mxu0 %v760
        %783 = vmatprep.subr.bf16.mxu0 0
        %784 = vmatpush1.bf16.msra.mxu0 %v761
        %785 = vmatprep.subr.bf16.mxu0 0
        %786 = vmatpush1.bf16.msra.mxu0 %v762
        %787 = vmatprep.subr.bf16.mxu0 0
        %788 = vmatpush1.bf16.msra.mxu0 %v763
        %789 = vmatprep.subr.bf16.mxu0 0
        %790 = vmatpush1.bf16.msra.mxu0 0
        %791 = vmatprep.subr.bf16.mxu0 0
        %792 = vmatpush1.bf16.msra.mxu0 0
        %793 = vmatprep.subr.bf16.mxu0 0
        %794 = vmatpush1.bf16.msra.mxu0 0
        %795 = vmatprep.subr.bf16.mxu0 0
        %796 = vmatpush1.bf16.msra.mxu0 0
        %797 = vmatprep.subr.bf16.mxu0 0
        %798 = vmatpush1.bf16.msra.mxu0 0
        %799 = vmatprep.subr.bf16.mxu0 0
        %800 = vmatpush1.bf16.msra.mxu0 0
        %801 = vmatprep.subr.bf16.mxu0 0
        %802 = vmatpush1.bf16.msra.mxu0 0
        %803 = vmatprep.subr.bf16.mxu0 0
        %804 = vmatpush1.bf16.msra.mxu0 0
        %805 = vmatprep.subr.bf16.mxu0 0
        %806 = vmatpush1.bf16.msra.mxu0 0
        %807 = vmatprep.subr.bf16.mxu0 0
        %808 = vmatpush1.bf16.msra.mxu0 0
        %809 = vmatprep.subr.bf16.mxu0 0
        %810 = vmatpush1.bf16.msra.mxu0 0
        %811 = vmatprep.subr.bf16.mxu0 0
        %812 = vmatpush1.bf16.msra.mxu0 0
        %813 = vmatprep.mubr.bf16.mxu0 0
        %814 = vmatmul.mubr.bf16.gmra.mrb[0].mxu0 %v770
        %v815 = vpop.f32.mrb[0].mxu0
        %v816 = vadd.f32 %v714, %v815
        %v817 = vpop.f32.mrb[0].mxu0
        %v818 = vpop.f32.mrb[0].mxu0
        %v819 = vadd.f32 %v717, %v818
        %v820 = vpop.f32.mrb[0].mxu0
        %821 = vmatprep.mubr.bf16.mxu0 0
        %822 = vmatmul.mubr.bf16.gmra.mrb[0].mxu0 %v773
        %v823 = vpop.f32.mrb[0].mxu0
        %v824 = vadd.f32 %v722, %v823
        %v825 = vpop.f32.mrb[0].mxu0
        %v826 = vpop.f32.mrb[0].mxu0
        %v827 = vadd.f32 %v725, %v826
        %v828 = vpop.f32.mrb[0].mxu0
        %829 = vmatprep.mubr.bf16.mxu0 0
        %830 = vmatmul.mubr.bf16.gmra.mrb[0].mxu0 %v776
        %v831 = vpop.f32.mrb[0].mxu0
        %v832 = vadd.f32 %v730, %v831
        %v833 = vpop.f32.mrb[0].mxu0
        %v834 = vpop.f32.mrb[0].mxu0
        %v835 = vadd.f32 %v733, %v834
        %v836 = vpop.f32.mrb[0].mxu0
        %837 = vmatprep.mubr.bf16.mxu0 0
        %838 = vmatmul.mubr.bf16.gmra.mrb[0].mxu0 %v779
        %v839 = vpop.f32.mrb[0].mxu0
        %v840 = vadd.f32 %v738, %v839
        %v841 = vpop.f32.mrb[0].mxu0
        %v842 = vpop.f32.mrb[0].mxu0
        %v843 = vadd.f32 %v741, %v842
        %v844 = vpop.f32.mrb[0].mxu0
        %845 = vdwg.mxu0
        %v846 = vld [vmem:[#allocation14] sm:$0x1]
        %v847 = vlaneseq
        %v848 = vshrl.u32 %v847, 7
        %v849 = vsub.s32 0, %v848
        %v850 = vrot.slane %v846, %v849
        %v851 = vadd.f32 %v816, %v850
        %v852 = vadd.f32 %v819, %v850
        %v853 = vadd.f32 %v824, %v850
        %v854 = vadd.f32 %v827, %v850
        %v855 = vadd.f32 %v832, %v850
        %v856 = vadd.f32 %v835, %v850
        %v857 = vadd.f32 %v840, %v850
        %v858 = vadd.f32 %v843, %v850
        %v859 = vsel %vm768, %v851, 0.0
        %860 = vadd.xlane.f32.xlu0 %v859
        %v861 = vpop.xlane.xlu0 %860
        %v862 = vsel %vm768, %v852, 0.0
        %863 = vadd.xlane.f32.xlu0 %v862
        %v864 = vpop.xlane.xlu0 %863
        %v865 = vsel %vm768, %v853, 0.0
        %866 = vadd.xlane.f32.xlu0 %v865
        %v867 = vpop.xlane.xlu0 %866
        %v868 = vsel %vm768, %v854, 0.0
        %869 = vadd.xlane.f32.xlu0 %v868
        %v870 = vpop.xlane.xlu0 %869
        %v871 = vsel %vm768, %v855, 0.0
        %872 = vadd.xlane.f32.xlu0 %v871
        %v873 = vpop.xlane.xlu0 %872
        %v874 = vsel %vm768, %v856, 0.0
        %875 = vadd.xlane.f32.xlu0 %v874
        %v876 = vpop.xlane.xlu0 %875
        %v877 = vsel %vm768, %v857, 0.0
        %878 = vadd.xlane.f32.xlu0 %v877
        %v879 = vpop.xlane.xlu0 %878
        %v880 = vsel %vm768, %v858, 0.0
        %881 = vadd.xlane.f32.xlu0 %v880
        %v882 = vpop.xlane.xlu0 %881
        %v883 = vrcp.pop 64.0
        %v884 = vmul.f32 %v861, %v883
        %v885 = vmul.f32 %v864, %v883
        %v886 = vmul.f32 %v867, %v883
        %v887 = vmul.f32 %v870, %v883
        %v888 = vmul.f32 %v873, %v883
        %v889 = vmul.f32 %v876, %v883
        %v890 = vmul.f32 %v879, %v883
        %v891 = vmul.f32 %v882, %v883
        %v892 = vsub.f32 %v851, %v884
        %v893 = vsub.f32 %v852, %v885
        %v894 = vsub.f32 %v853, %v886
        %v895 = vsub.f32 %v854, %v887
        %v896 = vsub.f32 %v855, %v888
        %v897 = vsub.f32 %v856, %v889
        %v898 = vsub.f32 %v857, %v890
        %v899 = vsub.f32 %v858, %v891
        %v900 = vmul.f32 %v892, %v892
        %v901 = vmul.f32 %v893, %v893
        %v902 = vmul.f32 %v894, %v894
        %v903 = vmul.f32 %v895, %v895
        %v904 = vmul.f32 %v896, %v896
        %v905 = vmul.f32 %v897, %v897
        %v906 = vmul.f32 %v898, %v898
        %v907 = vmul.f32 %v899, %v899
        %v908 = vsel %vm768, %v900, 0.0
        %909 = vadd.xlane.f32.xlu0 %v908
        %v910 = vpop.xlane.xlu0 %909
        %v911 = vsel %vm768, %v901, 0.0
        %912 = vadd.xlane.f32.xlu0 %v911
        %v913 = vpop.xlane.xlu0 %912
        %v914 = vsel %vm768, %v902, 0.0
        %915 = vadd.xlane.f32.xlu0 %v914
        %v916 = vpop.xlane.xlu0 %915
        %v917 = vsel %vm768, %v903, 0.0
        %918 = vadd.xlane.f32.xlu0 %v917
        %v919 = vpop.xlane.xlu0 %918
        %v920 = vsel %vm768, %v904, 0.0
        %921 = vadd.xlane.f32.xlu0 %v920
        %v922 = vpop.xlane.xlu0 %921
        %v923 = vsel %vm768, %v905, 0.0
        %924 = vadd.xlane.f32.xlu0 %v923
        %v925 = vpop.xlane.xlu0 %924
        %v926 = vsel %vm768, %v906, 0.0
        %927 = vadd.xlane.f32.xlu0 %v926
        %v928 = vpop.xlane.xlu0 %927
        %v929 = vsel %vm768, %v907, 0.0
        %930 = vadd.xlane.f32.xlu0 %v929
        %v931 = vpop.xlane.xlu0 %930
        %v932 = vmul.f32 %v910, %v883
        %v933 = vmul.f32 %v913, %v883
        %v934 = vmul.f32 %v916, %v883
        %v935 = vmul.f32 %v919, %v883
        %v936 = vmul.f32 %v922, %v883
        %v937 = vmul.f32 %v925, %v883
        %v938 = vmul.f32 %v928, %v883
        %v939 = vmul.f32 %v931, %v883
        %v940 = vadd.f32 %v932, 1e-05
        %v941 = vadd.f32 %v933, 1e-05
        %v942 = vadd.f32 %v934, 1e-05
        %v943 = vadd.f32 %v935, 1e-05
        %v944 = vadd.f32 %v936, 1e-05
        %v945 = vadd.f32 %v937, 1e-05
        %v946 = vadd.f32 %v938, 1e-05
        %v947 = vadd.f32 %v939, 1e-05
        %v948 = vrsqrt.pop %v940
        %v949 = vrsqrt.pop %v941
        %v950 = vrsqrt.pop %v942
        %v951 = vrsqrt.pop %v943
        %v952 = vrsqrt.pop %v944
        %v953 = vrsqrt.pop %v945
        %v954 = vrsqrt.pop %v946
        %v955 = vrsqrt.pop %v947
        %v956 = vmul.f32 %v892, %v948
        %v957 = vmul.f32 %v893, %v949
        %v958 = vmul.f32 %v894, %v950
        %v959 = vmul.f32 %v895, %v951
        %v960 = vmul.f32 %v896, %v952
        %v961 = vmul.f32 %v897, %v953
        %v962 = vmul.f32 %v898, %v954
        %v963 = vmul.f32 %v899, %v955
        %v964 = vld [vmem:[#allocation11] sm:$0xff]
        %v965 = vld [vmem:[#allocation12] sm:$0xff]
        %967 = vset.pattern.permute.xlu0 0
        %968 = vperm.xlu0 %967, %v965
        %v969 = vpop.permute.xlu0 %968
        %v972 = vsel %vm768, %v964, 0
        %v975 = vsel %vm768, %v956, 0
        %v978 = vsel %vm768, %v957, 0
        %v981 = vsel %vm768, %v958, 0
        %v984 = vsel %vm768, %v959, 0
        %v987 = vsel %vm768, %v960, 0
        %v990 = vsel %vm768, %v961, 0
        %v993 = vsel %vm768, %v962, 0
        %v996 = vsel %vm768, %v963, 0
        %998 = vmatprep.subr.mxu0 0.0
        %999 = vmatpush1.xpose.msra.mxu0 %v975
        %1000 = vmatprep.subr.mxu0 0.0
        %1001 = vmatpush1.xpose.msra.mxu0 %v978
        %1002 = vmatprep.subr.mxu0 0.0
        %1003 = vmatpush1.xpose.msra.mxu0 %v981
        %1004 = vmatprep.subr.mxu0 0.0
        %1005 = vmatpush1.xpose.msra.mxu0 %v984
        %1006 = vmatprep.subr.mxu0 0.0
        %1007 = vmatpush1.xpose.msra.mxu0 %v987
        %1008 = vmatprep.subr.mxu0 0.0
        %1009 = vmatpush1.xpose.msra.mxu0 %v990
        %1010 = vmatprep.subr.mxu0 0.0
        %1011 = vmatpush1.xpose.msra.mxu0 %v993
        %1012 = vmatprep.subr.mxu0 0.0
        %1013 = vmatpush1.xpose.msra.mxu0 %v996
        %1014 = vmatprep.subr.mxu0 0.0
        %1015 = vmatpush1.xpose.msra.mxu0 0.0
        %1016 = vmatprep.subr.mxu0 0.0
        %1017 = vmatpush1.xpose.msra.mxu0 0.0
        %1018 = vmatprep.subr.mxu0 0.0
        %1019 = vmatpush1.xpose.msra.mxu0 0.0
        %1020 = vmatprep.subr.mxu0 0.0
        %1021 = vmatpush1.xpose.msra.mxu0 0.0
        %1022 = vmatprep.subr.mxu0 0.0
        %1023 = vmatpush1.xpose.msra.mxu0 0.0
        %1024 = vmatprep.subr.mxu0 0.0
        %1025 = vmatpush1.xpose.msra.mxu0 0.0
        %1026 = vmatprep.subr.mxu0 0.0
        %1027 = vmatpush1.xpose.msra.mxu0 0.0
        %1028 = vmatprep.subr.mxu0 0.0
        %1029 = vmatpush1.xpose.msra.mxu0 0.0
        %1030 = vmatprep.subr.mxu0 0.0
        %1031 = vmatpush1.xpose.msra.mxu0 0.0
        %1032 = vmatprep.subr.mxu0 0.0
        %1033 = vmatpush1.xpose.msra.mxu0 0.0
        %1034 = vmatprep.subr.mxu0 0.0
        %1035 = vmatpush1.xpose.msra.mxu0 0.0
        %1036 = vmatprep.subr.mxu0 0.0
        %1037 = vmatpush1.xpose.msra.mxu0 0.0
        %1038 = vmatprep.subr.mxu0 0.0
        %1039 = vmatpush1.xpose.msra.mxu0 0.0
        %1040 = vmatprep.subr.mxu0 0.0
        %1041 = vmatpush1.xpose.msra.mxu0 0.0
        %1042 = vmatprep.subr.mxu0 0.0
        %1043 = vmatpush1.xpose.msra.mxu0 0.0
        %1044 = vmatprep.subr.mxu0 0.0
        %1045 = vmatpush1.xpose.msra.mxu0 0.0
        %1046 = vmatprep.subr.mxu0 0.0
        %1047 = vmatpush1.xpose.msra.mxu0 0.0
        %1048 = vmatprep.subr.mxu0 0.0
        %1049 = vmatpush1.xpose.msra.mxu0 0.0
        %1050 = vmatprep.subr.mxu0 0.0
        %1051 = vmatpush1.xpose.msra.mxu0 0.0
        %1052 = vmatprep.subr.mxu0 0.0
        %1053 = vmatpush1.xpose.msra.mxu0 0.0
        %1054 = vmatprep.subr.mxu0 0.0
        %1055 = vmatpush1.xpose.msra.mxu0 0.0
        %1056 = vmatprep.subr.mxu0 0.0
        %1057 = vmatpush1.xpose.msra.mxu0 0.0
        %1058 = vmatprep.subr.mxu0 0.0
        %1059 = vmatpush1.xpose.msra.mxu0 0.0
        %1060 = vmatprep.subr.mxu0 0.0
        %1061 = vmatpush1.xpose.msra.mxu0 0.0
        %1062 = vmatprep.mubr.f32.mxu0 0.0
        %1063 = vmatmul.mubr.f32.gmra.mrb[0].mxu0 %v972
        %v1064 = vpop.f32.mrb[0].mxu0
        %v1065 = vadd.f32 %v969, %v1064
        %v1066 = vpop.f32.mrb[0].mxu0
        %1067 = vdwg.mxu0
        %1069 = vrot.lane.b32.xlu0 %v1065, 120
        %v1070 = vpop.permute.xlu0 %1069
        %1072 = vrot.lane.b32.xlu0 %v1065, 112
        %v1073 = vpop.permute.xlu0 %1072
        %1075 = vrot.lane.b32.xlu0 %v1065, 104
        %v1076 = vpop.permute.xlu0 %1075
        %1078 = vrot.lane.b32.xlu0 %v1065, 96
        %v1079 = vpop.permute.xlu0 %1078
        %1081 = vrot.lane.b32.xlu0 %v1065, 88
        %v1082 = vpop.permute.xlu0 %1081
        %1084 = vrot.lane.b32.xlu0 %v1065, 80
        %v1085 = vpop.permute.xlu0 %1084
        %1087 = vrot.lane.b32.xlu0 %v1065, 72
        %v1088 = vpop.permute.xlu0 %1087
        %v1090 = vcombine.low %v1065, %v1073
        %v1091 = vcombine.high %v1065, %v1073
        %v1093 = vunpack.c.l.s4 1983009808
        %v1094 = vunpack.c.0.s8 %v1093
        %v1095 = vlaneseq
        %v1096 = vshrl.u32 %v1095, 7
        %v1097 = vsub.s32 %v1094, %v1096
        %v1098 = vrot.slane %v1090, %v1097
        %v1100 = vunpack.c.l.s4 1983009808
        %v1101 = vunpack.c.0.s8 %v1100
        %v1102 = vlaneseq
        %v1103 = vshrl.u32 %v1102, 7
        %v1104 = vsub.s32 %v1101, %v1103
        %v1105 = vrot.slane %v1091, %v1104
        %v1106 = vcombine.low %v1070, %v1076
        %v1107 = vcombine.high %v1070, %v1076
        %v1109 = vunpack.c.l.s4 1983009808
        %v1110 = vunpack.c.0.s8 %v1109
        %v1111 = vlaneseq
        %v1112 = vshrl.u32 %v1111, 7
        %v1113 = vsub.s32 %v1110, %v1112
        %v1114 = vrot.slane %v1106, %v1113
        %v1116 = vunpack.c.l.s4 1983009808
        %v1117 = vunpack.c.0.s8 %v1116
        %v1118 = vlaneseq
        %v1119 = vshrl.u32 %v1118, 7
        %v1120 = vsub.s32 %v1117, %v1119
        %v1121 = vrot.slane %v1107, %v1120
        %v1122 = vcombine.low %v1079, %v1085
        %v1123 = vcombine.high %v1079, %v1085
        %v1125 = vunpack.c.l.s4 1983009808
        %v1126 = vunpack.c.0.s8 %v1125
        %v1127 = vlaneseq
        %v1128 = vshrl.u32 %v1127, 7
        %v1129 = vsub.s32 %v1126, %v1128
        %v1130 = vrot.slane %v1122, %v1129
        %v1132 = vunpack.c.l.s4 1983009808
        %v1133 = vunpack.c.0.s8 %v1132
        %v1134 = vlaneseq
        %v1135 = vshrl.u32 %v1134, 7
        %v1136 = vsub.s32 %v1133, %v1135
        %v1137 = vrot.slane %v1123, %v1136
        %v1138 = vcombine.low %v1082, %v1088
        %v1139 = vcombine.high %v1082, %v1088
        %v1141 = vunpack.c.l.s4 1983009808
        %v1142 = vunpack.c.0.s8 %v1141
        %v1143 = vlaneseq
        %v1144 = vshrl.u32 %v1143, 7
        %v1145 = vsub.s32 %v1142, %v1144
        %v1146 = vrot.slane %v1138, %v1145
        %v1148 = vunpack.c.l.s4 1983009808
        %v1149 = vunpack.c.0.s8 %v1148
        %v1150 = vlaneseq
        %v1151 = vshrl.u32 %v1150, 7
        %v1152 = vsub.s32 %v1149, %v1151
        %v1153 = vrot.slane %v1139, %v1152
        %v1154 = vcombine.low %v1098, %v1114
        %v1155 = vcombine.high %v1098, %v1114
        %v1157 = vunpack.c.l.s4 1934713408
        %v1158 = vunpack.c.0.s8 %v1157
        %v1159 = vlaneseq
        %v1160 = vshrl.u32 %v1159, 7
        %v1161 = vsub.s32 %v1158, %v1160
        %v1162 = vrot.slane %v1154, %v1161
        %v1164 = vunpack.c.l.s4 1934713408
        %v1165 = vunpack.c.0.s8 %v1164
        %v1166 = vlaneseq
        %v1167 = vshrl.u32 %v1166, 7
        %v1168 = vsub.s32 %v1165, %v1167
        %v1169 = vrot.slane %v1155, %v1168
        %v1170 = vcombine.low %v1105, %v1121
        %v1171 = vcombine.high %v1105, %v1121
        %v1173 = vunpack.c.l.s4 1934713408
        %v1174 = vunpack.c.0.s8 %v1173
        %v1175 = vlaneseq
        %v1176 = vshrl.u32 %v1175, 7
        %v1177 = vsub.s32 %v1174, %v1176
        %v1178 = vrot.slane %v1170, %v1177
        %v1180 = vunpack.c.l.s4 1934713408
        %v1181 = vunpack.c.0.s8 %v1180
        %v1182 = vlaneseq
        %v1183 = vshrl.u32 %v1182, 7
        %v1184 = vsub.s32 %v1181, %v1183
        %v1185 = vrot.slane %v1171, %v1184
        %v1186 = vcombine.low %v1130, %v1146
        %v1187 = vcombine.high %v1130, %v1146
        %v1189 = vunpack.c.l.s4 1934713408
        %v1190 = vunpack.c.0.s8 %v1189
        %v1191 = vlaneseq
        %v1192 = vshrl.u32 %v1191, 7
        %v1193 = vsub.s32 %v1190, %v1192
        %v1194 = vrot.slane %v1186, %v1193
        %v1196 = vunpack.c.l.s4 1934713408
        %v1197 = vunpack.c.0.s8 %v1196
        %v1198 = vlaneseq
        %v1199 = vshrl.u32 %v1198, 7
        %v1200 = vsub.s32 %v1197, %v1199
        %v1201 = vrot.slane %v1187, %v1200
        %v1202 = vcombine.low %v1137, %v1153
        %v1203 = vcombine.high %v1137, %v1153
        %v1205 = vunpack.c.l.s4 1934713408
        %v1206 = vunpack.c.0.s8 %v1205
        %v1207 = vlaneseq
        %v1208 = vshrl.u32 %v1207, 7
        %v1209 = vsub.s32 %v1206, %v1208
        %v1210 = vrot.slane %v1202, %v1209
        %v1212 = vunpack.c.l.s4 1934713408
        %v1213 = vunpack.c.0.s8 %v1212
        %v1214 = vlaneseq
        %v1215 = vshrl.u32 %v1214, 7
        %v1216 = vsub.s32 %v1213, %v1215
        %v1217 = vrot.slane %v1203, %v1216
        %v1218 = vcombine.low %v1162, %v1194
        %v1219 = vcombine.high %v1162, %v1194
        %v1220 = vcombine.low %v1169, %v1201
        %v1221 = vcombine.high %v1169, %v1201
        %v1222 = vcombine.low %v1178, %v1210
        %v1223 = vcombine.high %v1178, %v1210
        %v1224 = vcombine.low %v1185, %v1217
        %v1225 = vcombine.high %v1185, %v1217
        %v1226 = vpack.c.bf16 %v1218, %v1218
        %v1227 = vpack.c.bf16 %v1219, %v1219
        %v1228 = vpack.c.bf16 %v1220, %v1220
        %v1229 = vpack.c.bf16 %v1221, %v1221
        %v1230 = vpack.c.bf16 %v1222, %v1222
        %v1231 = vpack.c.bf16 %v1223, %v1223
        %v1232 = vpack.c.bf16 %v1224, %v1224
        %v1233 = vpack.c.bf16 %v1225, %v1225
        %s1234 = smul.addr %s40, 4
        %s1235 = scalar_lea.vmem [#allocation2], %s1234
        %vm1236 = vcmask 60416
        %1237 = vst.msk [vmem:[%s1235] sm:$0xf] %vm1236, %v1226
        %s1238 = sadd.s32 %s40, 1
        %s1239 = smul.addr %s1238, 4
        %s1240 = scalar_lea.vmem [#allocation2], %s1239
        %1241 = vst.msk [vmem:[%s1240] sm:$0xf] %vm1236, %v1227
        %s1242 = sadd.s32 %s40, 2
        %s1243 = smul.addr %s1242, 4
        %s1244 = scalar_lea.vmem [#allocation2], %s1243
        %1245 = vst.msk [vmem:[%s1244] sm:$0xf] %vm1236, %v1228
        %s1246 = sadd.s32 %s40, 3
        %s1247 = smul.addr %s1246, 4
        %s1248 = scalar_lea.vmem [#allocation2], %s1247
        %1249 = vst.msk [vmem:[%s1248] sm:$0xf] %vm1236, %v1229
        %s1250 = sadd.s32 %s40, 4
        %s1251 = smul.addr %s1250, 4
        %s1252 = scalar_lea.vmem [#allocation2], %s1251
        %1253 = vst.msk [vmem:[%s1252] sm:$0xf] %vm1236, %v1230
        %s1254 = sadd.s32 %s40, 5
        %s1255 = smul.addr %s1254, 4
        %s1256 = scalar_lea.vmem [#allocation2], %s1255
        %1257 = vst.msk [vmem:[%s1256] sm:$0xf] %vm1236, %v1231
        %s1258 = sadd.s32 %s40, 6
        %s1259 = smul.addr %s1258, 4
        %s1260 = scalar_lea.vmem [#allocation2], %s1259
        %1261 = vst.msk [vmem:[%s1260] sm:$0xf] %vm1236, %v1232
        %s1262 = sadd.s32 %s40, 7
        %s1263 = smul.addr %s1262, 4
        %s1264 = scalar_lea.vmem [#allocation2], %s1263
        %1265 = vst.msk [vmem:[%s1264] sm:$0xf] %vm1236, %v1233
        %p1266 = scmp.eq.s32.totalorder %s40, 0
        // Predicated region
        $region109: #{tpu_custom_call.1} parent=63 // pred_check
          %p1267 = pneg %p1266
        $region110: #{tpu_custom_call.1} parent=63 // pred_check_branch
          %1269 = sbr.rel (%p1267) target = $region112
        $region111: #{tpu_custom_call.1} parent=63 // pred_region
          %v1270 = vld [vmem:[%s508] sm:$0xff]
          %v1271 = vld [vmem:[#allocation15] sm:$0x1]
          %v1272 = vld [vmem:[#allocation15 + $0x1] sm:$0x1]
          %v1273 = vsel %vm768, %v1270, 0.0
          %1274 = vadd.xlane.f32.xlu0 %v1273
          %v1275 = vpop.xlane.xlu0 %1274
          %v1276 = vmul.f32 %v1275, %v883
          %v1277 = vsub.f32 %v1270, %v1276
          %v1278 = vmul.f32 %v1277, %v1277
          %v1279 = vsel %vm768, %v1278, 0.0
          %1280 = vadd.xlane.f32.xlu0 %v1279
          %v1281 = vpop.xlane.xlu0 %1280
          %v1282 = vmul.f32 %v1281, %v883
          %v1283 = vadd.f32 %v1282, 1e-05
          %v1284 = vrsqrt.pop %v1283
          %v1285 = vmul.f32 %v1277, %v1284
          %v1286 = vlaneseq
          %v1287 = vshrl.u32 %v1286, 7
          %v1288 = vsub.s32 0, %v1287
          %v1289 = vrot.slane %v1271, %v1288
          %v1290 = vmul.f32 %v1285, %v1289
          %v1291 = vlaneseq
          %v1292 = vshrl.u32 %v1291, 7
          %v1293 = vsub.s32 0, %v1292
          %v1294 = vrot.slane %v1272, %v1293
          %v1295 = vadd.f32 %v1290, %v1294
          %v1296 = vpack.c.bf16 %v1295, %v1295
          %v1297 = vld [vmem:[#allocation18] sm:$0xff]
          %v1298 = vld [vmem:[#allocation18 + $0x8] sm:$0xff]
          %v1299 = vld [vmem:[#allocation18 + $0x10] sm:$0xff]
          %v1300 = vld [vmem:[#allocation18 + $0x18] sm:$0xff]
          %v1301 = vld [vmem:[#allocation18 + $0x20] sm:$0xff]
          %v1302 = vld [vmem:[#allocation18 + $0x28] sm:$0xff]
          %v1303 = vld [vmem:[#allocation18 + $0x30] sm:$0xff]
          %v1304 = vld [vmem:[#allocation18 + $0x38] sm:$0xff]
          %v1313 = vunpack.c.l.b16 %v1297
          %v1314 = vunpack.c.h.b16 %v1297
          %v1315 = vunpack.c.l.b16 %v1298
          %v1316 = vunpack.c.h.b16 %v1298
          %v1317 = vunpack.c.l.b16 %v1299
          %v1318 = vunpack.c.h.b16 %v1299
          %v1319 = vunpack.c.l.b16 %v1300
          %v1320 = vunpack.c.h.b16 %v1300
          %v1321 = vunpack.c.l.b16 %v1301
          %v1322 = vunpack.c.h.b16 %v1301
          %v1323 = vunpack.c.l.b16 %v1302
          %v1324 = vunpack.c.h.b16 %v1302
          %v1325 = vunpack.c.l.b16 %v1303
          %v1326 = vunpack.c.h.b16 %v1303
          %v1327 = vunpack.c.l.b16 %v1304
          %v1328 = vunpack.c.h.b16 %v1304
          %v1329 = vpack.c.b16 %v1315, %v1313
          %v1330 = vpack.c.b16 %v1316, %v1314
          %v1331 = vpack.c.b16 %v1319, %v1317
          %v1332 = vpack.c.b16 %v1320, %v1318
          %v1333 = vpack.c.b16 %v1323, %v1321
          %v1334 = vpack.c.b16 %v1324, %v1322
          %v1335 = vpack.c.b16 %v1327, %v1325
          %v1336 = vpack.c.b16 %v1328, %v1326
          %v1346 = vsel %vm768, %v1296, 0
          %1348 = vmatprep.subr.bf16.mxu0 %v1330
          %1349 = vmatpush1.bf16.msra.mxu0 %v1329
          %1350 = vmatprep.subr.bf16.mxu0 %v1332
          %1351 = vmatpush1.bf16.msra.mxu0 %v1331
          %1352 = vmatprep.subr.bf16.mxu0 %v1334
          %1353 = vmatpush1.bf16.msra.mxu0 %v1333
          %1354 = vmatprep.subr.bf16.mxu0 %v1336
          %1355 = vmatpush1.bf16.msra.mxu0 %v1335
          %1356 = vmatprep.subr.bf16.mxu0 0
          %1357 = vmatpush1.bf16.msra.mxu0 0
          %1358 = vmatprep.subr.bf16.mxu0 0
          %1359 = vmatpush1.bf16.msra.mxu0 0
          %1360 = vmatprep.subr.bf16.mxu0 0
          %1361 = vmatpush1.bf16.msra.mxu0 0
          %1362 = vmatprep.subr.bf16.mxu0 0
          %1363 = vmatpush1.bf16.msra.mxu0 0
          %1364 = vmatprep.subr.bf16.mxu0 0
          %1365 = vmatpush1.bf16.msra.mxu0 0
          %1366 = vmatprep.subr.bf16.mxu0 0
          %1367 = vmatpush1.bf16.msra.mxu0 0
          %1368 = vmatprep.subr.bf16.mxu0 0
          %1369 = vmatpush1.bf16.msra.mxu0 0
          %1370 = vmatprep.subr.bf16.mxu0 0
          %1371 = vmatpush1.bf16.msra.mxu0 0
          %1372 = vmatprep.subr.bf16.mxu0 0
          %1373 = vmatpush1.bf16.msra.mxu0 0
          %1374 = vmatprep.subr.bf16.mxu0 0
          %1375 = vmatpush1.bf16.msra.mxu0 0
          %1376 = vmatprep.subr.bf16.mxu0 0
          %1377 = vmatpush1.bf16.msra.mxu0 0
          %1378 = vmatprep.subr.bf16.mxu0 0
          %1379 = vmatpush1.bf16.msra.mxu0 0
          %1380 = vmatprep.mubr.bf16.mxu0 0
          %1381 = vmatmul.mubr.bf16.gmra.mrb[0].mxu0 %v1346
          %v1382 = vpop.f32.mrb[0].mxu0
          %v1383 = vadd.f32 0.0, %v1382
          %v1384 = vpop.f32.mrb[0].mxu0
          %v1385 = vadd.f32 0.0, %v1384
          %v1386 = vpop.f32.mrb[0].mxu0
          %v1387 = vpop.f32.mrb[0].mxu0
          %1388 = vdwg.mxu0
          %v1389 = vmul.f32 %v1383, 0.25
          %v1390 = vpack.c.bf16 %v1385, %v1385
          %v1391 = vld [vmem:[#allocation15 + $0x2] sm:$0x1]
          %v1392 = vlaneseq
          %v1393 = vshrl.u32 %v1392, 7
          %v1394 = vsub.s32 0, %v1393
          %v1395 = vrot.slane %v1391, %v1394
          %1397 = vrot.lane.b32.xlu0 %v1395, 64
          %v1398 = vpop.permute.xlu0 %1397
          %v1400 = vadd.f32 %v1385, %v1398
          %v1401 = vxor.u32 %v1400, 2147483648
          %v1402 = vmul.f32 %v1401, 1.442695
          %v1403 = vpow.pop %v1402
          %v1404 = vadd.f32 %v1403, 1.0
          %v1405 = vrcp.pop %v1404
          %v1406 = vmul.f32 1.0, %v1405
          %v1407 = vld [vmem:[#allocation2] sm:$0xf]
          %v1408 = vunpack.c.l.bf16 %v1407
          %1410 = vrot.lane.b32.xlu0 %v1389, 64
          %v1411 = vpop.permute.xlu0 %1410
          %vm1412 = vcmask 130048
          %v1414 = vsel %vm1412, %v1383, 0
          %v1416 = vsel %vm1412, %v1411, 0
          %1418 = vmatprep.subr.mxu0 0.0
          %1419 = vmatpush1.xpose.msra.mxu0 %v1416
          %1420 = vmatprep.subr.mxu0 0.0
          %1421 = vmatpush1.xpose.msra.mxu0 0.0
          %1422 = vmatprep.subr.mxu0 0.0
          %1423 = vmatpush1.xpose.msra.mxu0 0.0
          %1424 = vmatprep.subr.mxu0 0.0
          %1425 = vmatpush1.xpose.msra.mxu0 0.0
          %1426 = vmatprep.subr.mxu0 0.0
          %1427 = vmatpush1.xpose.msra.mxu0 0.0
          %1428 = vmatprep.subr.mxu0 0.0
          %1429 = vmatpush1.xpose.msra.mxu0 0.0
          %1430 = vmatprep.subr.mxu0 0.0
          %1431 = vmatpush1.xpose.msra.mxu0 0.0
          %1432 = vmatprep.subr.mxu0 0.0
          %1433 = vmatpush1.xpose.msra.mxu0 0.0
          %1434 = vmatprep.subr.mxu0 0.0
          %1435 = vmatpush1.xpose.msra.mxu0 0.0
          %1436 = vmatprep.subr.mxu0 0.0
          %1437 = vmatpush1.xpose.msra.mxu0 0.0
          %1438 = vmatprep.subr.mxu0 0.0
          %1439 = vmatpush1.xpose.msra.mxu0 0.0
          %1440 = vmatprep.subr.mxu0 0.0
          %1441 = vmatpush1.xpose.msra.mxu0 0.0
          %1442 = vmatprep.subr.mxu0 0.0
          %1443 = vmatpush1.xpose.msra.mxu0 0.0
          %1444 = vmatprep.subr.mxu0 0.0
          %1445 = vmatpush1.xpose.msra.mxu0 0.0
          %1446 = vmatprep.subr.mxu0 0.0
          %1447 = vmatpush1.xpose.msra.mxu0 0.0
          %1448 = vmatprep.subr.mxu0 0.0
          %1449 = vmatpush1.xpose.msra.mxu0 0.0
          %1450 = vmatprep.subr.mxu0 0.0
          %1451 = vmatpush1.xpose.msra.mxu0 0.0
          %1452 = vmatprep.subr.mxu0 0.0
          %1453 = vmatpush1.xpose.msra.mxu0 0.0
          %1454 = vmatprep.subr.mxu0 0.0
          %1455 = vmatpush1.xpose.msra.mxu0 0.0
          %1456 = vmatprep.subr.mxu0 0.0
          %1457 = vmatpush1.xpose.msra.mxu0 0.0
          %1458 = vmatprep.subr.mxu0 0.0
          %1459 = vmatpush1.xpose.msra.mxu0 0.0
          %1460 = vmatprep.subr.mxu0 0.0
          %1461 = vmatpush1.xpose.msra.mxu0 0.0
          %1462 = vmatprep.subr.mxu0 0.0
          %1463 = vmatpush1.xpose.msra.mxu0 0.0
          %1464 = vmatprep.subr.mxu0 0.0
          %1465 = vmatpush1.xpose.msra.mxu0 0.0
          %1466 = vmatprep.subr.mxu0 0.0
          %1467 = vmatpush1.xpose.msra.mxu0 0.0
          %1468 = vmatprep.subr.mxu0 0.0
          %1469 = vmatpush1.xpose.msra.mxu0 0.0
          %1470 = vmatprep.subr.mxu0 0.0
          %1471 = vmatpush1.xpose.msra.mxu0 0.0
          %1472 = vmatprep.subr.mxu0 0.0
          %1473 = vmatpush1.xpose.msra.mxu0 0.0
          %1474 = vmatprep.subr.mxu0 0.0
          %1475 = vmatpush1.xpose.msra.mxu0 0.0
          %1476 = vmatprep.subr.mxu0 0.0
          %1477 = vmatpush1.xpose.msra.mxu0 0.0
          %1478 = vmatprep.subr.mxu0 0.0
          %1479 = vmatpush1.xpose.msra.mxu0 0.0
          %1480 = vmatprep.subr.mxu0 0.0
          %1481 = vmatpush1.xpose.msra.mxu0 0.0
          %1482 = vmatprep.mubr.f32.mxu0 0.0
          %1483 = vmatmul.mubr.f32.gmra.mrb[0].mxu0 %v1414
          %v1484 = vpop.f32.mrb[0].mxu0
          %v1485 = vadd.f32 %v1408, %v1484
          %v1486 = vpop.f32.mrb[0].mxu0
          %1487 = vdwg.mxu0
          %vm1488 = vcmask 64512
          %v1489 = vsel %vm1488, %v1485, -inf
          %1490 = vmax.xlane.f32.xlu0 %v1489
          %v1491 = vpop.xlane.xlu0 %1490
          %v1492 = vsub.f32 %v1485, %v1491
          %v1493 = vmul.f32 %v1492, 1.442695
          %v1494 = vpow.pop %v1493
          %v1495 = vsel %vm1488, %v1494, 0.0
          %1496 = vadd.xlane.f32.xlu0 %v1495
          %v1497 = vpop.xlane.xlu0 %1496
          %v1498 = vrcp.pop %v1497
          %v1499 = vmul.f32 %v1494, %v1498
          %v1500 = vpack.c.bf16 %v1499, %v1499
          %v1502 = vsel %vm1488, %v1500, 0
          %vm1504 = vcmask 1043456
          %v1506 = vsel %vm1504, %v1390, 0
          %1508 = vmatprep.subr.bf16.mxu0 0
          %1509 = vmatpush1.bf16.msra.mxu0 %v1506
          %1510 = vmatprep.subr.bf16.mxu0 0
          %1511 = vmatpush1.bf16.msra.mxu0 0
          %1512 = vmatprep.subr.bf16.mxu0 0
          %1513 = vmatpush1.bf16.msra.mxu0 0
          %1514 = vmatprep.subr.bf16.mxu0 0
          %1515 = vmatpush1.bf16.msra.mxu0 0
          %1516 = vmatprep.subr.bf16.mxu0 0
          %1517 = vmatpush1.bf16.msra.mxu0 0
          %1518 = vmatprep.subr.bf16.mxu0 0
          %1519 = vmatpush1.bf16.msra.mxu0 0
          %1520 = vmatprep.subr.bf16.mxu0 0
          %1521 = vmatpush1.bf16.msra.mxu0 0
          %1522 = vmatprep.subr.bf16.mxu0 0
          %1523 = vmatpush1.bf16.msra.mxu0 0
          %1524 = vmatprep.subr.bf16.mxu0 0
          %1525 = vmatpush1.bf16.msra.mxu0 0
          %1526 = vmatprep.subr.bf16.mxu0 0
          %1527 = vmatpush1.bf16.msra.mxu0 0
          %1528 = vmatprep.subr.bf16.mxu0 0
          %1529 = vmatpush1.bf16.msra.mxu0 0
          %1530 = vmatprep.subr.bf16.mxu0 0
          %1531 = vmatpush1.bf16.msra.mxu0 0
          %1532 = vmatprep.subr.bf16.mxu0 0
          %1533 = vmatpush1.bf16.msra.mxu0 0
          %1534 = vmatprep.subr.bf16.mxu0 0
          %1535 = vmatpush1.bf16.msra.mxu0 0
          %1536 = vmatprep.subr.bf16.mxu0 0
          %1537 = vmatpush1.bf16.msra.mxu0 0
          %1538 = vmatprep.subr.bf16.mxu0 0
          %1539 = vmatpush1.bf16.msra.mxu0 0
          %1540 = vmatprep.mubr.bf16.mxu0 0
          %1541 = vmatmul.mubr.bf16.gmra.mrb[0].mxu0 %v1502
          %v1542 = vpop.f32.mrb[0].mxu0
          %v1543 = vadd.f32 0.0, %v1542
          %v1544 = vpop.f32.mrb[0].mxu0
          %v1545 = vpop.f32.mrb[0].mxu0
          %v1546 = vpop.f32.mrb[0].mxu0
          %1547 = vdwg.mxu0
          %1549 = vrot.lane.b32.xlu0 %v1543, 64
          %v1550 = vpop.permute.xlu0 %1549
          %v1552 = vmul.f32 %v1406, %v1550
          %v1553 = vpack.c.bf16 %v1552, %v1552
          %v1554 = vld [vmem:[#allocation20] sm:$0xf]
          %v1555 = vld [vmem:[#allocation20 + $0x4] sm:$0xf]
          %s1556 = scalar_lea.vmem [#allocation2], 4
          %v1557 = vld [vmem:[%s1556] sm:$0xf]
          %v1558 = vunpack.c.l.bf16 %v1557
          %1559 = vrot.lane.b32.xlu0 %v1383, 112
          %v1560 = vpop.permute.xlu0 %1559
          %1561 = vrot.lane.b32.xlu0 %v1389, 48
          %v1562 = vpop.permute.xlu0 %1561
          %v1563 = vsel %vm1412, %v1560, 0
          %v1565 = vsel %vm1412, %v1562, 0
          %1567 = vmatprep.subr.mxu0 0.0
          %1568 = vmatpush1.xpose.msra.mxu0 %v1565
          %1569 = vmatprep.subr.mxu0 0.0
          %1570 = vmatpush1.xpose.msra.mxu0 0.0
          %1571 = vmatprep.subr.mxu0 0.0
          %1572 = vmatpush1.xpose.msra.mxu0 0.0
          %1573 = vmatprep.subr.mxu0 0.0
          %1574 = vmatpush1.xpose.msra.mxu0 0.0
          %1575 = vmatprep.subr.mxu0 0.0
          %1576 = vmatpush1.xpose.msra.mxu0 0.0
          %1577 = vmatprep.subr.mxu0 0.0
          %1578 = vmatpush1.xpose.msra.mxu0 0.0
          %1579 = vmatprep.subr.mxu0 0.0
          %1580 = vmatpush1.xpose.msra.mxu0 0.0
          %1581 = vmatprep.subr.mxu0 0.0
          %1582 = vmatpush1.xpose.msra.mxu0 0.0
          %1583 = vmatprep.subr.mxu0 0.0
          %1584 = vmatpush1.xpose.msra.mxu0 0.0
          %1585 = vmatprep.subr.mxu0 0.0
          %1586 = vmatpush1.xpose.msra.mxu0 0.0
          %1587 = vmatprep.subr.mxu0 0.0
          %1588 = vmatpush1.xpose.msra.mxu0 0.0
          %1589 = vmatprep.subr.mxu0 0.0
          %1590 = vmatpush1.xpose.msra.mxu0 0.0
          %1591 = vmatprep.subr.mxu0 0.0
          %1592 = vmatpush1.xpose.msra.mxu0 0.0
          %1593 = vmatprep.subr.mxu0 0.0
          %1594 = vmatpush1.xpose.msra.mxu0 0.0
          %1595 = vmatprep.subr.mxu0 0.0
          %1596 = vmatpush1.xpose.msra.mxu0 0.0
          %1597 = vmatprep.subr.mxu0 0.0
          %1598 = vmatpush1.xpose.msra.mxu0 0.0
          %1599 = vmatprep.subr.mxu0 0.0
          %1600 = vmatpush1.xpose.msra.mxu0 0.0
          %1601 = vmatprep.subr.mxu0 0.0
          %1602 = vmatpush1.xpose.msra.mxu0 0.0
          %1603 = vmatprep.subr.mxu0 0.0
          %1604 = vmatpush1.xpose.msra.mxu0 0.0
          %1605 = vmatprep.subr.mxu0 0.0
          %1606 = vmatpush1.xpose.msra.mxu0 0.0
          %1607 = vmatprep.subr.mxu0 0.0
          %1608 = vmatpush1.xpose.msra.mxu0 0.0
          %1609 = vmatprep.subr.mxu0 0.0
          %1610 = vmatpush1.xpose.msra.mxu0 0.0
          %1611 = vmatprep.subr.mxu0 0.0
          %1612 = vmatpush1.xpose.msra.mxu0 0.0
          %1613 = vmatprep.subr.mxu0 0.0
          %1614 = vmatpush1.xpose.msra.mxu0 0.0
          %1615 = vmatprep.subr.mxu0 0.0
          %1616 = vmatpush1.xpose.msra.mxu0 0.0
          %1617 = vmatprep.subr.mxu0 0.0
          %1618 = vmatpush1.xpose.msra.mxu0 0.0
          %1619 = vmatprep.subr.mxu0 0.0
          %1620 = vmatpush1.xpose.msra.mxu0 0.0
          %1621 = vmatprep.subr.mxu0 0.0
          %1622 = vmatpush1.xpose.msra.mxu0 0.0
          %1623 = vmatprep.subr.mxu0 0.0
          %1624 = vmatpush1.xpose.msra.mxu0 0.0
          %1625 = vmatprep.subr.mxu0 0.0
          %1626 = vmatpush1.xpose.msra.mxu0 0.0
          %1627 = vmatprep.subr.mxu0 0.0
          %1628 = vmatpush1.xpose.msra.mxu0 0.0
          %1629 = vmatprep.subr.mxu0 0.0
          %1630 = vmatpush1.xpose.msra.mxu0 0.0
          %1631 = vmatprep.mubr.f32.mxu0 0.0
          %1632 = vmatmul.mubr.f32.gmra.mrb[0].mxu0 %v1563
          %v1633 = vpop.f32.mrb[0].mxu0
          %v1634 = vadd.f32 %v1558, %v1633
          %v1635 = vpop.f32.mrb[0].mxu0
          %1636 = vdwg.mxu0
          %v1637 = vsel %vm1488, %v1634, -inf
          %1638 = vmax.xlane.f32.xlu0 %v1637
          %v1639 = vpop.xlane.xlu0 %1638
          %v1640 = vsub.f32 %v1634, %v1639
          %v1641 = vmul.f32 %v1640, 1.442695
          %v1642 = vpow.pop %v1641
          %v1643 = vsel %vm1488, %v1642, 0.0
          %1644 = vadd.xlane.f32.xlu0 %v1643
          %v1645 = vpop.xlane.xlu0 %1644
          %v1646 = vrcp.pop %v1645
          %v1647 = vmul.f32 %v1642, %v1646
          %v1648 = vpack.c.bf16 %v1647, %v1647
          %1650 = vrot.lane.b32.xlu0 %v1390, 112
          %v1651 = vpop.permute.xlu0 %1650
          %v1653 = vsel %vm1488, %v1648, 0
          %v1656 = vsel %vm1504, %v1651, 0
          %1658 = vmatprep.subr.bf16.mxu0 0
          %1659 = vmatpush1.bf16.msra.mxu0 %v1656
          %1660 = vmatprep.subr.bf16.mxu0 0
          %1661 = vmatpush1.bf16.msra.mxu0 0
          %1662 = vmatprep.subr.bf16.mxu0 0
          %1663 = vmatpush1.bf16.msra.mxu0 0
          %1664 = vmatprep.subr.bf16.mxu0 0
          %1665 = vmatpush1.bf16.msra.mxu0 0
          %1666 = vmatprep.subr.bf16.mxu0 0
          %1667 = vmatpush1.bf16.msra.mxu0 0
          %1668 = vmatprep.subr.bf16.mxu0 0
          %1669 = vmatpush1.bf16.msra.mxu0 0
          %1670 = vmatprep.subr.bf16.mxu0 0
          %1671 = vmatpush1.bf16.msra.mxu0 0
          %1672 = vmatprep.subr.bf16.mxu0 0
          %1673 = vmatpush1.bf16.msra.mxu0 0
          %1674 = vmatprep.subr.bf16.mxu0 0
          %1675 = vmatpush1.bf16.msra.mxu0 0
          %1676 = vmatprep.subr.bf16.mxu0 0
          %1677 = vmatpush1.bf16.msra.mxu0 0
          %1678 = vmatprep.subr.bf16.mxu0 0
          %1679 = vmatpush1.bf16.msra.mxu0 0
          %1680 = vmatprep.subr.bf16.mxu0 0
          %1681 = vmatpush1.bf16.msra.mxu0 0
          %1682 = vmatprep.subr.bf16.mxu0 0
          %1683 = vmatpush1.bf16.msra.mxu0 0
          %1684 = vmatprep.subr.bf16.mxu0 0
          %1685 = vmatpush1.bf16.msra.mxu0 0
          %1686 = vmatprep.subr.bf16.mxu0 0
          %1687 = vmatpush1.bf16.msra.mxu0 0
          %1688 = vmatprep.subr.bf16.mxu0 0
          %1689 = vmatpush1.bf16.msra.mxu0 0
          %1690 = vmatprep.mubr.bf16.mxu0 0
          %1691 = vmatmul.mubr.bf16.gmra.mrb[0].mxu0 %v1653
          %v1692 = vpop.f32.mrb[0].mxu0
          %v1693 = vadd.f32 0.0, %v1692
          %v1694 = vpop.f32.mrb[0].mxu0
          %v1695 = vpop.f32.mrb[0].mxu0
          %v1696 = vpop.f32.mrb[0].mxu0
          %1697 = vdwg.mxu0
          %1699 = vrot.lane.b32.xlu0 %v1693, 80
          %v1700 = vpop.permute.xlu0 %1699
          %v1702 = vmul.f32 %v1406, %v1700
          %v1703 = vpack.c.bf16 %v1702, %v1702
          %v1704 = vld [vmem:[#allocation20 + $0x8] sm:$0xf]
          %v1705 = vld [vmem:[#allocation20 + $0xc] sm:$0xf]
          %1707 = vrot.lane.b32.xlu0 %v1703, 48
          %v1708 = vpop.permute.xlu0 %1707
          %v1711 = vunpack.c.l.b16 %v1704
          %v1712 = vunpack.c.l.b16 %v1705
          %v1713 = vpack.c.b16 %v1712, %v1711
          %v1716 = vsel %vm1412, %v1708, 0
          %1718 = vmatprep.subr.bf16.mxu0 0
          %1719 = vmatpush1.bf16.msra.mxu0 %v1713
          %1720 = vmatprep.subr.bf16.mxu0 0
          %1721 = vmatpush1.bf16.msra.mxu0 0
          %1722 = vmatprep.subr.bf16.mxu0 0
          %1723 = vmatpush1.bf16.msra.mxu0 0
          %1724 = vmatprep.subr.bf16.mxu0 0
          %1725 = vmatpush1.bf16.msra.mxu0 0
          %1726 = vmatprep.subr.bf16.mxu0 0
          %1727 = vmatpush1.bf16.msra.mxu0 0
          %1728 = vmatprep.subr.bf16.mxu0 0
          %1729 = vmatpush1.bf16.msra.mxu0 0
          %1730 = vmatprep.subr.bf16.mxu0 0
          %1731 = vmatpush1.bf16.msra.mxu0 0
          %1732 = vmatprep.subr.bf16.mxu0 0
          %1733 = vmatpush1.bf16.msra.mxu0 0
          %1734 = vmatprep.subr.bf16.mxu0 0
          %1735 = vmatpush1.bf16.msra.mxu0 0
          %1736 = vmatprep.subr.bf16.mxu0 0
          %1737 = vmatpush1.bf16.msra.mxu0 0
          %1738 = vmatprep.subr.bf16.mxu0 0
          %1739 = vmatpush1.bf16.msra.mxu0 0
          %1740 = vmatprep.subr.bf16.mxu0 0
          %1741 = vmatpush1.bf16.msra.mxu0 0
          %1742 = vmatprep.subr.bf16.mxu0 0
          %1743 = vmatpush1.bf16.msra.mxu0 0
          %1744 = vmatprep.subr.bf16.mxu0 0
          %1745 = vmatpush1.bf16.msra.mxu0 0
          %1746 = vmatprep.subr.bf16.mxu0 0
          %1747 = vmatpush1.bf16.msra.mxu0 0
          %1748 = vmatprep.subr.bf16.mxu0 0
          %1749 = vmatpush1.bf16.msra.mxu0 0
          %1750 = vmatprep.mubr.bf16.mxu0 0
          %1751 = vmatmul.mubr.bf16.gmra.mrb[0].mxu0 %v1716
          %v1752 = vpop.f32.mrb[0].mxu0
          %v1753 = vadd.f32 0.0, %v1752
          %v1754 = vpop.f32.mrb[0].mxu0
          %v1755 = vpop.f32.mrb[0].mxu0
          %v1756 = vpop.f32.mrb[0].mxu0
          %1757 = vdwg.mxu0
          %1759 = vrot.lane.b32.xlu0 %v1553, 64
          %v1760 = vpop.permute.xlu0 %1759
          %v1763 = vunpack.c.l.b16 %v1554
          %v1764 = vunpack.c.l.b16 %v1555
          %v1765 = vpack.c.b16 %v1764, %v1763
          %v1768 = vsel %vm1412, %v1760, 0
          %1770 = vmatprep.subr.bf16.mxu0 0
          %1771 = vmatpush1.bf16.msra.mxu0 %v1765
          %1772 = vmatprep.subr.bf16.mxu0 0
          %1773 = vmatpush1.bf16.msra.mxu0 0
          %1774 = vmatprep.subr.bf16.mxu0 0
          %1775 = vmatpush1.bf16.msra.mxu0 0
          %1776 = vmatprep.subr.bf16.mxu0 0
          %1777 = vmatpush1.bf16.msra.mxu0 0
          %1778 = vmatprep.subr.bf16.mxu0 0
          %1779 = vmatpush1.bf16.msra.mxu0 0
          %1780 = vmatprep.subr.bf16.mxu0 0
          %1781 = vmatpush1.bf16.msra.mxu0 0
          %1782 = vmatprep.subr.bf16.mxu0 0
          %1783 = vmatpush1.bf16.msra.mxu0 0
          %1784 = vmatprep.subr.bf16.mxu0 0
          %1785 = vmatpush1.bf16.msra.mxu0 0
          %1786 = vmatprep.subr.bf16.mxu0 0
          %1787 = vmatpush1.bf16.msra.mxu0 0
          %1788 = vmatprep.subr.bf16.mxu0 0
          %1789 = vmatpush1.bf16.msra.mxu0 0
          %1790 = vmatprep.subr.bf16.mxu0 0
          %1791 = vmatpush1.bf16.msra.mxu0 0
          %1792 = vmatprep.subr.bf16.mxu0 0
          %1793 = vmatpush1.bf16.msra.mxu0 0
          %1794 = vmatprep.subr.bf16.mxu0 0
          %1795 = vmatpush1.bf16.msra.mxu0 0
          %1796 = vmatprep.subr.bf16.mxu0 0
          %1797 = vmatpush1.bf16.msra.mxu0 0
          %1798 = vmatprep.subr.bf16.mxu0 0
          %1799 = vmatpush1.bf16.msra.mxu0 0
          %1800 = vmatprep.subr.bf16.mxu0 0
          %1801 = vmatpush1.bf16.msra.mxu0 0
          %1802 = vmatprep.mubr.bf16.mxu0 0
          %1803 = vmatmul.mubr.bf16.gmra.mrb[0].mxu0 %v1768
          %v1804 = vpop.f32.mrb[0].mxu0
          %v1805 = vadd.f32 %v1753, %v1804
          %v1806 = vpop.f32.mrb[0].mxu0
          %v1807 = vpop.f32.mrb[0].mxu0
          %v1808 = vpop.f32.mrb[0].mxu0
          %1809 = vdwg.mxu0
          %s1810 = scalar_lea.vmem [#allocation2], 8
          %v1811 = vld [vmem:[%s1810] sm:$0xf]
          %v1812 = vunpack.c.l.bf16 %v1811
          %1813 = vrot.lane.b32.xlu0 %v1383, 96
          %v1814 = vpop.permute.xlu0 %1813
          %1815 = vrot.lane.b32.xlu0 %v1389, 32
          %v1816 = vpop.permute.xlu0 %1815
          %v1817 = vsel %vm1412, %v1814, 0
          %v1819 = vsel %vm1412, %v1816, 0
          %1821 = vmatprep.subr.mxu0 0.0
          %1822 = vmatpush1.xpose.msra.mxu0 %v1819
          %1823 = vmatprep.subr.mxu0 0.0
          %1824 = vmatpush1.xpose.msra.mxu0 0.0
          %1825 = vmatprep.subr.mxu0 0.0
          %1826 = vmatpush1.xpose.msra.mxu0 0.0
          %1827 = vmatprep.subr.mxu0 0.0
          %1828 = vmatpush1.xpose.msra.mxu0 0.0
          %1829 = vmatprep.subr.mxu0 0.0
          %1830 = vmatpush1.xpose.msra.mxu0 0.0
          %1831 = vmatprep.subr.mxu0 0.0
          %1832 = vmatpush1.xpose.msra.mxu0 0.0
          %1833 = vmatprep.subr.mxu0 0.0
          %1834 = vmatpush1.xpose.msra.mxu0 0.0
          %1835 = vmatprep.subr.mxu0 0.0
          %1836 = vmatpush1.xpose.msra.mxu0 0.0
          %1837 = vmatprep.subr.mxu0 0.0
          %1838 = vmatpush1.xpose.msra.mxu0 0.0
          %1839 = vmatprep.subr.mxu0 0.0
          %1840 = vmatpush1.xpose.msra.mxu0 0.0
          %1841 = vmatprep.subr.mxu0 0.0
          %1842 = vmatpush1.xpose.msra.mxu0 0.0
          %1843 = vmatprep.subr.mxu0 0.0
          %1844 = vmatpush1.xpose.msra.mxu0 0.0
          %1845 = vmatprep.subr.mxu0 0.0
          %1846 = vmatpush1.xpose.msra.mxu0 0.0
          %1847 = vmatprep.subr.mxu0 0.0
          %1848 = vmatpush1.xpose.msra.mxu0 0.0
          %1849 = vmatprep.subr.mxu0 0.0
          %1850 = vmatpush1.xpose.msra.mxu0 0.0
          %1851 = vmatprep.subr.mxu0 0.0
          %1852 = vmatpush1.xpose.msra.mxu0 0.0
          %1853 = vmatprep.subr.mxu0 0.0
          %1854 = vmatpush1.xpose.msra.mxu0 0.0
          %1855 = vmatprep.subr.mxu0 0.0
          %1856 = vmatpush1.xpose.msra.mxu0 0.0
          %1857 = vmatprep.subr.mxu0 0.0
          %1858 = vmatpush1.xpose.msra.mxu0 0.0
          %1859 = vmatprep.subr.mxu0 0.0
          %1860 = vmatpush1.xpose.msra.mxu0 0.0
          %1861 = vmatprep.subr.mxu0 0.0
          %1862 = vmatpush1.xpose.msra.mxu0 0.0
          %1863 = vmatprep.subr.mxu0 0.0
          %1864 = vmatpush1.xpose.msra.mxu0 0.0
          %1865 = vmatprep.subr.mxu0 0.0
          %1866 = vmatpush1.xpose.msra.mxu0 0.0
          %1867 = vmatprep.subr.mxu0 0.0
          %1868 = vmatpush1.xpose.msra.mxu0 0.0
          %1869 = vmatprep.subr.mxu0 0.0
          %1870 = vmatpush1.xpose.msra.mxu0 0.0
          %1871 = vmatprep.subr.mxu0 0.0
          %1872 = vmatpush1.xpose.msra.mxu0 0.0
          %1873 = vmatprep.subr.mxu0 0.0
          %1874 = vmatpush1.xpose.msra.mxu0 0.0
          %1875 = vmatprep.subr.mxu0 0.0
          %1876 = vmatpush1.xpose.msra.mxu0 0.0
          %1877 = vmatprep.subr.mxu0 0.0
          %1878 = vmatpush1.xpose.msra.mxu0 0.0
          %1879 = vmatprep.subr.mxu0 0.0
          %1880 = vmatpush1.xpose.msra.mxu0 0.0
          %1881 = vmatprep.subr.mxu0 0.0
          %1882 = vmatpush1.xpose.msra.mxu0 0.0
          %1883 = vmatprep.subr.mxu0 0.0
          %1884 = vmatpush1.xpose.msra.mxu0 0.0
          %1885 = vmatprep.mubr.f32.mxu0 0.0
          %1886 = vmatmul.mubr.f32.gmra.mrb[0].mxu0 %v1817
          %v1887 = vpop.f32.mrb[0].mxu0
          %v1888 = vadd.f32 %v1812, %v1887
          %v1889 = vpop.f32.mrb[0].mxu0
          %1890 = vdwg.mxu0
          %v1891 = vsel %vm1488, %v1888, -inf
          %1892 = vmax.xlane.f32.xlu0 %v1891
          %v1893 = vpop.xlane.xlu0 %1892
          %v1894 = vsub.f32 %v1888, %v1893
          %v1895 = vmul.f32 %v1894, 1.442695
          %v1896 = vpow.pop %v1895
          %v1897 = vsel %vm1488, %v1896, 0.0
          %1898 = vadd.xlane.f32.xlu0 %v1897
          %v1899 = vpop.xlane.xlu0 %1898
          %v1900 = vrcp.pop %v1899
          %v1901 = vmul.f32 %v1896, %v1900
          %v1902 = vpack.c.bf16 %v1901, %v1901
          %1903 = vrot.lane.b32.xlu0 %v1390, 96
          %v1904 = vpop.permute.xlu0 %1903
          %v1906 = vsel %vm1488, %v1902, 0
          %v1909 = vsel %vm1504, %v1904, 0
          %1911 = vmatprep.subr.bf16.mxu0 0
          %1912 = vmatpush1.bf16.msra.mxu0 %v1909
          %1913 = vmatprep.subr.bf16.mxu0 0
          %1914 = vmatpush1.bf16.msra.mxu0 0
          %1915 = vmatprep.subr.bf16.mxu0 0
          %1916 = vmatpush1.bf16.msra.mxu0 0
          %1917 = vmatprep.subr.bf16.mxu0 0
          %1918 = vmatpush1.bf16.msra.mxu0 0
          %1919 = vmatprep.subr.bf16.mxu0 0
          %1920 = vmatpush1.bf16.msra.mxu0 0
          %1921 = vmatprep.subr.bf16.mxu0 0
          %1922 = vmatpush1.bf16.msra.mxu0 0
          %1923 = vmatprep.subr.bf16.mxu0 0
          %1924 = vmatpush1.bf16.msra.mxu0 0
          %1925 = vmatprep.subr.bf16.mxu0 0
          %1926 = vmatpush1.bf16.msra.mxu0 0
          %1927 = vmatprep.subr.bf16.mxu0 0
          %1928 = vmatpush1.bf16.msra.mxu0 0
          %1929 = vmatprep.subr.bf16.mxu0 0
          %1930 = vmatpush1.bf16.msra.mxu0 0
          %1931 = vmatprep.subr.bf16.mxu0 0
          %1932 = vmatpush1.bf16.msra.mxu0 0
          %1933 = vmatprep.subr.bf16.mxu0 0
          %1934 = vmatpush1.bf16.msra.mxu0 0
          %1935 = vmatprep.subr.bf16.mxu0 0
          %1936 = vmatpush1.bf16.msra.mxu0 0
          %1937 = vmatprep.subr.bf16.mxu0 0
          %1938 = vmatpush1.bf16.msra.mxu0 0
          %1939 = vmatprep.subr.bf16.mxu0 0
          %1940 = vmatpush1.bf16.msra.mxu0 0
          %1941 = vmatprep.subr.bf16.mxu0 0
          %1942 = vmatpush1.bf16.msra.mxu0 0
          %1943 = vmatprep.mubr.bf16.mxu0 0
          %1944 = vmatmul.mubr.bf16.gmra.mrb[0].mxu0 %v1906
          %v1945 = vpop.f32.mrb[0].mxu0
          %v1946 = vadd.f32 0.0, %v1945
          %v1947 = vpop.f32.mrb[0].mxu0
          %v1948 = vpop.f32.mrb[0].mxu0
          %v1949 = vpop.f32.mrb[0].mxu0
          %1950 = vdwg.mxu0
          %1952 = vrot.lane.b32.xlu0 %v1946, 96
          %v1953 = vpop.permute.xlu0 %1952
          %v1955 = vmul.f32 %v1406, %v1953
          %v1956 = vpack.c.bf16 %v1955, %v1955
          %v1957 = vld [vmem:[#allocation20 + $0x10] sm:$0xf]
          %v1958 = vld [vmem:[#allocation20 + $0x14] sm:$0xf]
          %1960 = vrot.lane.b32.xlu0 %v1956, 32
          %v1961 = vpop.permute.xlu0 %1960
          %v1964 = vunpack.c.l.b16 %v1957
          %v1965 = vunpack.c.l.b16 %v1958
          %v1966 = vpack.c.b16 %v1965, %v1964
          %v1969 = vsel %vm1412, %v1961, 0
          %1971 = vmatprep.subr.bf16.mxu0 0
          %1972 = vmatpush1.bf16.msra.mxu0 %v1966
          %1973 = vmatprep.subr.bf16.mxu0 0
          %1974 = vmatpush1.bf16.msra.mxu0 0
          %1975 = vmatprep.subr.bf16.mxu0 0
          %1976 = vmatpush1.bf16.msra.mxu0 0
          %1977 = vmatprep.subr.bf16.mxu0 0
          %1978 = vmatpush1.bf16.msra.mxu0 0
          %1979 = vmatprep.subr.bf16.mxu0 0
          %1980 = vmatpush1.bf16.msra.mxu0 0
          %1981 = vmatprep.subr.bf16.mxu0 0
          %1982 = vmatpush1.bf16.msra.mxu0 0
          %1983 = vmatprep.subr.bf16.mxu0 0
          %1984 = vmatpush1.bf16.msra.mxu0 0
          %1985 = vmatprep.subr.bf16.mxu0 0
          %1986 = vmatpush1.bf16.msra.mxu0 0
          %1987 = vmatprep.subr.bf16.mxu0 0
          %1988 = vmatpush1.bf16.msra.mxu0 0
          %1989 = vmatprep.subr.bf16.mxu0 0
          %1990 = vmatpush1.bf16.msra.mxu0 0
          %1991 = vmatprep.subr.bf16.mxu0 0
          %1992 = vmatpush1.bf16.msra.mxu0 0
          %1993 = vmatprep.subr.bf16.mxu0 0
          %1994 = vmatpush1.bf16.msra.mxu0 0
          %1995 = vmatprep.subr.bf16.mxu0 0
          %1996 = vmatpush1.bf16.msra.mxu0 0
          %1997 = vmatprep.subr.bf16.mxu0 0
          %1998 = vmatpush1.bf16.msra.mxu0 0
          %1999 = vmatprep.subr.bf16.mxu0 0
          %2000 = vmatpush1.bf16.msra.mxu0 0
          %2001 = vmatprep.subr.bf16.mxu0 0
          %2002 = vmatpush1.bf16.msra.mxu0 0
          %2003 = vmatprep.mubr.bf16.mxu0 0
          %2004 = vmatmul.mubr.bf16.gmra.mrb[0].mxu0 %v1969
          %v2005 = vpop.f32.mrb[0].mxu0
          %v2006 = vadd.f32 0.0, %v2005
          %v2007 = vpop.f32.mrb[0].mxu0
          %v2008 = vpop.f32.mrb[0].mxu0
          %v2009 = vpop.f32.mrb[0].mxu0
          %2010 = vdwg.mxu0
          %v2011 = vadd.f32 %v1805, %v2006
          %s2012 = scalar_lea.vmem [#allocation2], 12
          %v2013 = vld [vmem:[%s2012] sm:$0xf]
          %v2014 = vunpack.c.l.bf16 %v2013
          %2015 = vrot.lane.b32.xlu0 %v1383, 80
          %v2016 = vpop.permute.xlu0 %2015
          %2017 = vrot.lane.b32.xlu0 %v1389, 16
          %v2018 = vpop.permute.xlu0 %2017
          %v2019 = vsel %vm1412, %v2016, 0
          %v2021 = vsel %vm1412, %v2018, 0
          %2023 = vmatprep.subr.mxu0 0.0
          %2024 = vmatpush1.xpose.msra.mxu0 %v2021
          %2025 = vmatprep.subr.mxu0 0.0
          %2026 = vmatpush1.xpose.msra.mxu0 0.0
          %2027 = vmatprep.subr.mxu0 0.0
          %2028 = vmatpush1.xpose.msra.mxu0 0.0
          %2029 = vmatprep.subr.mxu0 0.0
          %2030 = vmatpush1.xpose.msra.mxu0 0.0
          %2031 = vmatprep.subr.mxu0 0.0
          %2032 = vmatpush1.xpose.msra.mxu0 0.0
          %2033 = vmatprep.subr.mxu0 0.0
          %2034 = vmatpush1.xpose.msra.mxu0 0.0
          %2035 = vmatprep.subr.mxu0 0.0
          %2036 = vmatpush1.xpose.msra.mxu0 0.0
          %2037 = vmatprep.subr.mxu0 0.0
          %2038 = vmatpush1.xpose.msra.mxu0 0.0
          %2039 = vmatprep.subr.mxu0 0.0
          %2040 = vmatpush1.xpose.msra.mxu0 0.0
          %2041 = vmatprep.subr.mxu0 0.0
          %2042 = vmatpush1.xpose.msra.mxu0 0.0
          %2043 = vmatprep.subr.mxu0 0.0
          %2044 = vmatpush1.xpose.msra.mxu0 0.0
          %2045 = vmatprep.subr.mxu0 0.0
          %2046 = vmatpush1.xpose.msra.mxu0 0.0
          %2047 = vmatprep.subr.mxu0 0.0
          %2048 = vmatpush1.xpose.msra.mxu0 0.0
          %2049 = vmatprep.subr.mxu0 0.0
          %2050 = vmatpush1.xpose.msra.mxu0 0.0
          %2051 = vmatprep.subr.mxu0 0.0
          %2052 = vmatpush1.xpose.msra.mxu0 0.0
          %2053 = vmatprep.subr.mxu0 0.0
          %2054 = vmatpush1.xpose.msra.mxu0 0.0
          %2055 = vmatprep.subr.mxu0 0.0
          %2056 = vmatpush1.xpose.msra.mxu0 0.0
          %2057 = vmatprep.subr.mxu0 0.0
          %2058 = vmatpush1.xpose.msra.mxu0 0.0
          %2059 = vmatprep.subr.mxu0 0.0
          %2060 = vmatpush1.xpose.msra.mxu0 0.0
          %2061 = vmatprep.subr.mxu0 0.0
          %2062 = vmatpush1.xpose.msra.mxu0 0.0
          %2063 = vmatprep.subr.mxu0 0.0
          %2064 = vmatpush1.xpose.msra.mxu0 0.0
          %2065 = vmatprep.subr.mxu0 0.0
          %2066 = vmatpush1.xpose.msra.mxu0 0.0
          %2067 = vmatprep.subr.mxu0 0.0
          %2068 = vmatpush1.xpose.msra.mxu0 0.0
          %2069 = vmatprep.subr.mxu0 0.0
          %2070 = vmatpush1.xpose.msra.mxu0 0.0
          %2071 = vmatprep.subr.mxu0 0.0
          %2072 = vmatpush1.xpose.msra.mxu0 0.0
          %2073 = vmatprep.subr.mxu0 0.0
          %2074 = vmatpush1.xpose.msra.mxu0 0.0
          %2075 = vmatprep.subr.mxu0 0.0
          %2076 = vmatpush1.xpose.msra.mxu0 0.0
          %2077 = vmatprep.subr.mxu0 0.0
          %2078 = vmatpush1.xpose.msra.mxu0 0.0
          %2079 = vmatprep.subr.mxu0 0.0
          %2080 = vmatpush1.xpose.msra.mxu0 0.0
          %2081 = vmatprep.subr.mxu0 0.0
          %2082 = vmatpush1.xpose.msra.mxu0 0.0
          %2083 = vmatprep.subr.mxu0 0.0
          %2084 = vmatpush1.xpose.msra.mxu0 0.0
          %2085 = vmatprep.subr.mxu0 0.0
          %2086 = vmatpush1.xpose.msra.mxu0 0.0
          %2087 = vmatprep.mubr.f32.mxu0 0.0
          %2088 = vmatmul.mubr.f32.gmra.mrb[0].mxu0 %v2019
          %v2089 = vpop.f32.mrb[0].mxu0
          %v2090 = vadd.f32 %v2014, %v2089
          %v2091 = vpop.f32.mrb[0].mxu0
          %2092 = vdwg.mxu0
          %v2093 = vsel %vm1488, %v2090, -inf
          %2094 = vmax.xlane.f32.xlu0 %v2093
          %v2095 = vpop.xlane.xlu0 %2094
          %v2096 = vsub.f32 %v2090, %v2095
          %v2097 = vmul.f32 %v2096, 1.442695
          %v2098 = vpow.pop %v2097
          %v2099 = vsel %vm1488, %v2098, 0.0
          %2100 = vadd.xlane.f32.xlu0 %v2099
          %v2101 = vpop.xlane.xlu0 %2100
          %v2102 = vrcp.pop %v2101
          %v2103 = vmul.f32 %v2098, %v2102
          %v2104 = vpack.c.bf16 %v2103, %v2103
          %2105 = vrot.lane.b32.xlu0 %v1390, 80
          %v2106 = vpop.permute.xlu0 %2105
          %v2108 = vsel %vm1488, %v2104, 0
          %v2111 = vsel %vm1504, %v2106, 0
          %2113 = vmatprep.subr.bf16.mxu0 0
          %2114 = vmatpush1.bf16.msra.mxu0 %v2111
          %2115 = vmatprep.subr.bf16.mxu0 0
          %2116 = vmatpush1.bf16.msra.mxu0 0
          %2117 = vmatprep.subr.bf16.mxu0 0
          %2118 = vmatpush1.bf16.msra.mxu0 0
          %2119 = vmatprep.subr.bf16.mxu0 0
          %2120 = vmatpush1.bf16.msra.mxu0 0
          %2121 = vmatprep.subr.bf16.mxu0 0
          %2122 = vmatpush1.bf16.msra.mxu0 0
          %2123 = vmatprep.subr.bf16.mxu0 0
          %2124 = vmatpush1.bf16.msra.mxu0 0
          %2125 = vmatprep.subr.bf16.mxu0 0
          %2126 = vmatpush1.bf16.msra.mxu0 0
          %2127 = vmatprep.subr.bf16.mxu0 0
          %2128 = vmatpush1.bf16.msra.mxu0 0
          %2129 = vmatprep.subr.bf16.mxu0 0
          %2130 = vmatpush1.bf16.msra.mxu0 0
          %2131 = vmatprep.subr.bf16.mxu0 0
          %2132 = vmatpush1.bf16.msra.mxu0 0
          %2133 = vmatprep.subr.bf16.mxu0 0
          %2134 = vmatpush1.bf16.msra.mxu0 0
          %2135 = vmatprep.subr.bf16.mxu0 0
          %2136 = vmatpush1.bf16.msra.mxu0 0
          %2137 = vmatprep.subr.bf16.mxu0 0
          %2138 = vmatpush1.bf16.msra.mxu0 0
          %2139 = vmatprep.subr.bf16.mxu0 0
          %2140 = vmatpush1.bf16.msra.mxu0 0
          %2141 = vmatprep.subr.bf16.mxu0 0
          %2142 = vmatpush1.bf16.msra.mxu0 0
          %2143 = vmatprep.subr.bf16.mxu0 0
          %2144 = vmatpush1.bf16.msra.mxu0 0
          %2145 = vmatprep.mubr.bf16.mxu0 0
          %2146 = vmatmul.mubr.bf16.gmra.mrb[0].mxu0 %v2108
          %v2147 = vpop.f32.mrb[0].mxu0
          %v2148 = vadd.f32 0.0, %v2147
          %v2149 = vpop.f32.mrb[0].mxu0
          %v2150 = vpop.f32.mrb[0].mxu0
          %v2151 = vpop.f32.mrb[0].mxu0
          %2152 = vdwg.mxu0
          %2154 = vrot.lane.b32.xlu0 %v2148, 112
          %v2155 = vpop.permute.xlu0 %2154
          %v2157 = vmul.f32 %v1406, %v2155
          %v2158 = vpack.c.bf16 %v2157, %v2157
          %v2159 = vld [vmem:[#allocation20 + $0x18] sm:$0xf]
          %v2160 = vld [vmem:[#allocation20 + $0x1c] sm:$0xf]
          %2162 = vrot.lane.b32.xlu0 %v2158, 16
          %v2163 = vpop.permute.xlu0 %2162
          %v2166 = vunpack.c.l.b16 %v2159
          %v2167 = vunpack.c.l.b16 %v2160
          %v2168 = vpack.c.b16 %v2167, %v2166
          %v2171 = vsel %vm1412, %v2163, 0
          %2173 = vmatprep.subr.bf16.mxu0 0
          %2174 = vmatpush1.bf16.msra.mxu0 %v2168
          %2175 = vmatprep.subr.bf16.mxu0 0
          %2176 = vmatpush1.bf16.msra.mxu0 0
          %2177 = vmatprep.subr.bf16.mxu0 0
          %2178 = vmatpush1.bf16.msra.mxu0 0
          %2179 = vmatprep.subr.bf16.mxu0 0
          %2180 = vmatpush1.bf16.msra.mxu0 0
          %2181 = vmatprep.subr.bf16.mxu0 0
          %2182 = vmatpush1.bf16.msra.mxu0 0
          %2183 = vmatprep.subr.bf16.mxu0 0
          %2184 = vmatpush1.bf16.msra.mxu0 0
          %2185 = vmatprep.subr.bf16.mxu0 0
          %2186 = vmatpush1.bf16.msra.mxu0 0
          %2187 = vmatprep.subr.bf16.mxu0 0
          %2188 = vmatpush1.bf16.msra.mxu0 0
          %2189 = vmatprep.subr.bf16.mxu0 0
          %2190 = vmatpush1.bf16.msra.mxu0 0
          %2191 = vmatprep.subr.bf16.mxu0 0
          %2192 = vmatpush1.bf16.msra.mxu0 0
          %2193 = vmatprep.subr.bf16.mxu0 0
          %2194 = vmatpush1.bf16.msra.mxu0 0
          %2195 = vmatprep.subr.bf16.mxu0 0
          %2196 = vmatpush1.bf16.msra.mxu0 0
          %2197 = vmatprep.subr.bf16.mxu0 0
          %2198 = vmatpush1.bf16.msra.mxu0 0
          %2199 = vmatprep.subr.bf16.mxu0 0
          %2200 = vmatpush1.bf16.msra.mxu0 0
          %2201 = vmatprep.subr.bf16.mxu0 0
          %2202 = vmatpush1.bf16.msra.mxu0 0
          %2203 = vmatprep.subr.bf16.mxu0 0
          %2204 = vmatpush1.bf16.msra.mxu0 0
          %2205 = vmatprep.mubr.bf16.mxu0 0
          %2206 = vmatmul.mubr.bf16.gmra.mrb[0].mxu0 %v2171
          %v2207 = vpop.f32.mrb[0].mxu0
          %v2208 = vadd.f32 0.0, %v2207
          %v2209 = vpop.f32.mrb[0].mxu0
          %v2210 = vpop.f32.mrb[0].mxu0
          %v2211 = vpop.f32.mrb[0].mxu0
          %2212 = vdwg.mxu0
          %v2213 = vadd.f32 %v2011, %v2208
          %v2214 = vadd.f32 %v1270, %v2213
          %v2215 = vld [vmem:[#allocation15 + $0x3] sm:$0x1]
          %v2216 = vlaneseq
          %v2217 = vshrl.u32 %v2216, 7
          %v2218 = vsub.s32 0, %v2217
          %v2219 = vrot.slane %v2215, %v2218
          %v2220 = vadd.f32 %v2214, %v2219
          %v2221 = vld [vmem:[#allocation15 + $0x4] sm:$0x1]
          %v2222 = vld [vmem:[#allocation15 + $0x5] sm:$0x1]
          %v2223 = vsel %vm768, %v2220, 0.0
          %2224 = vadd.xlane.f32.xlu0 %v2223
          %v2225 = vpop.xlane.xlu0 %2224
          %v2226 = vmul.f32 %v2225, %v883
          %v2227 = vsub.f32 %v2220, %v2226
          %v2228 = vmul.f32 %v2227, %v2227
          %v2229 = vsel %vm768, %v2228, 0.0
          %2230 = vadd.xlane.f32.xlu0 %v2229
          %v2231 = vpop.xlane.xlu0 %2230
          %v2232 = vmul.f32 %v2231, %v883
          %v2233 = vadd.f32 %v2232, 1e-05
          %v2234 = vrsqrt.pop %v2233
          %v2235 = vmul.f32 %v2227, %v2234
          %v2236 = vlaneseq
          %v2237 = vshrl.u32 %v2236, 7
          %v2238 = vsub.s32 0, %v2237
          %v2239 = vrot.slane %v2221, %v2238
          %v2240 = vmul.f32 %v2235, %v2239
          %v2241 = vlaneseq
          %v2242 = vshrl.u32 %v2241, 7
          %v2243 = vsub.s32 0, %v2242
          %v2244 = vrot.slane %v2222, %v2243
          %v2245 = vadd.f32 %v2240, %v2244
          %v2246 = vpack.c.bf16 %v2245, %v2245
          %v2247 = vld [vmem:[#allocation18 + $0x40] sm:$0xff]
          %v2248 = vld [vmem:[#allocation18 + $0x48] sm:$0xff]
          %v2249 = vld [vmem:[#allocation18 + $0x50] sm:$0xff]
          %v2250 = vld [vmem:[#allocation18 + $0x58] sm:$0xff]
          %v2251 = vld [vmem:[#allocation18 + $0x60] sm:$0xff]
          %v2252 = vld [vmem:[#allocation18 + $0x68] sm:$0xff]
          %v2253 = vld [vmem:[#allocation18 + $0x70] sm:$0xff]
          %v2254 = vld [vmem:[#allocation18 + $0x78] sm:$0xff]
          %v2255 = vld [vmem:[#allocation17] ss:$2 sm:$0x3]
          %v2257 = vlaneseq
          %v2258 = vshrl.u32 %v2257, 7
          %v2259 = vsub.s32 0, %v2258
          %v2260 = vrot.slane %v2255, %v2259
          %v2261 = vlaneseq
          %v2262 = vshrl.u32 %v2261, 7
          %v2263 = vsub.s32 1, %v2262
          %v2264 = vrot.slane %v2255, %v2263
          %v2275 = vunpack.c.l.b16 %v2247
          %v2276 = vunpack.c.h.b16 %v2247
          %v2277 = vunpack.c.l.b16 %v2248
          %v2278 = vunpack.c.h.b16 %v2248
          %v2279 = vunpack.c.l.b16 %v2249
          %v2280 = vunpack.c.h.b16 %v2249
          %v2281 = vunpack.c.l.b16 %v2250
          %v2282 = vunpack.c.h.b16 %v2250
          %v2283 = vunpack.c.l.b16 %v2251
          %v2284 = vunpack.c.h.b16 %v2251
          %v2285 = vunpack.c.l.b16 %v2252
          %v2286 = vunpack.c.h.b16 %v2252
          %v2287 = vunpack.c.l.b16 %v2253
          %v2288 = vunpack.c.h.b16 %v2253
          %v2289 = vunpack.c.l.b16 %v2254
          %v2290 = vunpack.c.h.b16 %v2254
          %v2291 = vpack.c.b16 %v2277, %v2275
          %v2292 = vpack.c.b16 %v2278, %v2276
          %v2293 = vpack.c.b16 %v2281, %v2279
          %v2294 = vpack.c.b16 %v2282, %v2280
          %v2295 = vpack.c.b16 %v2285, %v2283
          %v2296 = vpack.c.b16 %v2286, %v2284
          %v2297 = vpack.c.b16 %v2289, %v2287
          %v2298 = vpack.c.b16 %v2290, %v2288
          %v2308 = vsel %vm768, %v2246, 0
          %2310 = vmatprep.subr.bf16.mxu0 %v2292
          %2311 = vmatpush1.bf16.msra.mxu0 %v2291
          %2312 = vmatprep.subr.bf16.mxu0 %v2294
          %2313 = vmatpush1.bf16.msra.mxu0 %v2293
          %2314 = vmatprep.subr.bf16.mxu0 %v2296
          %2315 = vmatpush1.bf16.msra.mxu0 %v2295
          %2316 = vmatprep.subr.bf16.mxu0 %v2298
          %2317 = vmatpush1.bf16.msra.mxu0 %v2297
          %2318 = vmatprep.subr.bf16.mxu0 0
          %2319 = vmatpush1.bf16.msra.mxu0 0
          %2320 = vmatprep.subr.bf16.mxu0 0
          %2321 = vmatpush1.bf16.msra.mxu0 0
          %2322 = vmatprep.subr.bf16.mxu0 0
          %2323 = vmatpush1.bf16.msra.mxu0 0
          %2324 = vmatprep.subr.bf16.mxu0 0
          %2325 = vmatpush1.bf16.msra.mxu0 0
          %2326 = vmatprep.subr.bf16.mxu0 0
          %2327 = vmatpush1.bf16.msra.mxu0 0
          %2328 = vmatprep.subr.bf16.mxu0 0
          %2329 = vmatpush1.bf16.msra.mxu0 0
          %2330 = vmatprep.subr.bf16.mxu0 0
          %2331 = vmatpush1.bf16.msra.mxu0 0
          %2332 = vmatprep.subr.bf16.mxu0 0
          %2333 = vmatpush1.bf16.msra.mxu0 0
          %2334 = vmatprep.subr.bf16.mxu0 0
          %2335 = vmatpush1.bf16.msra.mxu0 0
          %2336 = vmatprep.subr.bf16.mxu0 0
          %2337 = vmatpush1.bf16.msra.mxu0 0
          %2338 = vmatprep.subr.bf16.mxu0 0
          %2339 = vmatpush1.bf16.msra.mxu0 0
          %2340 = vmatprep.subr.bf16.mxu0 0
          %2341 = vmatpush1.bf16.msra.mxu0 0
          %2342 = vmatprep.mubr.bf16.mxu0 0
          %2343 = vmatmul.mubr.bf16.gmra.mrb[0].mxu0 %v2308
          %v2344 = vpop.f32.mrb[0].mxu0
          %v2345 = vadd.f32 %v2260, %v2344
          %v2346 = vpop.f32.mrb[0].mxu0
          %v2347 = vadd.f32 %v2264, %v2346
          %v2348 = vpop.f32.mrb[0].mxu0
          %v2349 = vpop.f32.mrb[0].mxu0
          %2350 = vdwg.mxu0
          %v2351 = vmax.f32 %v2345, 0.0
          %v2352 = vmax.f32 %v2347, 0.0
          %v2353 = vpack.c.bf16 %v2351, %v2351
          %v2354 = vpack.c.bf16 %v2352, %v2352
          %v2355 = vld [vmem:[#allocation20 + $0x20] sm:$0xf]
          %v2356 = vld [vmem:[#allocation20 + $0x24] sm:$0xf]
          %v2357 = vld [vmem:[#allocation20 + $0x28] sm:$0xf]
          %v2358 = vld [vmem:[#allocation20 + $0x2c] sm:$0xf]
          %v2359 = vld [vmem:[#allocation20 + $0x30] sm:$0xf]
          %v2360 = vld [vmem:[#allocation20 + $0x34] sm:$0xf]
          %v2361 = vld [vmem:[#allocation20 + $0x38] sm:$0xf]
          %v2362 = vld [vmem:[#allocation20 + $0x3c] sm:$0xf]
          %v2363 = vld [vmem:[#allocation20 + $0x40] sm:$0xf]
          %v2364 = vld [vmem:[#allocation20 + $0x44] sm:$0xf]
          %v2365 = vld [vmem:[#allocation20 + $0x48] sm:$0xf]
          %v2366 = vld [vmem:[#allocation20 + $0x4c] sm:$0xf]
          %v2367 = vld [vmem:[#allocation20 + $0x50] sm:$0xf]
          %v2368 = vld [vmem:[#allocation20 + $0x54] sm:$0xf]
          %v2369 = vld [vmem:[#allocation20 + $0x58] sm:$0xf]
          %v2370 = vld [vmem:[#allocation20 + $0x5c] sm:$0xf]
          %v2371 = vld [vmem:[#allocation20 + $0x60] sm:$0xf]
          %v2372 = vld [vmem:[#allocation20 + $0x64] sm:$0xf]
          %v2373 = vld [vmem:[#allocation20 + $0x68] sm:$0xf]
          %v2374 = vld [vmem:[#allocation20 + $0x6c] sm:$0xf]
          %v2375 = vld [vmem:[#allocation20 + $0x70] sm:$0xf]
          %v2376 = vld [vmem:[#allocation20 + $0x74] sm:$0xf]
          %v2377 = vld [vmem:[#allocation20 + $0x78] sm:$0xf]
          %v2378 = vld [vmem:[#allocation20 + $0x7c] sm:$0xf]
          %v2379 = vld [vmem:[#allocation20 + $0x80] sm:$0xf]
          %v2380 = vld [vmem:[#allocation20 + $0x84] sm:$0xf]
          %v2381 = vld [vmem:[#allocation20 + $0x88] sm:$0xf]
          %v2382 = vld [vmem:[#allocation20 + $0x8c] sm:$0xf]
          %v2383 = vld [vmem:[#allocation20 + $0x90] sm:$0xf]
          %v2384 = vld [vmem:[#allocation20 + $0x94] sm:$0xf]
          %v2385 = vld [vmem:[#allocation20 + $0x98] sm:$0xf]
          %v2386 = vld [vmem:[#allocation20 + $0x9c] sm:$0xf]
          %v2387 = vld [vmem:[#allocation15 + $0x6] sm:$0x1]
          %v2388 = vlaneseq
          %v2389 = vshrl.u32 %v2388, 7
          %v2390 = vsub.s32 0, %v2389
          %v2391 = vrot.slane %v2387, %v2390
          %v2424 = vunpack.c.l.b16 %v2355
          %v2425 = vunpack.c.l.b16 %v2356
          %v2426 = vunpack.c.l.b16 %v2357
          %v2427 = vunpack.c.l.b16 %v2358
          %v2428 = vunpack.c.l.b16 %v2359
          %v2429 = vunpack.c.l.b16 %v2360
          %v2430 = vunpack.c.l.b16 %v2361
          %v2431 = vunpack.c.l.b16 %v2362
          %v2432 = vunpack.c.l.b16 %v2363
          %v2433 = vunpack.c.l.b16 %v2364
          %v2434 = vunpack.c.l.b16 %v2365
          %v2435 = vunpack.c.l.b16 %v2366
          %v2436 = vunpack.c.l.b16 %v2367
          %v2437 = vunpack.c.l.b16 %v2368
          %v2438 = vunpack.c.l.b16 %v2369
          %v2439 = vunpack.c.l.b16 %v2370
          %v2440 = vunpack.c.l.b16 %v2371
          %v2441 = vunpack.c.l.b16 %v2372
          %v2442 = vunpack.c.l.b16 %v2373
          %v2443 = vunpack.c.l.b16 %v2374
          %v2444 = vunpack.c.l.b16 %v2375
          %v2445 = vunpack.c.l.b16 %v2376
          %v2446 = vunpack.c.l.b16 %v2377
          %v2447 = vunpack.c.l.b16 %v2378
          %v2448 = vunpack.c.l.b16 %v2379
          %v2449 = vunpack.c.l.b16 %v2380
          %v2450 = vunpack.c.l.b16 %v2381
          %v2451 = vunpack.c.l.b16 %v2382
          %v2452 = vunpack.c.l.b16 %v2383
          %v2453 = vunpack.c.l.b16 %v2384
          %v2454 = vunpack.c.l.b16 %v2385
          %v2455 = vunpack.c.l.b16 %v2386
          %v2456 = vpack.c.b16 %v2425, %v2424
          %v2457 = vpack.c.b16 %v2427, %v2426
          %v2458 = vpack.c.b16 %v2429, %v2428
          %v2459 = vpack.c.b16 %v2431, %v2430
          %v2460 = vpack.c.b16 %v2433, %v2432
          %v2461 = vpack.c.b16 %v2435, %v2434
          %v2462 = vpack.c.b16 %v2437, %v2436
          %v2463 = vpack.c.b16 %v2439, %v2438
          %v2464 = vpack.c.b16 %v2441, %v2440
          %v2465 = vpack.c.b16 %v2443, %v2442
          %v2466 = vpack.c.b16 %v2445, %v2444
          %v2467 = vpack.c.b16 %v2447, %v2446
          %v2468 = vpack.c.b16 %v2449, %v2448
          %v2469 = vpack.c.b16 %v2451, %v2450
          %v2470 = vpack.c.b16 %v2453, %v2452
          %v2471 = vpack.c.b16 %v2455, %v2454
          %2488 = vmatprep.subr.bf16.mxu0 0
          %2489 = vmatpush1.bf16.msra.mxu0 %v2456
          %2490 = vmatprep.subr.bf16.mxu0 0
          %2491 = vmatpush1.bf16.msra.mxu0 %v2457
          %2492 = vmatprep.subr.bf16.mxu0 0
          %2493 = vmatpush1.bf16.msra.mxu0 %v2458
          %2494 = vmatprep.subr.bf16.mxu0 0
          %2495 = vmatpush1.bf16.msra.mxu0 %v2459
          %2496 = vmatprep.subr.bf16.mxu0 0
          %2497 = vmatpush1.bf16.msra.mxu0 %v2460
          %2498 = vmatprep.subr.bf16.mxu0 0
          %2499 = vmatpush1.bf16.msra.mxu0 %v2461
          %2500 = vmatprep.subr.bf16.mxu0 0
          %2501 = vmatpush1.bf16.msra.mxu0 %v2462
          %2502 = vmatprep.subr.bf16.mxu0 0
          %2503 = vmatpush1.bf16.msra.mxu0 %v2463
          %2504 = vmatprep.subr.bf16.mxu0 0
          %2505 = vmatpush1.bf16.msra.mxu0 %v2464
          %2506 = vmatprep.subr.bf16.mxu0 0
          %2507 = vmatpush1.bf16.msra.mxu0 %v2465
          %2508 = vmatprep.subr.bf16.mxu0 0
          %2509 = vmatpush1.bf16.msra.mxu0 %v2466
          %2510 = vmatprep.subr.bf16.mxu0 0
          %2511 = vmatpush1.bf16.msra.mxu0 %v2467
          %2512 = vmatprep.subr.bf16.mxu0 0
          %2513 = vmatpush1.bf16.msra.mxu0 %v2468
          %2514 = vmatprep.subr.bf16.mxu0 0
          %2515 = vmatpush1.bf16.msra.mxu0 %v2469
          %2516 = vmatprep.subr.bf16.mxu0 0
          %2517 = vmatpush1.bf16.msra.mxu0 %v2470
          %2518 = vmatprep.subr.bf16.mxu0 0
          %2519 = vmatpush1.bf16.msra.mxu0 %v2471
          %2520 = vmatprep.mubr.bf16.mxu0 %v2354
          %2521 = vmatmul.mubr.bf16.gmra.mrb[0].mxu0 %v2353
          %v2522 = vpop.f32.mrb[0].mxu0
          %v2523 = vadd.f32 %v2391, %v2522
          %v2524 = vpop.f32.mrb[0].mxu0
          %v2525 = vpop.f32.mrb[0].mxu0
          %v2526 = vpop.f32.mrb[0].mxu0
          %2527 = vdwg.mxu0
          %v2528 = vadd.f32 %v2220, %v2523
          %s2529 = scalar_lea.vmem [#allocation15], 8
          %v2530 = vld [vmem:[%s2529] sm:$0x1]
          %v2531 = vld [vmem:[%s2529 + $0x1] sm:$0x1]
          %v2532 = vsel %vm768, %v2528, 0.0
          %2533 = vadd.xlane.f32.xlu0 %v2532
          %v2534 = vpop.xlane.xlu0 %2533
          %v2535 = vmul.f32 %v2534, %v883
          %v2536 = vsub.f32 %v2528, %v2535
          %v2537 = vmul.f32 %v2536, %v2536
          %v2538 = vsel %vm768, %v2537, 0.0
          %2539 = vadd.xlane.f32.xlu0 %v2538
          %v2540 = vpop.xlane.xlu0 %2539
          %v2541 = vmul.f32 %v2540, %v883
          %v2542 = vadd.f32 %v2541, 1e-05
          %v2543 = vrsqrt.pop %v2542
          %v2544 = vmul.f32 %v2536, %v2543
          %v2545 = vlaneseq
          %v2546 = vshrl.u32 %v2545, 7
          %v2547 = vsub.s32 0, %v2546
          %v2548 = vrot.slane %v2530, %v2547
          %v2549 = vmul.f32 %v2544, %v2548
          %v2550 = vlaneseq
          %v2551 = vshrl.u32 %v2550, 7
          %v2552 = vsub.s32 0, %v2551
          %v2553 = vrot.slane %v2531, %v2552
          %v2554 = vadd.f32 %v2549, %v2553
          %v2555 = vpack.c.bf16 %v2554, %v2554
          %s2556 = scalar_lea.vmem [#allocation18], 128
          %v2557 = vld [vmem:[%s2556] sm:$0xff]
          %v2558 = vld [vmem:[%s2556 + $0x8] sm:$0xff]
          %v2559 = vld [vmem:[%s2556 + $0x10] sm:$0xff]
          %v2560 = vld [vmem:[%s2556 + $0x18] sm:$0xff]
          %v2561 = vld [vmem:[%s2556 + $0x20] sm:$0xff]
          %v2562 = vld [vmem:[%s2556 + $0x28] sm:$0xff]
          %v2563 = vld [vmem:[%s2556 + $0x30] sm:$0xff]
          %v2564 = vld [vmem:[%s2556 + $0x38] sm:$0xff]
          %v2573 = vunpack.c.l.b16 %v2557
          %v2574 = vunpack.c.h.b16 %v2557
          %v2575 = vunpack.c.l.b16 %v2558
          %v2576 = vunpack.c.h.b16 %v2558
          %v2577 = vunpack.c.l.b16 %v2559
          %v2578 = vunpack.c.h.b16 %v2559
          %v2579 = vunpack.c.l.b16 %v2560
          %v2580 = vunpack.c.h.b16 %v2560
          %v2581 = vunpack.c.l.b16 %v2561
          %v2582 = vunpack.c.h.b16 %v2561
          %v2583 = vunpack.c.l.b16 %v2562
          %v2584 = vunpack.c.h.b16 %v2562
          %v2585 = vunpack.c.l.b16 %v2563
          %v2586 = vunpack.c.h.b16 %v2563
          %v2587 = vunpack.c.l.b16 %v2564
          %v2588 = vunpack.c.h.b16 %v2564
          %v2589 = vpack.c.b16 %v2575, %v2573
          %v2590 = vpack.c.b16 %v2576, %v2574
          %v2591 = vpack.c.b16 %v2579, %v2577
          %v2592 = vpack.c.b16 %v2580, %v2578
          %v2593 = vpack.c.b16 %v2583, %v2581
          %v2594 = vpack.c.b16 %v2584, %v2582
          %v2595 = vpack.c.b16 %v2587, %v2585
          %v2596 = vpack.c.b16 %v2588, %v2586
          %v2606 = vsel %vm768, %v2555, 0
          %2608 = vmatprep.subr.bf16.mxu0 %v2590
          %2609 = vmatpush1.bf16.msra.mxu0 %v2589
          %2610 = vmatprep.subr.bf16.mxu0 %v2592
          %2611 = vmatpush1.bf16.msra.mxu0 %v2591
          %2612 = vmatprep.subr.bf16.mxu0 %v2594
          %2613 = vmatpush1.bf16.msra.mxu0 %v2593
          %2614 = vmatprep.subr.bf16.mxu0 %v2596
          %2615 = vmatpush1.bf16.msra.mxu0 %v2595
          %2616 = vmatprep.subr.bf16.mxu0 0
          %2617 = vmatpush1.bf16.msra.mxu0 0
          %2618 = vmatprep.subr.bf16.mxu0 0
          %2619 = vmatpush1.bf16.msra.mxu0 0
          %2620 = vmatprep.subr.bf16.mxu0 0
          %2621 = vmatpush1.bf16.msra.mxu0 0
          %2622 = vmatprep.subr.bf16.mxu0 0
          %2623 = vmatpush1.bf16.msra.mxu0 0
          %2624 = vmatprep.subr.bf16.mxu0 0
          %2625 = vmatpush1.bf16.msra.mxu0 0
          %2626 = vmatprep.subr.bf16.mxu0 0
          %2627 = vmatpush1.bf16.msra.mxu0 0
          %2628 = vmatprep.subr.bf16.mxu0 0
          %2629 = vmatpush1.bf16.msra.mxu0 0
          %2630 = vmatprep.subr.bf16.mxu0 0
          %2631 = vmatpush1.bf16.msra.mxu0 0
          %2632 = vmatprep.subr.bf16.mxu0 0
          %2633 = vmatpush1.bf16.msra.mxu0 0
          %2634 = vmatprep.subr.bf16.mxu0 0
          %2635 = vmatpush1.bf16.msra.mxu0 0
          %2636 = vmatprep.subr.bf16.mxu0 0
          %2637 = vmatpush1.bf16.msra.mxu0 0
          %2638 = vmatprep.subr.bf16.mxu0 0
          %2639 = vmatpush1.bf16.msra.mxu0 0
          %2640 = vmatprep.mubr.bf16.mxu0 0
          %2641 = vmatmul.mubr.bf16.gmra.mrb[0].mxu0 %v2606
          %v2642 = vpop.f32.mrb[0].mxu0
          %v2643 = vadd.f32 0.0, %v2642
          %v2644 = vpop.f32.mrb[0].mxu0
          %v2645 = vadd.f32 0.0, %v2644
          %v2646 = vpop.f32.mrb[0].mxu0
          %v2647 = vpop.f32.mrb[0].mxu0
          %2648 = vdwg.mxu0
          %v2649 = vmul.f32 %v2643, 0.25
          %v2650 = vpack.c.bf16 %v2645, %v2645
          %v2651 = vld [vmem:[%s2529 + $0x2] sm:$0x1]
          %v2652 = vlaneseq
          %v2653 = vshrl.u32 %v2652, 7
          %v2654 = vsub.s32 0, %v2653
          %v2655 = vrot.slane %v2651, %v2654
          %2657 = vrot.lane.b32.xlu0 %v2655, 64
          %v2658 = vpop.permute.xlu0 %2657
          %v2660 = vadd.f32 %v2645, %v2658
          %v2661 = vxor.u32 %v2660, 2147483648
          %v2662 = vmul.f32 %v2661, 1.442695
          %v2663 = vpow.pop %v2662
          %v2664 = vadd.f32 %v2663, 1.0
          %v2665 = vrcp.pop %v2664
          %v2666 = vmul.f32 1.0, %v2665
          %s2667 = scalar_lea.vmem [#allocation2], 16
          %v2668 = vld [vmem:[%s2667] sm:$0xf]
          %v2669 = vunpack.c.l.bf16 %v2668
          %2671 = vrot.lane.b32.xlu0 %v2649, 64
          %v2672 = vpop.permute.xlu0 %2671
          %v2674 = vsel %vm1412, %v2643, 0
          %v2676 = vsel %vm1412, %v2672, 0
          %2678 = vmatprep.subr.mxu0 0.0
          %2679 = vmatpush1.xpose.msra.mxu0 %v2676
          %2680 = vmatprep.subr.mxu0 0.0
          %2681 = vmatpush1.xpose.msra.mxu0 0.0
          %2682 = vmatprep.subr.mxu0 0.0
          %2683 = vmatpush1.xpose.msra.mxu0 0.0
          %2684 = vmatprep.subr.mxu0 0.0
          %2685 = vmatpush1.xpose.msra.mxu0 0.0
          %2686 = vmatprep.subr.mxu0 0.0
          %2687 = vmatpush1.xpose.msra.mxu0 0.0
          %2688 = vmatprep.subr.mxu0 0.0
          %2689 = vmatpush1.xpose.msra.mxu0 0.0
          %2690 = vmatprep.subr.mxu0 0.0
          %2691 = vmatpush1.xpose.msra.mxu0 0.0
          %2692 = vmatprep.subr.mxu0 0.0
          %2693 = vmatpush1.xpose.msra.mxu0 0.0
          %2694 = vmatprep.subr.mxu0 0.0
          %2695 = vmatpush1.xpose.msra.mxu0 0.0
          %2696 = vmatprep.subr.mxu0 0.0
          %2697 = vmatpush1.xpose.msra.mxu0 0.0
          %2698 = vmatprep.subr.mxu0 0.0
          %2699 = vmatpush1.xpose.msra.mxu0 0.0
          %2700 = vmatprep.subr.mxu0 0.0
          %2701 = vmatpush1.xpose.msra.mxu0 0.0
          %2702 = vmatprep.subr.mxu0 0.0
          %2703 = vmatpush1.xpose.msra.mxu0 0.0
          %2704 = vmatprep.subr.mxu0 0.0
          %2705 = vmatpush1.xpose.msra.mxu0 0.0
          %2706 = vmatprep.subr.mxu0 0.0
          %2707 = vmatpush1.xpose.msra.mxu0 0.0
          %2708 = vmatprep.subr.mxu0 0.0
          %2709 = vmatpush1.xpose.msra.mxu0 0.0
          %2710 = vmatprep.subr.mxu0 0.0
          %2711 = vmatpush1.xpose.msra.mxu0 0.0
          %2712 = vmatprep.subr.mxu0 0.0
          %2713 = vmatpush1.xpose.msra.mxu0 0.0
          %2714 = vmatprep.subr.mxu0 0.0
          %2715 = vmatpush1.xpose.msra.mxu0 0.0
          %2716 = vmatprep.subr.mxu0 0.0
          %2717 = vmatpush1.xpose.msra.mxu0 0.0
          %2718 = vmatprep.subr.mxu0 0.0
          %2719 = vmatpush1.xpose.msra.mxu0 0.0
          %2720 = vmatprep.subr.mxu0 0.0
          %2721 = vmatpush1.xpose.msra.mxu0 0.0
          %2722 = vmatprep.subr.mxu0 0.0
          %2723 = vmatpush1.xpose.msra.mxu0 0.0
          %2724 = vmatprep.subr.mxu0 0.0
          %2725 = vmatpush1.xpose.msra.mxu0 0.0
          %2726 = vmatprep.subr.mxu0 0.0
          %2727 = vmatpush1.xpose.msra.mxu0 0.0
          %2728 = vmatprep.subr.mxu0 0.0
          %2729 = vmatpush1.xpose.msra.mxu0 0.0
          %2730 = vmatprep.subr.mxu0 0.0
          %2731 = vmatpush1.xpose.msra.mxu0 0.0
          %2732 = vmatprep.subr.mxu0 0.0
          %2733 = vmatpush1.xpose.msra.mxu0 0.0
          %2734 = vmatprep.subr.mxu0 0.0
          %2735 = vmatpush1.xpose.msra.mxu0 0.0
          %2736 = vmatprep.subr.mxu0 0.0
          %2737 = vmatpush1.xpose.msra.mxu0 0.0
          %2738 = vmatprep.subr.mxu0 0.0
          %2739 = vmatpush1.xpose.msra.mxu0 0.0
          %2740 = vmatprep.subr.mxu0 0.0
          %2741 = vmatpush1.xpose.msra.mxu0 0.0
          %2742 = vmatprep.mubr.f32.mxu0 0.0
          %2743 = vmatmul.mubr.f32.gmra.mrb[0].mxu0 %v2674
          %v2744 = vpop.f32.mrb[0].mxu0
          %v2745 = vadd.f32 %v2669, %v2744
          %v2746 = vpop.f32.mrb[0].mxu0
          %2747 = vdwg.mxu0
          %v2748 = vsel %vm1488, %v2745, -inf
          %2749 = vmax.xlane.f32.xlu0 %v2748
          %v2750 = vpop.xlane.xlu0 %2749
          %v2751 = vsub.f32 %v2745, %v2750
          %v2752 = vmul.f32 %v2751, 1.442695
          %v2753 = vpow.pop %v2752
          %v2754 = vsel %vm1488, %v2753, 0.0
          %2755 = vadd.xlane.f32.xlu0 %v2754
          %v2756 = vpop.xlane.xlu0 %2755
          %v2757 = vrcp.pop %v2756
          %v2758 = vmul.f32 %v2753, %v2757
          %v2759 = vpack.c.bf16 %v2758, %v2758
          %v2761 = vsel %vm1488, %v2759, 0
          %v2764 = vsel %vm1504, %v2650, 0
          %2766 = vmatprep.subr.bf16.mxu0 0
          %2767 = vmatpush1.bf16.msra.mxu0 %v2764
          %2768 = vmatprep.subr.bf16.mxu0 0
          %2769 = vmatpush1.bf16.msra.mxu0 0
          %2770 = vmatprep.subr.bf16.mxu0 0
          %2771 = vmatpush1.bf16.msra.mxu0 0
          %2772 = vmatprep.subr.bf16.mxu0 0
          %2773 = vmatpush1.bf16.msra.mxu0 0
          %2774 = vmatprep.subr.bf16.mxu0 0
          %2775 = vmatpush1.bf16.msra.mxu0 0
          %2776 = vmatprep.subr.bf16.mxu0 0
          %2777 = vmatpush1.bf16.msra.mxu0 0
          %2778 = vmatprep.subr.bf16.mxu0 0
          %2779 = vmatpush1.bf16.msra.mxu0 0
          %2780 = vmatprep.subr.bf16.mxu0 0
          %2781 = vmatpush1.bf16.msra.mxu0 0
          %2782 = vmatprep.subr.bf16.mxu0 0
          %2783 = vmatpush1.bf16.msra.mxu0 0
          %2784 = vmatprep.subr.bf16.mxu0 0
          %2785 = vmatpush1.bf16.msra.mxu0 0
          %2786 = vmatprep.subr.bf16.mxu0 0
          %2787 = vmatpush1.bf16.msra.mxu0 0
          %2788 = vmatprep.subr.bf16.mxu0 0
          %2789 = vmatpush1.bf16.msra.mxu0 0
          %2790 = vmatprep.subr.bf16.mxu0 0
          %2791 = vmatpush1.bf16.msra.mxu0 0
          %2792 = vmatprep.subr.bf16.mxu0 0
          %2793 = vmatpush1.bf16.msra.mxu0 0
          %2794 = vmatprep.subr.bf16.mxu0 0
          %2795 = vmatpush1.bf16.msra.mxu0 0
          %2796 = vmatprep.subr.bf16.mxu0 0
          %2797 = vmatpush1.bf16.msra.mxu0 0
          %2798 = vmatprep.mubr.bf16.mxu0 0
          %2799 = vmatmul.mubr.bf16.gmra.mrb[0].mxu0 %v2761
          %v2800 = vpop.f32.mrb[0].mxu0
          %v2801 = vadd.f32 0.0, %v2800
          %v2802 = vpop.f32.mrb[0].mxu0
          %v2803 = vpop.f32.mrb[0].mxu0
          %v2804 = vpop.f32.mrb[0].mxu0
          %2805 = vdwg.mxu0
          %2807 = vrot.lane.b32.xlu0 %v2801, 64
          %v2808 = vpop.permute.xlu0 %2807
          %v2810 = vmul.f32 %v2666, %v2808
          %v2811 = vpack.c.bf16 %v2810, %v2810
          %s2812 = scalar_lea.vmem [#allocation20], 160
          %v2813 = vld [vmem:[%s2812] sm:$0xf]
          %v2814 = vld [vmem:[%s2812 + $0x4] sm:$0xf]
          %s2815 = scalar_lea.vmem [#allocation2], 20
          %v2816 = vld [vmem:[%s2815] sm:$0xf]
          %v2817 = vunpack.c.l.bf16 %v2816
          %2818 = vrot.lane.b32.xlu0 %v2643, 112
          %v2819 = vpop.permute.xlu0 %2818
          %2820 = vrot.lane.b32.xlu0 %v2649, 48
          %v2821 = vpop.permute.xlu0 %2820
          %v2822 = vsel %vm1412, %v2819, 0
          %v2824 = vsel %vm1412, %v2821, 0
          %2826 = vmatprep.subr.mxu0 0.0
          %2827 = vmatpush1.xpose.msra.mxu0 %v2824
          %2828 = vmatprep.subr.mxu0 0.0
          %2829 = vmatpush1.xpose.msra.mxu0 0.0
          %2830 = vmatprep.subr.mxu0 0.0
          %2831 = vmatpush1.xpose.msra.mxu0 0.0
          %2832 = vmatprep.subr.mxu0 0.0
          %2833 = vmatpush1.xpose.msra.mxu0 0.0
          %2834 = vmatprep.subr.mxu0 0.0
          %2835 = vmatpush1.xpose.msra.mxu0 0.0
          %2836 = vmatprep.subr.mxu0 0.0
          %2837 = vmatpush1.xpose.msra.mxu0 0.0
          %2838 = vmatprep.subr.mxu0 0.0
          %2839 = vmatpush1.xpose.msra.mxu0 0.0
          %2840 = vmatprep.subr.mxu0 0.0
          %2841 = vmatpush1.xpose.msra.mxu0 0.0
          %2842 = vmatprep.subr.mxu0 0.0
          %2843 = vmatpush1.xpose.msra.mxu0 0.0
          %2844 = vmatprep.subr.mxu0 0.0
          %2845 = vmatpush1.xpose.msra.mxu0 0.0
          %2846 = vmatprep.subr.mxu0 0.0
          %2847 = vmatpush1.xpose.msra.mxu0 0.0
          %2848 = vmatprep.subr.mxu0 0.0
          %2849 = vmatpush1.xpose.msra.mxu0 0.0
          %2850 = vmatprep.subr.mxu0 0.0
          %2851 = vmatpush1.xpose.msra.mxu0 0.0
          %2852 = vmatprep.subr.mxu0 0.0
          %2853 = vmatpush1.xpose.msra.mxu0 0.0
          %2854 = vmatprep.subr.mxu0 0.0
          %2855 = vmatpush1.xpose.msra.mxu0 0.0
          %2856 = vmatprep.subr.mxu0 0.0
          %2857 = vmatpush1.xpose.msra.mxu0 0.0
          %2858 = vmatprep.subr.mxu0 0.0
          %2859 = vmatpush1.xpose.msra.mxu0 0.0
          %2860 = vmatprep.subr.mxu0 0.0
          %2861 = vmatpush1.xpose.msra.mxu0 0.0
          %2862 = vmatprep.subr.mxu0 0.0
          %2863 = vmatpush1.xpose.msra.mxu0 0.0
          %2864 = vmatprep.subr.mxu0 0.0
          %2865 = vmatpush1.xpose.msra.mxu0 0.0
          %2866 = vmatprep.subr.mxu0 0.0
          %2867 = vmatpush1.xpose.msra.mxu0 0.0
          %2868 = vmatprep.subr.mxu0 0.0
          %2869 = vmatpush1.xpose.msra.mxu0 0.0
          %2870 = vmatprep.subr.mxu0 0.0
          %2871 = vmatpush1.xpose.msra.mxu0 0.0
          %2872 = vmatprep.subr.mxu0 0.0
          %2873 = vmatpush1.xpose.msra.mxu0 0.0
          %2874 = vmatprep.subr.mxu0 0.0
          %2875 = vmatpush1.xpose.msra.mxu0 0.0
          %2876 = vmatprep.subr.mxu0 0.0
          %2877 = vmatpush1.xpose.msra.mxu0 0.0
          %2878 = vmatprep.subr.mxu0 0.0
          %2879 = vmatpush1.xpose.msra.mxu0 0.0
          %2880 = vmatprep.subr.mxu0 0.0
          %2881 = vmatpush1.xpose.msra.mxu0 0.0
          %2882 = vmatprep.subr.mxu0 0.0
          %2883 = vmatpush1.xpose.msra.mxu0 0.0
          %2884 = vmatprep.subr.mxu0 0.0
          %2885 = vmatpush1.xpose.msra.mxu0 0.0
          %2886 = vmatprep.subr.mxu0 0.0
          %2887 = vmatpush1.xpose.msra.mxu0 0.0
          %2888 = vmatprep.subr.mxu0 0.0
          %2889 = vmatpush1.xpose.msra.mxu0 0.0
          %2890 = vmatprep.mubr.f32.mxu0 0.0
          %2891 = vmatmul.mubr.f32.gmra.mrb[0].mxu0 %v2822
          %v2892 = vpop.f32.mrb[0].mxu0
          %v2893 = vadd.f32 %v2817, %v2892
          %v2894 = vpop.f32.mrb[0].mxu0
          %2895 = vdwg.mxu0
          %v2896 = vsel %vm1488, %v2893, -inf
          %2897 = vmax.xlane.f32.xlu0 %v2896
          %v2898 = vpop.xlane.xlu0 %2897
          %v2899 = vsub.f32 %v2893, %v2898
          %v2900 = vmul.f32 %v2899, 1.442695
          %v2901 = vpow.pop %v2900
          %v2902 = vsel %vm1488, %v2901, 0.0
          %2903 = vadd.xlane.f32.xlu0 %v2902
          %v2904 = vpop.xlane.xlu0 %2903
          %v2905 = vrcp.pop %v2904
          %v2906 = vmul.f32 %v2901, %v2905
          %v2907 = vpack.c.bf16 %v2906, %v2906
          %2909 = vrot.lane.b32.xlu0 %v2650, 112
          %v2910 = vpop.permute.xlu0 %2909
          %v2912 = vsel %vm1488, %v2907, 0
          %v2915 = vsel %vm1504, %v2910, 0
          %2917 = vmatprep.subr.bf16.mxu0 0
          %2918 = vmatpush1.bf16.msra.mxu0 %v2915
          %2919 = vmatprep.subr.bf16.mxu0 0
          %2920 = vmatpush1.bf16.msra.mxu0 0
          %2921 = vmatprep.subr.bf16.mxu0 0
          %2922 = vmatpush1.bf16.msra.mxu0 0
          %2923 = vmatprep.subr.bf16.mxu0 0
          %2924 = vmatpush1.bf16.msra.mxu0 0
          %2925 = vmatprep.subr.bf16.mxu0 0
          %2926 = vmatpush1.bf16.msra.mxu0 0
          %2927 = vmatprep.subr.bf16.mxu0 0
          %2928 = vmatpush1.bf16.msra.mxu0 0
          %2929 = vmatprep.subr.bf16.mxu0 0
          %2930 = vmatpush1.bf16.msra.mxu0 0
          %2931 = vmatprep.subr.bf16.mxu0 0
          %2932 = vmatpush1.bf16.msra.mxu0 0
          %2933 = vmatprep.subr.bf16.mxu0 0
          %2934 = vmatpush1.bf16.msra.mxu0 0
          %2935 = vmatprep.subr.bf16.mxu0 0
          %2936 = vmatpush1.bf16.msra.mxu0 0
          %2937 = vmatprep.subr.bf16.mxu0 0
          %2938 = vmatpush1.bf16.msra.mxu0 0
          %2939 = vmatprep.subr.bf16.mxu0 0
          %2940 = vmatpush1.bf16.msra.mxu0 0
          %2941 = vmatprep.subr.bf16.mxu0 0
          %2942 = vmatpush1.bf16.msra.mxu0 0
          %2943 = vmatprep.subr.bf16.mxu0 0
          %2944 = vmatpush1.bf16.msra.mxu0 0
          %2945 = vmatprep.subr.bf16.mxu0 0
          %2946 = vmatpush1.bf16.msra.mxu0 0
          %2947 = vmatprep.subr.bf16.mxu0 0
          %2948 = vmatpush1.bf16.msra.mxu0 0
          %2949 = vmatprep.mubr.bf16.mxu0 0
          %2950 = vmatmul.mubr.bf16.gmra.mrb[0].mxu0 %v2912
          %v2951 = vpop.f32.mrb[0].mxu0
          %v2952 = vadd.f32 0.0, %v2951
          %v2953 = vpop.f32.mrb[0].mxu0
          %v2954 = vpop.f32.mrb[0].mxu0
          %v2955 = vpop.f32.mrb[0].mxu0
          %2956 = vdwg.mxu0
          %2958 = vrot.lane.b32.xlu0 %v2952, 80
          %v2959 = vpop.permute.xlu0 %2958
          %v2961 = vmul.f32 %v2666, %v2959
          %v2962 = vpack.c.bf16 %v2961, %v2961
          %v2963 = vld [vmem:[%s2812 + $0x8] sm:$0xf]
          %v2964 = vld [vmem:[%s2812 + $0xc] sm:$0xf]
          %2966 = vrot.lane.b32.xlu0 %v2962, 48
          %v2967 = vpop.permute.xlu0 %2966
          %v2970 = vunpack.c.l.b16 %v2963
          %v2971 = vunpack.c.l.b16 %v2964
          %v2972 = vpack.c.b16 %v2971, %v2970
          %v2975 = vsel %vm1412, %v2967, 0
          %2977 = vmatprep.subr.bf16.mxu0 0
          %2978 = vmatpush1.bf16.msra.mxu0 %v2972
          %2979 = vmatprep.subr.bf16.mxu0 0
          %2980 = vmatpush1.bf16.msra.mxu0 0
          %2981 = vmatprep.subr.bf16.mxu0 0
          %2982 = vmatpush1.bf16.msra.mxu0 0
          %2983 = vmatprep.subr.bf16.mxu0 0
          %2984 = vmatpush1.bf16.msra.mxu0 0
          %2985 = vmatprep.subr.bf16.mxu0 0
          %2986 = vmatpush1.bf16.msra.mxu0 0
          %2987 = vmatprep.subr.bf16.mxu0 0
          %2988 = vmatpush1.bf16.msra.mxu0 0
          %2989 = vmatprep.subr.bf16.mxu0 0
          %2990 = vmatpush1.bf16.msra.mxu0 0
          %2991 = vmatprep.subr.bf16.mxu0 0
          %2992 = vmatpush1.bf16.msra.mxu0 0
          %2993 = vmatprep.subr.bf16.mxu0 0
          %2994 = vmatpush1.bf16.msra.mxu0 0
          %2995 = vmatprep.subr.bf16.mxu0 0
          %2996 = vmatpush1.bf16.msra.mxu0 0
          %2997 = vmatprep.subr.bf16.mxu0 0
          %2998 = vmatpush1.bf16.msra.mxu0 0
          %2999 = vmatprep.subr.bf16.mxu0 0
          %3000 = vmatpush1.bf16.msra.mxu0 0
          %3001 = vmatprep.subr.bf16.mxu0 0
          %3002 = vmatpush1.bf16.msra.mxu0 0
          %3003 = vmatprep.subr.bf16.mxu0 0
          %3004 = vmatpush1.bf16.msra.mxu0 0
          %3005 = vmatprep.subr.bf16.mxu0 0
          %3006 = vmatpush1.bf16.msra.mxu0 0
          %3007 = vmatprep.subr.bf16.mxu0 0
          %3008 = vmatpush1.bf16.msra.mxu0 0
          %3009 = vmatprep.mubr.bf16.mxu0 0
          %3010 = vmatmul.mubr.bf16.gmra.mrb[0].mxu0 %v2975
          %v3011 = vpop.f32.mrb[0].mxu0
          %v3012 = vadd.f32 0.0, %v3011
          %v3013 = vpop.f32.mrb[0].mxu0
          %v3014 = vpop.f32.mrb[0].mxu0
          %v3015 = vpop.f32.mrb[0].mxu0
          %3016 = vdwg.mxu0
          %3018 = vrot.lane.b32.xlu0 %v2811, 64
          %v3019 = vpop.permute.xlu0 %3018
          %v3022 = vunpack.c.l.b16 %v2813
          %v3023 = vunpack.c.l.b16 %v2814
          %v3024 = vpack.c.b16 %v3023, %v3022
          %v3027 = vsel %vm1412, %v3019, 0
          %3029 = vmatprep.subr.bf16.mxu0 0
          %3030 = vmatpush1.bf16.msra.mxu0 %v3024
          %3031 = vmatprep.subr.bf16.mxu0 0
          %3032 = vmatpush1.bf16.msra.mxu0 0
          %3033 = vmatprep.subr.bf16.mxu0 0
          %3034 = vmatpush1.bf16.msra.mxu0 0
          %3035 = vmatprep.subr.bf16.mxu0 0
          %3036 = vmatpush1.bf16.msra.mxu0 0
          %3037 = vmatprep.subr.bf16.mxu0 0
          %3038 = vmatpush1.bf16.msra.mxu0 0
          %3039 = vmatprep.subr.bf16.mxu0 0
          %3040 = vmatpush1.bf16.msra.mxu0 0
          %3041 = vmatprep.subr.bf16.mxu0 0
          %3042 = vmatpush1.bf16.msra.mxu0 0
          %3043 = vmatprep.subr.bf16.mxu0 0
          %3044 = vmatpush1.bf16.msra.mxu0 0
          %3045 = vmatprep.subr.bf16.mxu0 0
          %3046 = vmatpush1.bf16.msra.mxu0 0
          %3047 = vmatprep.subr.bf16.mxu0 0
          %3048 = vmatpush1.bf16.msra.mxu0 0
          %3049 = vmatprep.subr.bf16.mxu0 0
          %3050 = vmatpush1.bf16.msra.mxu0 0
          %3051 = vmatprep.subr.bf16.mxu0 0
          %3052 = vmatpush1.bf16.msra.mxu0 0
          %3053 = vmatprep.subr.bf16.mxu0 0
          %3054 = vmatpush1.bf16.msra.mxu0 0
          %3055 = vmatprep.subr.bf16.mxu0 0
          %3056 = vmatpush1.bf16.msra.mxu0 0
          %3057 = vmatprep.subr.bf16.mxu0 0
          %3058 = vmatpush1.bf16.msra.mxu0 0
          %3059 = vmatprep.subr.bf16.mxu0 0
          %3060 = vmatpush1.bf16.msra.mxu0 0
          %3061 = vmatprep.mubr.bf16.mxu0 0
          %3062 = vmatmul.mubr.bf16.gmra.mrb[0].mxu0 %v3027
          %v3063 = vpop.f32.mrb[0].mxu0
          %v3064 = vadd.f32 %v3012, %v3063
          %v3065 = vpop.f32.mrb[0].mxu0
          %v3066 = vpop.f32.mrb[0].mxu0
          %v3067 = vpop.f32.mrb[0].mxu0
          %3068 = vdwg.mxu0
          %s3069 = scalar_lea.vmem [#allocation2], 24
          %v3070 = vld [vmem:[%s3069] sm:$0xf]
          %v3071 = vunpack.c.l.bf16 %v3070
          %3072 = vrot.lane.b32.xlu0 %v2643, 96
          %v3073 = vpop.permute.xlu0 %3072
          %3074 = vrot.lane.b32.xlu0 %v2649, 32
          %v3075 = vpop.permute.xlu0 %3074
          %v3076 = vsel %vm1412, %v3073, 0
          %v3078 = vsel %vm1412, %v3075, 0
          %3080 = vmatprep.subr.mxu0 0.0
          %3081 = vmatpush1.xpose.msra.mxu0 %v3078
          %3082 = vmatprep.subr.mxu0 0.0
          %3083 = vmatpush1.xpose.msra.mxu0 0.0
          %3084 = vmatprep.subr.mxu0 0.0
          %3085 = vmatpush1.xpose.msra.mxu0 0.0
          %3086 = vmatprep.subr.mxu0 0.0
          %3087 = vmatpush1.xpose.msra.mxu0 0.0
          %3088 = vmatprep.subr.mxu0 0.0
          %3089 = vmatpush1.xpose.msra.mxu0 0.0
          %3090 = vmatprep.subr.mxu0 0.0
          %3091 = vmatpush1.xpose.msra.mxu0 0.0
          %3092 = vmatprep.subr.mxu0 0.0
          %3093 = vmatpush1.xpose.msra.mxu0 0.0
          %3094 = vmatprep.subr.mxu0 0.0
          %3095 = vmatpush1.xpose.msra.mxu0 0.0
          %3096 = vmatprep.subr.mxu0 0.0
          %3097 = vmatpush1.xpose.msra.mxu0 0.0
          %3098 = vmatprep.subr.mxu0 0.0
          %3099 = vmatpush1.xpose.msra.mxu0 0.0
          %3100 = vmatprep.subr.mxu0 0.0
          %3101 = vmatpush1.xpose.msra.mxu0 0.0
          %3102 = vmatprep.subr.mxu0 0.0
          %3103 = vmatpush1.xpose.msra.mxu0 0.0
          %3104 = vmatprep.subr.mxu0 0.0
          %3105 = vmatpush1.xpose.msra.mxu0 0.0
          %3106 = vmatprep.subr.mxu0 0.0
          %3107 = vmatpush1.xpose.msra.mxu0 0.0
          %3108 = vmatprep.subr.mxu0 0.0
          %3109 = vmatpush1.xpose.msra.mxu0 0.0
          %3110 = vmatprep.subr.mxu0 0.0
          %3111 = vmatpush1.xpose.msra.mxu0 0.0
          %3112 = vmatprep.subr.mxu0 0.0
          %3113 = vmatpush1.xpose.msra.mxu0 0.0
          %3114 = vmatprep.subr.mxu0 0.0
          %3115 = vmatpush1.xpose.msra.mxu0 0.0
          %3116 = vmatprep.subr.mxu0 0.0
          %3117 = vmatpush1.xpose.msra.mxu0 0.0
          %3118 = vmatprep.subr.mxu0 0.0
          %3119 = vmatpush1.xpose.msra.mxu0 0.0
          %3120 = vmatprep.subr.mxu0 0.0
          %3121 = vmatpush1.xpose.msra.mxu0 0.0
          %3122 = vmatprep.subr.mxu0 0.0
          %3123 = vmatpush1.xpose.msra.mxu0 0.0
          %3124 = vmatprep.subr.mxu0 0.0
          %3125 = vmatpush1.xpose.msra.mxu0 0.0
          %3126 = vmatprep.subr.mxu0 0.0
          %3127 = vmatpush1.xpose.msra.mxu0 0.0
          %3128 = vmatprep.subr.mxu0 0.0
          %3129 = vmatpush1.xpose.msra.mxu0 0.0
          %3130 = vmatprep.subr.mxu0 0.0
          %3131 = vmatpush1.xpose.msra.mxu0 0.0
          %3132 = vmatprep.subr.mxu0 0.0
          %3133 = vmatpush1.xpose.msra.mxu0 0.0
          %3134 = vmatprep.subr.mxu0 0.0
          %3135 = vmatpush1.xpose.msra.mxu0 0.0
          %3136 = vmatprep.subr.mxu0 0.0
          %3137 = vmatpush1.xpose.msra.mxu0 0.0
          %3138 = vmatprep.subr.mxu0 0.0
          %3139 = vmatpush1.xpose.msra.mxu0 0.0
          %3140 = vmatprep.subr.mxu0 0.0
          %3141 = vmatpush1.xpose.msra.mxu0 0.0
          %3142 = vmatprep.subr.mxu0 0.0
          %3143 = vmatpush1.xpose.msra.mxu0 0.0
          %3144 = vmatprep.mubr.f32.mxu0 0.0
          %3145 = vmatmul.mubr.f32.gmra.mrb[0].mxu0 %v3076
          %v3146 = vpop.f32.mrb[0].mxu0
          %v3147 = vadd.f32 %v3071, %v3146
          %v3148 = vpop.f32.mrb[0].mxu0
          %3149 = vdwg.mxu0
          %v3150 = vsel %vm1488, %v3147, -inf
          %3151 = vmax.xlane.f32.xlu0 %v3150
          %v3152 = vpop.xlane.xlu0 %3151
          %v3153 = vsub.f32 %v3147, %v3152
          %v3154 = vmul.f32 %v3153, 1.442695
          %v3155 = vpow.pop %v3154
          %v3156 = vsel %vm1488, %v3155, 0.0
          %3157 = vadd.xlane.f32.xlu0 %v3156
          %v3158 = vpop.xlane.xlu0 %3157
          %v3159 = vrcp.pop %v3158
          %v3160 = vmul.f32 %v3155, %v3159
          %v3161 = vpack.c.bf16 %v3160, %v3160
          %3162 = vrot.lane.b32.xlu0 %v2650, 96
          %v3163 = vpop.permute.xlu0 %3162
          %v3165 = vsel %vm1488, %v3161, 0
          %v3168 = vsel %vm1504, %v3163, 0
          %3170 = vmatprep.subr.bf16.mxu0 0
          %3171 = vmatpush1.bf16.msra.mxu0 %v3168
          %3172 = vmatprep.subr.bf16.mxu0 0
          %3173 = vmatpush1.bf16.msra.mxu0 0
          %3174 = vmatprep.subr.bf16.mxu0 0
          %3175 = vmatpush1.bf16.msra.mxu0 0
          %3176 = vmatprep.subr.bf16.mxu0 0
          %3177 = vmatpush1.bf16.msra.mxu0 0
          %3178 = vmatprep.subr.bf16.mxu0 0
          %3179 = vmatpush1.bf16.msra.mxu0 0
          %3180 = vmatprep.subr.bf16.mxu0 0
          %3181 = vmatpush1.bf16.msra.mxu0 0
          %3182 = vmatprep.subr.bf16.mxu0 0
          %3183 = vmatpush1.bf16.msra.mxu0 0
          %3184 = vmatprep.subr.bf16.mxu0 0
          %3185 = vmatpush1.bf16.msra.mxu0 0
          %3186 = vmatprep.subr.bf16.mxu0 0
          %3187 = vmatpush1.bf16.msra.mxu0 0
          %3188 = vmatprep.subr.bf16.mxu0 0
          %3189 = vmatpush1.bf16.msra.mxu0 0
          %3190 = vmatprep.subr.bf16.mxu0 0
          %3191 = vmatpush1.bf16.msra.mxu0 0
          %3192 = vmatprep.subr.bf16.mxu0 0
          %3193 = vmatpush1.bf16.msra.mxu0 0
          %3194 = vmatprep.subr.bf16.mxu0 0
          %3195 = vmatpush1.bf16.msra.mxu0 0
          %3196 = vmatprep.subr.bf16.mxu0 0
          %3197 = vmatpush1.bf16.msra.mxu0 0
          %3198 = vmatprep.subr.bf16.mxu0 0
          %3199 = vmatpush1.bf16.msra.mxu0 0
          %3200 = vmatprep.subr.bf16.mxu0 0
          %3201 = vmatpush1.bf16.msra.mxu0 0
          %3202 = vmatprep.mubr.bf16.mxu0 0
          %3203 = vmatmul.mubr.bf16.gmra.mrb[0].mxu0 %v3165
          %v3204 = vpop.f32.mrb[0].mxu0
          %v3205 = vadd.f32 0.0, %v3204
          %v3206 = vpop.f32.mrb[0].mxu0
          %v3207 = vpop.f32.mrb[0].mxu0
          %v3208 = vpop.f32.mrb[0].mxu0
          %3209 = vdwg.mxu0
          %3211 = vrot.lane.b32.xlu0 %v3205, 96
          %v3212 = vpop.permute.xlu0 %3211
          %v3214 = vmul.f32 %v2666, %v3212
          %v3215 = vpack.c.bf16 %v3214, %v3214
          %v3216 = vld [vmem:[%s2812 + $0x10] sm:$0xf]
          %v3217 = vld [vmem:[%s2812 + $0x14] sm:$0xf]
          %3219 = vrot.lane.b32.xlu0 %v3215, 32
          %v3220 = vpop.permute.xlu0 %3219
          %v3223 = vunpack.c.l.b16 %v3216
          %v3224 = vunpack.c.l.b16 %v3217
          %v3225 = vpack.c.b16 %v3224, %v3223
          %v3228 = vsel %vm1412, %v3220, 0
          %3230 = vmatprep.subr.bf16.mxu0 0
          %3231 = vmatpush1.bf16.msra.mxu0 %v3225
          %3232 = vmatprep.subr.bf16.mxu0 0
          %3233 = vmatpush1.bf16.msra.mxu0 0
          %3234 = vmatprep.subr.bf16.mxu0 0
          %3235 = vmatpush1.bf16.msra.mxu0 0
          %3236 = vmatprep.subr.bf16.mxu0 0
          %3237 = vmatpush1.bf16.msra.mxu0 0
          %3238 = vmatprep.subr.bf16.mxu0 0
          %3239 = vmatpush1.bf16.msra.mxu0 0
          %3240 = vmatprep.subr.bf16.mxu0 0
          %3241 = vmatpush1.bf16.msra.mxu0 0
          %3242 = vmatprep.subr.bf16.mxu0 0
          %3243 = vmatpush1.bf16.msra.mxu0 0
          %3244 = vmatprep.subr.bf16.mxu0 0
          %3245 = vmatpush1.bf16.msra.mxu0 0
          %3246 = vmatprep.subr.bf16.mxu0 0
          %3247 = vmatpush1.bf16.msra.mxu0 0
          %3248 = vmatprep.subr.bf16.mxu0 0
          %3249 = vmatpush1.bf16.msra.mxu0 0
          %3250 = vmatprep.subr.bf16.mxu0 0
          %3251 = vmatpush1.bf16.msra.mxu0 0
          %3252 = vmatprep.subr.bf16.mxu0 0
          %3253 = vmatpush1.bf16.msra.mxu0 0
          %3254 = vmatprep.subr.bf16.mxu0 0
          %3255 = vmatpush1.bf16.msra.mxu0 0
          %3256 = vmatprep.subr.bf16.mxu0 0
          %3257 = vmatpush1.bf16.msra.mxu0 0
          %3258 = vmatprep.subr.bf16.mxu0 0
          %3259 = vmatpush1.bf16.msra.mxu0 0
          %3260 = vmatprep.subr.bf16.mxu0 0
          %3261 = vmatpush1.bf16.msra.mxu0 0
          %3262 = vmatprep.mubr.bf16.mxu0 0
          %3263 = vmatmul.mubr.bf16.gmra.mrb[0].mxu0 %v3228
          %v3264 = vpop.f32.mrb[0].mxu0
          %v3265 = vadd.f32 0.0, %v3264
          %v3266 = vpop.f32.mrb[0].mxu0
          %v3267 = vpop.f32.mrb[0].mxu0
          %v3268 = vpop.f32.mrb[0].mxu0
          %3269 = vdwg.mxu0
          %v3270 = vadd.f32 %v3064, %v3265
          %s3271 = scalar_lea.vmem [#allocation2], 28
          %v3272 = vld [vmem:[%s3271] sm:$0xf]
          %v3273 = vunpack.c.l.bf16 %v3272
          %3274 = vrot.lane.b32.xlu0 %v2643, 80
          %v3275 = vpop.permute.xlu0 %3274
          %3276 = vrot.lane.b32.xlu0 %v2649, 16
          %v3277 = vpop.permute.xlu0 %3276
          %v3278 = vsel %vm1412, %v3275, 0
          %v3280 = vsel %vm1412, %v3277, 0
          %3282 = vmatprep.subr.mxu0 0.0
          %3283 = vmatpush1.xpose.msra.mxu0 %v3280
          %3284 = vmatprep.subr.mxu0 0.0
          %3285 = vmatpush1.xpose.msra.mxu0 0.0
          %3286 = vmatprep.subr.mxu0 0.0
          %3287 = vmatpush1.xpose.msra.mxu0 0.0
          %3288 = vmatprep.subr.mxu0 0.0
          %3289 = vmatpush1.xpose.msra.mxu0 0.0
          %3290 = vmatprep.subr.mxu0 0.0
          %3291 = vmatpush1.xpose.msra.mxu0 0.0
          %3292 = vmatprep.subr.mxu0 0.0
          %3293 = vmatpush1.xpose.msra.mxu0 0.0
          %3294 = vmatprep.subr.mxu0 0.0
          %3295 = vmatpush1.xpose.msra.mxu0 0.0
          %3296 = vmatprep.subr.mxu0 0.0
          %3297 = vmatpush1.xpose.msra.mxu0 0.0
          %3298 = vmatprep.subr.mxu0 0.0
          %3299 = vmatpush1.xpose.msra.mxu0 0.0
          %3300 = vmatprep.subr.mxu0 0.0
          %3301 = vmatpush1.xpose.msra.mxu0 0.0
          %3302 = vmatprep.subr.mxu0 0.0
          %3303 = vmatpush1.xpose.msra.mxu0 0.0
          %3304 = vmatprep.subr.mxu0 0.0
          %3305 = vmatpush1.xpose.msra.mxu0 0.0
          %3306 = vmatprep.subr.mxu0 0.0
          %3307 = vmatpush1.xpose.msra.mxu0 0.0
          %3308 = vmatprep.subr.mxu0 0.0
          %3309 = vmatpush1.xpose.msra.mxu0 0.0
          %3310 = vmatprep.subr.mxu0 0.0
          %3311 = vmatpush1.xpose.msra.mxu0 0.0
          %3312 = vmatprep.subr.mxu0 0.0
          %3313 = vmatpush1.xpose.msra.mxu0 0.0
          %3314 = vmatprep.subr.mxu0 0.0
          %3315 = vmatpush1.xpose.msra.mxu0 0.0
          %3316 = vmatprep.subr.mxu0 0.0
          %3317 = vmatpush1.xpose.msra.mxu0 0.0
          %3318 = vmatprep.subr.mxu0 0.0
          %3319 = vmatpush1.xpose.msra.mxu0 0.0
          %3320 = vmatprep.subr.mxu0 0.0
          %3321 = vmatpush1.xpose.msra.mxu0 0.0
          %3322 = vmatprep.subr.mxu0 0.0
          %3323 = vmatpush1.xpose.msra.mxu0 0.0
          %3324 = vmatprep.subr.mxu0 0.0
          %3325 = vmatpush1.xpose.msra.mxu0 0.0
          %3326 = vmatprep.subr.mxu0 0.0
          %3327 = vmatpush1.xpose.msra.mxu0 0.0
          %3328 = vmatprep.subr.mxu0 0.0
          %3329 = vmatpush1.xpose.msra.mxu0 0.0
          %3330 = vmatprep.subr.mxu0 0.0
          %3331 = vmatpush1.xpose.msra.mxu0 0.0
          %3332 = vmatprep.subr.mxu0 0.0
          %3333 = vmatpush1.xpose.msra.mxu0 0.0
          %3334 = vmatprep.subr.mxu0 0.0
          %3335 = vmatpush1.xpose.msra.mxu0 0.0
          %3336 = vmatprep.subr.mxu0 0.0
          %3337 = vmatpush1.xpose.msra.mxu0 0.0
          %3338 = vmatprep.subr.mxu0 0.0
          %3339 = vmatpush1.xpose.msra.mxu0 0.0
          %3340 = vmatprep.subr.mxu0 0.0
          %3341 = vmatpush1.xpose.msra.mxu0 0.0
          %3342 = vmatprep.subr.mxu0 0.0
          %3343 = vmatpush1.xpose.msra.mxu0 0.0
          %3344 = vmatprep.subr.mxu0 0.0
          %3345 = vmatpush1.xpose.msra.mxu0 0.0
          %3346 = vmatprep.mubr.f32.mxu0 0.0
          %3347 = vmatmul.mubr.f32.gmra.mrb[0].mxu0 %v3278
          %v3348 = vpop.f32.mrb[0].mxu0
          %v3349 = vadd.f32 %v3273, %v3348
          %v3350 = vpop.f32.mrb[0].mxu0
          %3351 = vdwg.mxu0
          %v3352 = vsel %vm1488, %v3349, -inf
          %3353 = vmax.xlane.f32.xlu0 %v3352
          %v3354 = vpop.xlane.xlu0 %3353
          %v3355 = vsub.f32 %v3349, %v3354
          %v3356 = vmul.f32 %v3355, 1.442695
          %v3357 = vpow.pop %v3356
          %v3358 = vsel %vm1488, %v3357, 0.0
          %3359 = vadd.xlane.f32.xlu0 %v3358
          %v3360 = vpop.xlane.xlu0 %3359
          %v3361 = vrcp.pop %v3360
          %v3362 = vmul.f32 %v3357, %v3361
          %v3363 = vpack.c.bf16 %v3362, %v3362
          %3364 = vrot.lane.b32.xlu0 %v2650, 80
          %v3365 = vpop.permute.xlu0 %3364
          %v3367 = vsel %vm1488, %v3363, 0
          %v3370 = vsel %vm1504, %v3365, 0
          %3372 = vmatprep.subr.bf16.mxu0 0
          %3373 = vmatpush1.bf16.msra.mxu0 %v3370
          %3374 = vmatprep.subr.bf16.mxu0 0
          %3375 = vmatpush1.bf16.msra.mxu0 0
          %3376 = vmatprep.subr.bf16.mxu0 0
          %3377 = vmatpush1.bf16.msra.mxu0 0
          %3378 = vmatprep.subr.bf16.mxu0 0
          %3379 = vmatpush1.bf16.msra.mxu0 0
          %3380 = vmatprep.subr.bf16.mxu0 0
          %3381 = vmatpush1.bf16.msra.mxu0 0
          %3382 = vmatprep.subr.bf16.mxu0 0
          %3383 = vmatpush1.bf16.msra.mxu0 0
          %3384 = vmatprep.subr.bf16.mxu0 0
          %3385 = vmatpush1.bf16.msra.mxu0 0
          %3386 = vmatprep.subr.bf16.mxu0 0
          %3387 = vmatpush1.bf16.msra.mxu0 0
          %3388 = vmatprep.subr.bf16.mxu0 0
          %3389 = vmatpush1.bf16.msra.mxu0 0
          %3390 = vmatprep.subr.bf16.mxu0 0
          %3391 = vmatpush1.bf16.msra.mxu0 0
          %3392 = vmatprep.subr.bf16.mxu0 0
          %3393 = vmatpush1.bf16.msra.mxu0 0
          %3394 = vmatprep.subr.bf16.mxu0 0
          %3395 = vmatpush1.bf16.msra.mxu0 0
          %3396 = vmatprep.subr.bf16.mxu0 0
          %3397 = vmatpush1.bf16.msra.mxu0 0
          %3398 = vmatprep.subr.bf16.mxu0 0
          %3399 = vmatpush1.bf16.msra.mxu0 0
          %3400 = vmatprep.subr.bf16.mxu0 0
          %3401 = vmatpush1.bf16.msra.mxu0 0
          %3402 = vmatprep.subr.bf16.mxu0 0
          %3403 = vmatpush1.bf16.msra.mxu0 0
          %3404 = vmatprep.mubr.bf16.mxu0 0
          %3405 = vmatmul.mubr.bf16.gmra.mrb[0].mxu0 %v3367
          %v3406 = vpop.f32.mrb[0].mxu0
          %v3407 = vadd.f32 0.0, %v3406
          %v3408 = vpop.f32.mrb[0].mxu0
          %v3409 = vpop.f32.mrb[0].mxu0
          %v3410 = vpop.f32.mrb[0].mxu0
          %3411 = vdwg.mxu0
          %3413 = vrot.lane.b32.xlu0 %v3407, 112
          %v3414 = vpop.permute.xlu0 %3413
          %v3416 = vmul.f32 %v2666, %v3414
          %v3417 = vpack.c.bf16 %v3416, %v3416
          %v3418 = vld [vmem:[%s2812 + $0x18] sm:$0xf]
          %v3419 = vld [vmem:[%s2812 + $0x1c] sm:$0xf]
          %3421 = vrot.lane.b32.xlu0 %v3417, 16
          %v3422 = vpop.permute.xlu0 %3421
          %v3425 = vunpack.c.l.b16 %v3418
          %v3426 = vunpack.c.l.b16 %v3419
          %v3427 = vpack.c.b16 %v3426, %v3425
          %v3430 = vsel %vm1412, %v3422, 0
          %3432 = vmatprep.subr.bf16.mxu0 0
          %3433 = vmatpush1.bf16.msra.mxu0 %v3427
          %3434 = vmatprep.subr.bf16.mxu0 0
          %3435 = vmatpush1.bf16.msra.mxu0 0
          %3436 = vmatprep.subr.bf16.mxu0 0
          %3437 = vmatpush1.bf16.msra.mxu0 0
          %3438 = vmatprep.subr.bf16.mxu0 0
          %3439 = vmatpush1.bf16.msra.mxu0 0
          %3440 = vmatprep.subr.bf16.mxu0 0
          %3441 = vmatpush1.bf16.msra.mxu0 0
          %3442 = vmatprep.subr.bf16.mxu0 0
          %3443 = vmatpush1.bf16.msra.mxu0 0
          %3444 = vmatprep.subr.bf16.mxu0 0
          %3445 = vmatpush1.bf16.msra.mxu0 0
          %3446 = vmatprep.subr.bf16.mxu0 0
          %3447 = vmatpush1.bf16.msra.mxu0 0
          %3448 = vmatprep.subr.bf16.mxu0 0
          %3449 = vmatpush1.bf16.msra.mxu0 0
          %3450 = vmatprep.subr.bf16.mxu0 0
          %3451 = vmatpush1.bf16.msra.mxu0 0
          %3452 = vmatprep.subr.bf16.mxu0 0
          %3453 = vmatpush1.bf16.msra.mxu0 0
          %3454 = vmatprep.subr.bf16.mxu0 0
          %3455 = vmatpush1.bf16.msra.mxu0 0
          %3456 = vmatprep.subr.bf16.mxu0 0
          %3457 = vmatpush1.bf16.msra.mxu0 0
          %3458 = vmatprep.subr.bf16.mxu0 0
          %3459 = vmatpush1.bf16.msra.mxu0 0
          %3460 = vmatprep.subr.bf16.mxu0 0
          %3461 = vmatpush1.bf16.msra.mxu0 0
          %3462 = vmatprep.subr.bf16.mxu0 0
          %3463 = vmatpush1.bf16.msra.mxu0 0
          %3464 = vmatprep.mubr.bf16.mxu0 0
          %3465 = vmatmul.mubr.bf16.gmra.mrb[0].mxu0 %v3430
          %v3466 = vpop.f32.mrb[0].mxu0
          %v3467 = vadd.f32 0.0, %v3466
          %v3468 = vpop.f32.mrb[0].mxu0
          %v3469 = vpop.f32.mrb[0].mxu0
          %v3470 = vpop.f32.mrb[0].mxu0
          %3471 = vdwg.mxu0
          %v3472 = vadd.f32 %v3270, %v3467
          %v3473 = vadd.f32 %v2528, %v3472
          %v3474 = vld [vmem:[%s2529 + $0x3] sm:$0x1]
          %v3475 = vlaneseq
          %v3476 = vshrl.u32 %v3475, 7
          %v3477 = vsub.s32 0, %v3476
          %v3478 = vrot.slane %v3474, %v3477
          %v3479 = vadd.f32 %v3473, %v3478
          %v3480 = vld [vmem:[%s2529 + $0x4] sm:$0x1]
          %v3481 = vld [vmem:[%s2529 + $0x5] sm:$0x1]
          %v3482 = vsel %vm768, %v3479, 0.0
          %3483 = vadd.xlane.f32.xlu0 %v3482
          %v3484 = vpop.xlane.xlu0 %3483
          %v3485 = vmul.f32 %v3484, %v883
          %v3486 = vsub.f32 %v3479, %v3485
          %v3487 = vmul.f32 %v3486, %v3486
          %v3488 = vsel %vm768, %v3487, 0.0
          %3489 = vadd.xlane.f32.xlu0 %v3488
          %v3490 = vpop.xlane.xlu0 %3489
          %v3491 = vmul.f32 %v3490, %v883
          %v3492 = vadd.f32 %v3491, 1e-05
          %v3493 = vrsqrt.pop %v3492
          %v3494 = vmul.f32 %v3486, %v3493
          %v3495 = vlaneseq
          %v3496 = vshrl.u32 %v3495, 7
          %v3497 = vsub.s32 0, %v3496
          %v3498 = vrot.slane %v3480, %v3497
          %v3499 = vmul.f32 %v3494, %v3498
          %v3500 = vlaneseq
          %v3501 = vshrl.u32 %v3500, 7
          %v3502 = vsub.s32 0, %v3501
          %v3503 = vrot.slane %v3481, %v3502
          %v3504 = vadd.f32 %v3499, %v3503
          %v3505 = vpack.c.bf16 %v3504, %v3504
          %v3506 = vld [vmem:[%s2556 + $0x40] sm:$0xff]
          %v3507 = vld [vmem:[%s2556 + $0x48] sm:$0xff]
          %v3508 = vld [vmem:[%s2556 + $0x50] sm:$0xff]
          %v3509 = vld [vmem:[%s2556 + $0x58] sm:$0xff]
          %v3510 = vld [vmem:[%s2556 + $0x60] sm:$0xff]
          %v3511 = vld [vmem:[%s2556 + $0x68] sm:$0xff]
          %v3512 = vld [vmem:[%s2556 + $0x70] sm:$0xff]
          %v3513 = vld [vmem:[%s2556 + $0x78] sm:$0xff]
          %s3514 = scalar_lea.vmem [#allocation17], 1
          %v3515 = vld [vmem:[%s3514] ss:$2 sm:$0x3]
          %v3517 = vlaneseq
          %v3518 = vshrl.u32 %v3517, 7
          %v3519 = vsub.s32 0, %v3518
          %v3520 = vrot.slane %v3515, %v3519
          %v3521 = vlaneseq
          %v3522 = vshrl.u32 %v3521, 7
          %v3523 = vsub.s32 1, %v3522
          %v3524 = vrot.slane %v3515, %v3523
          %v3535 = vunpack.c.l.b16 %v3506
          %v3536 = vunpack.c.h.b16 %v3506
          %v3537 = vunpack.c.l.b16 %v3507
          %v3538 = vunpack.c.h.b16 %v3507
          %v3539 = vunpack.c.l.b16 %v3508
          %v3540 = vunpack.c.h.b16 %v3508
          %v3541 = vunpack.c.l.b16 %v3509
          %v3542 = vunpack.c.h.b16 %v3509
          %v3543 = vunpack.c.l.b16 %v3510
          %v3544 = vunpack.c.h.b16 %v3510
          %v3545 = vunpack.c.l.b16 %v3511
          %v3546 = vunpack.c.h.b16 %v3511
          %v3547 = vunpack.c.l.b16 %v3512
          %v3548 = vunpack.c.h.b16 %v3512
          %v3549 = vunpack.c.l.b16 %v3513
          %v3550 = vunpack.c.h.b16 %v3513
          %v3551 = vpack.c.b16 %v3537, %v3535
          %v3552 = vpack.c.b16 %v3538, %v3536
          %v3553 = vpack.c.b16 %v3541, %v3539
          %v3554 = vpack.c.b16 %v3542, %v3540
          %v3555 = vpack.c.b16 %v3545, %v3543
          %v3556 = vpack.c.b16 %v3546, %v3544
          %v3557 = vpack.c.b16 %v3549, %v3547
          %v3558 = vpack.c.b16 %v3550, %v3548
          %v3568 = vsel %vm768, %v3505, 0
          %3570 = vmatprep.subr.bf16.mxu0 %v3552
          %3571 = vmatpush1.bf16.msra.mxu0 %v3551
          %3572 = vmatprep.subr.bf16.mxu0 %v3554
          %3573 = vmatpush1.bf16.msra.mxu0 %v3553
          %3574 = vmatprep.subr.bf16.mxu0 %v3556
          %3575 = vmatpush1.bf16.msra.mxu0 %v3555
          %3576 = vmatprep.subr.bf16.mxu0 %v3558
          %3577 = vmatpush1.bf16.msra.mxu0 %v3557
          %3578 = vmatprep.subr.bf16.mxu0 0
          %3579 = vmatpush1.bf16.msra.mxu0 0
          %3580 = vmatprep.subr.bf16.mxu0 0
          %3581 = vmatpush1.bf16.msra.mxu0 0
          %3582 = vmatprep.subr.bf16.mxu0 0
          %3583 = vmatpush1.bf16.msra.mxu0 0
          %3584 = vmatprep.subr.bf16.mxu0 0
          %3585 = vmatpush1.bf16.msra.mxu0 0
          %3586 = vmatprep.subr.bf16.mxu0 0
          %3587 = vmatpush1.bf16.msra.mxu0 0
          %3588 = vmatprep.subr.bf16.mxu0 0
          %3589 = vmatpush1.bf16.msra.mxu0 0
          %3590 = vmatprep.subr.bf16.mxu0 0
          %3591 = vmatpush1.bf16.msra.mxu0 0
          %3592 = vmatprep.subr.bf16.mxu0 0
          %3593 = vmatpush1.bf16.msra.mxu0 0
          %3594 = vmatprep.subr.bf16.mxu0 0
          %3595 = vmatpush1.bf16.msra.mxu0 0
          %3596 = vmatprep.subr.bf16.mxu0 0
          %3597 = vmatpush1.bf16.msra.mxu0 0
          %3598 = vmatprep.subr.bf16.mxu0 0
          %3599 = vmatpush1.bf16.msra.mxu0 0
          %3600 = vmatprep.subr.bf16.mxu0 0
          %3601 = vmatpush1.bf16.msra.mxu0 0
          %3602 = vmatprep.mubr.bf16.mxu0 0
          %3603 = vmatmul.mubr.bf16.gmra.mrb[0].mxu0 %v3568
          %v3604 = vpop.f32.mrb[0].mxu0
          %v3605 = vadd.f32 %v3520, %v3604
          %v3606 = vpop.f32.mrb[0].mxu0
          %v3607 = vadd.f32 %v3524, %v3606
          %v3608 = vpop.f32.mrb[0].mxu0
          %v3609 = vpop.f32.mrb[0].mxu0
          %3610 = vdwg.mxu0
          %v3611 = vmax.f32 %v3605, 0.0
          %v3612 = vmax.f32 %v3607, 0.0
          %v3613 = vpack.c.bf16 %v3611, %v3611
          %v3614 = vpack.c.bf16 %v3612, %v3612
          %v3615 = vld [vmem:[%s2812 + $0x20] sm:$0xf]
          %v3616 = vld [vmem:[%s2812 + $0x24] sm:$0xf]
          %v3617 = vld [vmem:[%s2812 + $0x28] sm:$0xf]
          %v3618 = vld [vmem:[%s2812 + $0x2c] sm:$0xf]
          %v3619 = vld [vmem:[%s2812 + $0x30] sm:$0xf]
          %v3620 = vld [vmem:[%s2812 + $0x34] sm:$0xf]
          %v3621 = vld [vmem:[%s2812 + $0x38] sm:$0xf]
          %v3622 = vld [vmem:[%s2812 + $0x3c] sm:$0xf]
          %v3623 = vld [vmem:[%s2812 + $0x40] sm:$0xf]
          %v3624 = vld [vmem:[%s2812 + $0x44] sm:$0xf]
          %v3625 = vld [vmem:[%s2812 + $0x48] sm:$0xf]
          %v3626 = vld [vmem:[%s2812 + $0x4c] sm:$0xf]
          %v3627 = vld [vmem:[%s2812 + $0x50] sm:$0xf]
          %v3628 = vld [vmem:[%s2812 + $0x54] sm:$0xf]
          %v3629 = vld [vmem:[%s2812 + $0x58] sm:$0xf]
          %v3630 = vld [vmem:[%s2812 + $0x5c] sm:$0xf]
          %v3631 = vld [vmem:[%s2812 + $0x60] sm:$0xf]
          %v3632 = vld [vmem:[%s2812 + $0x64] sm:$0xf]
          %v3633 = vld [vmem:[%s2812 + $0x68] sm:$0xf]
          %v3634 = vld [vmem:[%s2812 + $0x6c] sm:$0xf]
          %v3635 = vld [vmem:[%s2812 + $0x70] sm:$0xf]
          %v3636 = vld [vmem:[%s2812 + $0x74] sm:$0xf]
          %v3637 = vld [vmem:[%s2812 + $0x78] sm:$0xf]
          %v3638 = vld [vmem:[%s2812 + $0x7c] sm:$0xf]
          %v3639 = vld [vmem:[%s2812 + $0x80] sm:$0xf]
          %v3640 = vld [vmem:[%s2812 + $0x84] sm:$0xf]
          %v3641 = vld [vmem:[%s2812 + $0x88] sm:$0xf]
          %v3642 = vld [vmem:[%s2812 + $0x8c] sm:$0xf]
          %v3643 = vld [vmem:[%s2812 + $0x90] sm:$0xf]
          %v3644 = vld [vmem:[%s2812 + $0x94] sm:$0xf]
          %v3645 = vld [vmem:[%s2812 + $0x98] sm:$0xf]
          %v3646 = vld [vmem:[%s2812 + $0x9c] sm:$0xf]
          %v3647 = vld [vmem:[%s2529 + $0x6] sm:$0x1]
          %v3648 = vlaneseq
          %v3649 = vshrl.u32 %v3648, 7
          %v3650 = vsub.s32 0, %v3649
          %v3651 = vrot.slane %v3647, %v3650
          %v3684 = vunpack.c.l.b16 %v3615
          %v3685 = vunpack.c.l.b16 %v3616
          %v3686 = vunpack.c.l.b16 %v3617
          %v3687 = vunpack.c.l.b16 %v3618
          %v3688 = vunpack.c.l.b16 %v3619
          %v3689 = vunpack.c.l.b16 %v3620
          %v3690 = vunpack.c.l.b16 %v3621
          %v3691 = vunpack.c.l.b16 %v3622
          %v3692 = vunpack.c.l.b16 %v3623
          %v3693 = vunpack.c.l.b16 %v3624
          %v3694 = vunpack.c.l.b16 %v3625
          %v3695 = vunpack.c.l.b16 %v3626
          %v3696 = vunpack.c.l.b16 %v3627
          %v3697 = vunpack.c.l.b16 %v3628
          %v3698 = vunpack.c.l.b16 %v3629
          %v3699 = vunpack.c.l.b16 %v3630
          %v3700 = vunpack.c.l.b16 %v3631
          %v3701 = vunpack.c.l.b16 %v3632
          %v3702 = vunpack.c.l.b16 %v3633
          %v3703 = vunpack.c.l.b16 %v3634
          %v3704 = vunpack.c.l.b16 %v3635
          %v3705 = vunpack.c.l.b16 %v3636
          %v3706 = vunpack.c.l.b16 %v3637
          %v3707 = vunpack.c.l.b16 %v3638
          %v3708 = vunpack.c.l.b16 %v3639
          %v3709 = vunpack.c.l.b16 %v3640
          %v3710 = vunpack.c.l.b16 %v3641
          %v3711 = vunpack.c.l.b16 %v3642
          %v3712 = vunpack.c.l.b16 %v3643
          %v3713 = vunpack.c.l.b16 %v3644
          %v3714 = vunpack.c.l.b16 %v3645
          %v3715 = vunpack.c.l.b16 %v3646
          %v3716 = vpack.c.b16 %v3685, %v3684
          %v3717 = vpack.c.b16 %v3687, %v3686
          %v3718 = vpack.c.b16 %v3689, %v3688
          %v3719 = vpack.c.b16 %v3691, %v3690
          %v3720 = vpack.c.b16 %v3693, %v3692
          %v3721 = vpack.c.b16 %v3695, %v3694
          %v3722 = vpack.c.b16 %v3697, %v3696
          %v3723 = vpack.c.b16 %v3699, %v3698
          %v3724 = vpack.c.b16 %v3701, %v3700
          %v3725 = vpack.c.b16 %v3703, %v3702
          %v3726 = vpack.c.b16 %v3705, %v3704
          %v3727 = vpack.c.b16 %v3707, %v3706
          %v3728 = vpack.c.b16 %v3709, %v3708
          %v3729 = vpack.c.b16 %v3711, %v3710
          %v3730 = vpack.c.b16 %v3713, %v3712
          %v3731 = vpack.c.b16 %v3715, %v3714
          %3748 = vmatprep.subr.bf16.mxu0 0
          %3749 = vmatpush1.bf16.msra.mxu0 %v3716
          %3750 = vmatprep.subr.bf16.mxu0 0
          %3751 = vmatpush1.bf16.msra.mxu0 %v3717
          %3752 = vmatprep.subr.bf16.mxu0 0
          %3753 = vmatpush1.bf16.msra.mxu0 %v3718
          %3754 = vmatprep.subr.bf16.mxu0 0
          %3755 = vmatpush1.bf16.msra.mxu0 %v3719
          %3756 = vmatprep.subr.bf16.mxu0 0
          %3757 = vmatpush1.bf16.msra.mxu0 %v3720
          %3758 = vmatprep.subr.bf16.mxu0 0
          %3759 = vmatpush1.bf16.msra.mxu0 %v3721
          %3760 = vmatprep.subr.bf16.mxu0 0
          %3761 = vmatpush1.bf16.msra.mxu0 %v3722
          %3762 = vmatprep.subr.bf16.mxu0 0
          %3763 = vmatpush1.bf16.msra.mxu0 %v3723
          %3764 = vmatprep.subr.bf16.mxu0 0
          %3765 = vmatpush1.bf16.msra.mxu0 %v3724
          %3766 = vmatprep.subr.bf16.mxu0 0
          %3767 = vmatpush1.bf16.msra.mxu0 %v3725
          %3768 = vmatprep.subr.bf16.mxu0 0
          %3769 = vmatpush1.bf16.msra.mxu0 %v3726
          %3770 = vmatprep.subr.bf16.mxu0 0
          %3771 = vmatpush1.bf16.msra.mxu0 %v3727
          %3772 = vmatprep.subr.bf16.mxu0 0
          %3773 = vmatpush1.bf16.msra.mxu0 %v3728
          %3774 = vmatprep.subr.bf16.mxu0 0
          %3775 = vmatpush1.bf16.msra.mxu0 %v3729
          %3776 = vmatprep.subr.bf16.mxu0 0
          %3777 = vmatpush1.bf16.msra.mxu0 %v3730
          %3778 = vmatprep.subr.bf16.mxu0 0
          %3779 = vmatpush1.bf16.msra.mxu0 %v3731
          %3780 = vmatprep.mubr.bf16.mxu0 %v3614
          %3781 = vmatmul.mubr.bf16.gmra.mrb[0].mxu0 %v3613
          %v3782 = vpop.f32.mrb[0].mxu0
          %v3783 = vadd.f32 %v3651, %v3782
          %v3784 = vpop.f32.mrb[0].mxu0
          %v3785 = vpop.f32.mrb[0].mxu0
          %v3786 = vpop.f32.mrb[0].mxu0
          %3787 = vdwg.mxu0
          %v3788 = vadd.f32 %v3479, %v3783
          %v3789 = vld [vmem:[#allocation14 + $0x1] sm:$0x1]
          %v3790 = vld [vmem:[#allocation14 + $0x2] sm:$0x1]
          %v3791 = vsel %vm768, %v3788, 0.0
          %3792 = vadd.xlane.f32.xlu0 %v3791
          %v3793 = vpop.xlane.xlu0 %3792
          %v3794 = vmul.f32 %v3793, %v883
          %v3795 = vsub.f32 %v3788, %v3794
          %v3796 = vmul.f32 %v3795, %v3795
          %v3797 = vsel %vm768, %v3796, 0.0
          %3798 = vadd.xlane.f32.xlu0 %v3797
          %v3799 = vpop.xlane.xlu0 %3798
          %v3800 = vmul.f32 %v3799, %v883
          %v3801 = vadd.f32 %v3800, 1e-05
          %v3802 = vrsqrt.pop %v3801
          %v3803 = vmul.f32 %v3795, %v3802
          %v3804 = vlaneseq
          %v3805 = vshrl.u32 %v3804, 7
          %v3806 = vsub.s32 0, %v3805
          %v3807 = vrot.slane %v3789, %v3806
          %v3808 = vmul.f32 %v3803, %v3807
          %v3809 = vlaneseq
          %v3810 = vshrl.u32 %v3809, 7
          %v3811 = vsub.s32 0, %v3810
          %v3812 = vrot.slane %v3790, %v3811
          %v3813 = vadd.f32 %v3808, %v3812
          %3814 = vst.msk [vmem:[%s606] sm:$0xff] %vm768, %v3813
        $region112: #{tpu_custom_call.1} parent=63 // pred_fallthru
          _
        %s3815 = sand.u32 %s305, 1
        %s3816 = scalar_lea.sflag [#allocation5], %s3815
        %s3817 = sand.u32 %s305, 1
        %s3818 = smul.addr %s3817, 8
        %s3819 = scalar_lea.vmem [#allocation21], %s3818
        // Predicated region
        $region113: #{tpu_custom_call.1} parent=63 // pred_check
          %p3820 = pneg %p315
        $region114: #{tpu_custom_call.1} parent=63 // pred_check_branch
          %3822 = sbr.rel (%p3820) target = $region116
        $region115: #{tpu_custom_call.1} parent=63 // pred_region
          %s3824 = ssub.s32 128, 128
          %3825 = vsyncadd %s3816, %s3824
          %s3826 = smul.addr %s39, 128
          %s3827 = scalar_lea.hbm %s11, %s3826
          %s3829 = sshll.u32 %s3819, 4
          %s3830 = int_to_ptr.vmem [resolvable:$true] %s3829
          %3832 = dma.vmem_to_hbm [thread:$0]  %s3830, 128, %s3827, %s3816
        $region116: #{tpu_custom_call.1} parent=63 // pred_fallthru
          _
      $region64: #{tpu_custom_call.1} parent=5 // pred_fallthru
        _
      %p3833 = scmp.le.s32.totalorder 2, %s30
      // Predicated region
      $region117: #{tpu_custom_call.1} parent=5 // pred_check
        %p3834 = pneg %p3833
      $region118: #{tpu_custom_call.1} parent=5 // pred_check_branch
        %3836 = sbr.rel (%p3834) target = $region120
      $region119: #{tpu_custom_call.1} parent=5 // pred_region
        %s3837 = ssub.s32 %s30, 2
        // Predicated region
        $region121: #{tpu_custom_call.1} parent=119 // pred_check
          %p3838 = pneg %p321
        $region122: #{tpu_custom_call.1} parent=119 // pred_check_branch
          %3840 = sbr.rel (%p3838) target = $region124
        $region123: #{tpu_custom_call.1} parent=119 // pred_region
          %s3841 = sand.u32 %s306, 1
          %s3842 = scalar_lea.sflag [#allocation5], %s3841
          %s3843 = sand.u32 %s306, 1
          %s3844 = smul.addr %s3843, 8
          %s3845 = scalar_lea.vmem [#allocation21], %s3844
          %3846 = dma.done %s3842, 128
        $region124: #{tpu_custom_call.1} parent=119 // pred_fallthru
          _
      $region120: #{tpu_custom_call.1} parent=5 // pred_fallthru
        _
    $region6: #{tpu_custom_call.1} parent=1 // loop_footer
      %s34 = sadd.s32 1, %s30
    $region7: #{tpu_custom_call.1} parent=1 // loop_footer_branch
      %29 = sbr.rel target = $region3
    $region8: #{tpu_custom_call.1} parent=1 // loop_exit
      _
    %3847 = vsyncpa [#allocation4], 1
    %s3848 = scalar_lea.sflag [#allocation4], 1
    %3849 = vsyncpa %s3848, 1
    %3850 = vsyncpa [#allocation7], 1
    %s3851 = scalar_lea.sflag [#allocation7], 1
    %3852 = vsyncpa %s3851, 1
    %3853 = vsyncpa [#allocation10], 1
    %3854 = vsyncpa [#allocation13], 1
    %3855 = vsyncpa [#allocation16], 1
    %3856 = vsyncpa [#allocation19], 1
    %3857 = vsyncpa [#allocation5], 1
    %s3858 = scalar_lea.sflag [#allocation5], 1
    %3859 = vsyncpa %s3858, 1

</llo_original>
